<compile_context>
chip_gen: v6e
topology: v6e:2x2x1
jax: 0.10.0
libtpu: 0.0.40
codegen_flags: <defaults>
</compile_context>

<pallas_src>
import jax
import jax.numpy as jnp
from jax import lax
from jax.experimental import pallas as pl
from jax.experimental.pallas import tpu as pltpu

# ---- module constants (from gpt.py) ----
n_embed = 384
block_size = 256
num_heads = 6
head_size = n_embed // num_heads  # 64


# ---------------------------------------------------------------------------
# Fused MHA kernel: grid = (B,); each step handles one batch element end-to-end.
# ---------------------------------------------------------------------------
def _mha_fused_kernel(x_ref, wqkv_ref, wp_ref, bp_ref, o_ref):
    # x_ref:    (1, T, C)
    # wqkv_ref: (C, 3*H*hs)  pre-transposed & stacked [Q | K | V], each block (C, H*hs)
    # wp_ref:   (C, C)       output-projection weight, pre-transposed to (in, out)
    # bp_ref:   (1, C)
    # o_ref:    (1, T, C)
    x = x_ref[0]                                                         # (T, C)
    T, C = x.shape
    Hhs = num_heads * head_size

    # One big MXU matmul for all heads' Q, K, V projections (N = 3*H*hs = 1152).
    qkv = jnp.dot(x, wqkv_ref[...], preferred_element_type=jnp.float32)  # (T, 3*H*hs)
    q_all = qkv[:, :Hhs]
    k_all = qkv[:, Hhs:2 * Hhs]
    v_all = qkv[:, 2 * Hhs:]

    # Causal additive mask, built once per grid step and reused across heads.
    row = lax.broadcasted_iota(jnp.int32, (T, T), 0)
    col = lax.broadcasted_iota(jnp.int32, (T, T), 1)
    neg_mask = jnp.where(col <= row, 0.0, -jnp.inf).astype(jnp.float32)  # (T, T)

    scale = C ** (-0.5)  # NOTE: PyTorch module scales by C = n_embed (not head_size)

    head_outs = []
    for h in range(num_heads):
        lo = h * head_size
        hi = lo + head_size
        q = q_all[:, lo:hi]                                              # (T, hs)
        k = k_all[:, lo:hi]                                              # (T, hs)
        v = v_all[:, lo:hi]                                              # (T, hs)

        # q @ k^T via dot_general contraction (no explicit transpose of k).
        wei = lax.dot_general(q, k, (((1,), (1,)), ((), ())),
                              preferred_element_type=jnp.float32)        # (T, T)
        wei = wei * scale + neg_mask

        # Numerically-stable softmax with deferred normalization.
        wei = wei - jnp.max(wei, axis=-1, keepdims=True)
        p = jnp.exp(wei)                                                 # (T, T), unnormalized
        denom = jnp.sum(p, axis=-1, keepdims=True)                       # (T, 1)
        pv = jnp.dot(p, v, preferred_element_type=jnp.float32)           # (T, hs)
        head_outs.append(pv / denom)  # normalize the (T, hs) result, not the (T, T) matrix

    cat = jnp.concatenate(head_outs, axis=-1)                            # (T, H*hs) = (T, C)

    # Fused output projection; lane-dense (T, C) store.
    out = jnp.dot(cat, wp_ref[...], preferred_element_type=jnp.float32) + bp_ref[...]
    o_ref[0] = out.astype(o_ref.dtype)


def multi_head_attention(x, params):
    """x: (B, T, C); params in PyTorch layout. Returns (B, T, C)."""
    B, T, C = x.shape
    H, hs, _ = params["wq"].shape

    # Host-side (trace-time) weight re-layout: all transposes happen once, outside the kernel.
    def to_col_major(w):  # (H, hs, C) torch (out, in) layout -> (C, H*hs)
        return jnp.transpose(w, (2, 0, 1)).reshape(C, H * hs)

    w_qkv = jnp.concatenate(
        [to_col_major(params["wq"]),
         to_col_major(params["wk"]),
         to_col_major(params["wv"])],
        axis=-1)                                    # (C, 3*H*hs)
    w_proj_t = params["w_proj"].T                   # (C, C) in (in, out) layout
    b_proj = params["b_proj"].reshape(1, C)

    return pl.pallas_call(
        _mha_fused_kernel,
        out_shape=jax.ShapeDtypeStruct((B, T, C), x.dtype),
        grid_spec=pltpu.PrefetchScalarGridSpec(
            num_scalar_prefetch=0,
            grid=(B,),
            in_specs=[
                pl.BlockSpec((1, T, C), lambda b: (b, 0, 0)),
                pl.BlockSpec((C, 3 * H * hs), lambda b: (0, 0)),
                pl.BlockSpec((C, C), lambda b: (0, 0)),
                pl.BlockSpec((1, C), lambda b: (0, 0)),
            ],
            out_specs=pl.BlockSpec((1, T, C), lambda b: (b, 0, 0)),
        ),
        compiler_params=pltpu.CompilerParams(
            dimension_semantics=("parallel",)),
    )(x, w_qkv, w_proj_t, b_proj)


def _reference(x, params):
    """Plain-JAX reference matching the PyTorch forward (eval mode)."""
    B, T, C = x.shape
    outs = []
    for h in range(num_heads):
        q = x @ params["wq"][h].T
        k = x @ params["wk"][h].T
        v = x @ params["wv"][h].T
        wei = (q @ jnp.swapaxes(k, -2, -1)) * (C ** (-0.5))
        mask = jnp.tril(jnp.ones((T, T)))
        wei = jnp.where(mask == 0, -jnp.inf, wei)
        wei = jax.nn.softmax(wei, axis=-1)
        outs.append(wei @ v)
    cat = jnp.concatenate(outs, axis=-1)
    return cat @ params["w_proj"].T + params["b_proj"]


if __name__ == "__main__":
    key = jax.random.PRNGKey(0)
    k_x, k_q, k_k, k_v, k_p, k_b = jax.random.split(key, 6)

    B, T = 2, 8  # T <= block_size
    x = jax.random.normal(k_x, (B, T, n_embed), dtype=jnp.float32)

    params = {
        "wq": jax.random.normal(k_q, (num_heads, head_size, n_embed), jnp.float32) * 0.02,
        "wk": jax.random.normal(k_k, (num_heads, head_size, n_embed), jnp.float32) * 0.02,
        "wv": jax.random.normal(k_v, (num_heads, head_size, n_embed), jnp.float32) * 0.02,
        "w_proj": jax.random.normal(k_p, (n_embed, n_embed), jnp.float32) * 0.02,
        "b_proj": jax.random.normal(k_b, (n_embed,), jnp.float32) * 0.02,
    }

    out = jax.block_until_ready(multi_head_attention(x, params))
    ref = jax.block_until_ready(_reference(x, params))

    assert out.shape == (B, T, n_embed), out.shape
    assert jnp.allclose(out, ref, atol=1e-4, rtol=1e-4), float(jnp.max(jnp.abs(out - ref)))

    print("KERNEL_OK")
</pallas_src>

<mosaic_0001>
module attributes {stable_mosaic.version = 11 : i64} {
  func.func @_mha_fused_kernel(%arg0: i32, %arg1: memref<1x8x384xf32, #tpu.memory_space<vmem>>, %arg2: memref<384x1152xf32, #tpu.memory_space<vmem>>, %arg3: memref<384x384xf32, #tpu.memory_space<vmem>>, %arg4: memref<1x384xf32, #tpu.memory_space<vmem>>, %arg5: memref<1x8x384xf32, #tpu.memory_space<vmem>>) attributes {dimension_semantics = [#tpu.dimension_semantics<parallel>], iteration_bounds = array<i64: 2>, scalar_prefetch = 0 : i64, scratch_operands = 0 : i64, tpu.core_type = #tpu.core_type<tc>, window_params = [{transform_indices = @transform_0, window_bounds = array<i64: 1, 8, 384>}, {pipeline_mode = #tpu.pipeline_mode<synchronous>, transform_indices = @transform_1, window_bounds = array<i64: 384, 1152>}, {pipeline_mode = #tpu.pipeline_mode<synchronous>, transform_indices = @transform_2, window_bounds = array<i64: 384, 384>}, {pipeline_mode = #tpu.pipeline_mode<synchronous>, transform_indices = @transform_3, window_bounds = array<i64: 1, 384>}, {transform_indices = @transform_4, window_bounds = array<i64: 1, 8, 384>}]} {
    %c0 = arith.constant 0 : index
    %c0_0 = arith.constant 0 : index
    %c0_1 = arith.constant 0 : index
    %0 = vector.load %arg1[%c0, %c0_0, %c0_1] : memref<1x8x384xf32, #tpu.memory_space<vmem>>, vector<1x8x384xf32>
    %1 = vector.shape_cast %0 : vector<1x8x384xf32> to vector<8x384xf32>
    %c0_2 = arith.constant 0 : index
    %c0_3 = arith.constant 0 : index
    %2 = vector.load %arg2[%c0_2, %c0_3] : memref<384x1152xf32, #tpu.memory_space<vmem>>, vector<384x1152xf32>
    %cst = arith.constant dense<0.000000e+00> : vector<8x1152xf32>
    %3 = tpu.matmul %1, %2, %cst {dimension_numbers = #tpu.dot_dimension_numbers<[1], [0], [0], [1], [0, 0, 1, 1], [], []>} : vector<8x384xf32>, vector<384x1152xf32>, vector<8x1152xf32> -> vector<8x1152xf32>
    %4 = vector.extract_strided_slice %3 {offsets = [0, 0], sizes = [8, 384], strides = [1, 1]} : vector<8x1152xf32> to vector<8x384xf32>
    %5 = vector.extract_strided_slice %3 {offsets = [0, 384], sizes = [8, 384], strides = [1, 1]} : vector<8x1152xf32> to vector<8x384xf32>
    %6 = vector.extract_strided_slice %3 {offsets = [0, 768], sizes = [8, 384], strides = [1, 1]} : vector<8x1152xf32> to vector<8x384xf32>
    %7 = tpu.iota {dimensions = array<i32: 0>} : vector<8x8xi32>
    %8 = tpu.iota {dimensions = array<i32: 1>} : vector<8x8xi32>
    %9 = arith.cmpi sle, %8, %7 : vector<8x8xi32>
    %cst_4 = arith.constant 0.000000e+00 : f32
    %cst_5 = arith.constant 0xFF800000 : f32
    %10 = vector.broadcast %cst_4 : f32 to vector<8x8xf32>
    %11 = vector.broadcast %cst_5 : f32 to vector<8x8xf32>
    %12 = arith.select %9, %10, %11 : vector<8x8xi1>, vector<8x8xf32>
    %13 = vector.extract_strided_slice %4 {offsets = [0, 0], sizes = [8, 64], strides = [1, 1]} : vector<8x384xf32> to vector<8x64xf32>
    %14 = vector.extract_strided_slice %5 {offsets = [0, 0], sizes = [8, 64], strides = [1, 1]} : vector<8x384xf32> to vector<8x64xf32>
    %15 = vector.extract_strided_slice %6 {offsets = [0, 0], sizes = [8, 64], strides = [1, 1]} : vector<8x384xf32> to vector<8x64xf32>
    %cst_6 = arith.constant dense<0.000000e+00> : vector<8x8xf32>
    %16 = tpu.matmul %13, %14, %cst_6 {dimension_numbers = #tpu.dot_dimension_numbers<[1], [1], [0], [0], [0, 0, 1, 0], [], []>} : vector<8x64xf32>, vector<8x64xf32>, vector<8x8xf32> -> vector<8x8xf32>
    %cst_7 = arith.constant 0.0510310382 : f32
    %17 = vector.broadcast %cst_7 : f32 to vector<8x8xf32>
    %18 = arith.mulf %16, %17 : vector<8x8xf32>
    %19 = arith.addf %18, %12 : vector<8x8xf32>
    %cst_8 = arith.constant dense<0xFF800000> : vector<8xf32>
    %20 = vector.multi_reduction <maximumf>, %19, %cst_8 [1] : vector<8x8xf32> to vector<8xf32>
    %21 = vector.shape_cast %20 : vector<8xf32> to vector<8x1xf32>
    %22 = vector.broadcast %21 : vector<8x1xf32> to vector<8x8xf32>
    %23 = arith.subf %19, %22 : vector<8x8xf32>
    %24 = math.exp %23 : vector<8x8xf32>
    %cst_9 = arith.constant dense<0.000000e+00> : vector<8xf32>
    %25 = vector.multi_reduction <add>, %24, %cst_9 [1] : vector<8x8xf32> to vector<8xf32>
    %26 = vector.shape_cast %25 : vector<8xf32> to vector<8x1xf32>
    %cst_10 = arith.constant dense<0.000000e+00> : vector<8x64xf32>
    %27 = tpu.matmul %24, %15, %cst_10 {dimension_numbers = #tpu.dot_dimension_numbers<[1], [0], [0], [1], [0, 0, 1, 1], [], []>} : vector<8x8xf32>, vector<8x64xf32>, vector<8x64xf32> -> vector<8x64xf32>
    %28 = vector.broadcast %26 : vector<8x1xf32> to vector<8x64xf32>
    %29 = arith.divf %27, %28 : vector<8x64xf32>
    %30 = vector.extract_strided_slice %4 {offsets = [0, 64], sizes = [8, 64], strides = [1, 1]} : vector<8x384xf32> to vector<8x64xf32>
    %31 = vector.extract_strided_slice %5 {offsets = [0, 64], sizes = [8, 64], strides = [1, 1]} : vector<8x384xf32> to vector<8x64xf32>
    %32 = vector.extract_strided_slice %6 {offsets = [0, 64], sizes = [8, 64], strides = [1, 1]} : vector<8x384xf32> to vector<8x64xf32>
    %cst_11 = arith.constant dense<0.000000e+00> : vector<8x8xf32>
    %33 = tpu.matmul %30, %31, %cst_11 {dimension_numbers = #tpu.dot_dimension_numbers<[1], [1], [0], [0], [0, 0, 1, 0], [], []>} : vector<8x64xf32>, vector<8x64xf32>, vector<8x8xf32> -> vector<8x8xf32>
    %cst_12 = arith.constant 0.0510310382 : f32
    %34 = vector.broadcast %cst_12 : f32 to vector<8x8xf32>
    %35 = arith.mulf %33, %34 : vector<8x8xf32>
    %36 = arith.addf %35, %12 : vector<8x8xf32>
    %cst_13 = arith.constant dense<0xFF800000> : vector<8xf32>
    %37 = vector.multi_reduction <maximumf>, %36, %cst_13 [1] : vector<8x8xf32> to vector<8xf32>
    %38 = vector.shape_cast %37 : vector<8xf32> to vector<8x1xf32>
    %39 = vector.broadcast %38 : vector<8x1xf32> to vector<8x8xf32>
    %40 = arith.subf %36, %39 : vector<8x8xf32>
    %41 = math.exp %40 : vector<8x8xf32>
    %cst_14 = arith.constant dense<0.000000e+00> : vector<8xf32>
    %42 = vector.multi_reduction <add>, %41, %cst_14 [1] : vector<8x8xf32> to vector<8xf32>
    %43 = vector.shape_cast %42 : vector<8xf32> to vector<8x1xf32>
    %cst_15 = arith.constant dense<0.000000e+00> : vector<8x64xf32>
    %44 = tpu.matmul %41, %32, %cst_15 {dimension_numbers = #tpu.dot_dimension_numbers<[1], [0], [0], [1], [0, 0, 1, 1], [], []>} : vector<8x8xf32>, vector<8x64xf32>, vector<8x64xf32> -> vector<8x64xf32>
    %45 = vector.broadcast %43 : vector<8x1xf32> to vector<8x64xf32>
    %46 = arith.divf %44, %45 : vector<8x64xf32>
    %47 = vector.extract_strided_slice %4 {offsets = [0, 128], sizes = [8, 64], strides = [1, 1]} : vector<8x384xf32> to vector<8x64xf32>
    %48 = vector.extract_strided_slice %5 {offsets = [0, 128], sizes = [8, 64], strides = [1, 1]} : vector<8x384xf32> to vector<8x64xf32>
    %49 = vector.extract_strided_slice %6 {offsets = [0, 128], sizes = [8, 64], strides = [1, 1]} : vector<8x384xf32> to vector<8x64xf32>
    %cst_16 = arith.constant dense<0.000000e+00> : vector<8x8xf32>
    %50 = tpu.matmul %47, %48, %cst_16 {dimension_numbers = #tpu.dot_dimension_numbers<[1], [1], [0], [0], [0, 0, 1, 0], [], []>} : vector<8x64xf32>, vector<8x64xf32>, vector<8x8xf32> -> vector<8x8xf32>
    %cst_17 = arith.constant 0.0510310382 : f32
    %51 = vector.broadcast %cst_17 : f32 to vector<8x8xf32>
    %52 = arith.mulf %50, %51 : vector<8x8xf32>
    %53 = arith.addf %52, %12 : vector<8x8xf32>
    %cst_18 = arith.constant dense<0xFF800000> : vector<8xf32>
    %54 = vector.multi_reduction <maximumf>, %53, %cst_18 [1] : vector<8x8xf32> to vector<8xf32>
    %55 = vector.shape_cast %54 : vector<8xf32> to vector<8x1xf32>
    %56 = vector.broadcast %55 : vector<8x1xf32> to vector<8x8xf32>
    %57 = arith.subf %53, %56 : vector<8x8xf32>
    %58 = math.exp %57 : vector<8x8xf32>
    %cst_19 = arith.constant dense<0.000000e+00> : vector<8xf32>
    %59 = vector.multi_reduction <add>, %58, %cst_19 [1] : vector<8x8xf32> to vector<8xf32>
    %60 = vector.shape_cast %59 : vector<8xf32> to vector<8x1xf32>
    %cst_20 = arith.constant dense<0.000000e+00> : vector<8x64xf32>
    %61 = tpu.matmul %58, %49, %cst_20 {dimension_numbers = #tpu.dot_dimension_numbers<[1], [0], [0], [1], [0, 0, 1, 1], [], []>} : vector<8x8xf32>, vector<8x64xf32>, vector<8x64xf32> -> vector<8x64xf32>
    %62 = vector.broadcast %60 : vector<8x1xf32> to vector<8x64xf32>
    %63 = arith.divf %61, %62 : vector<8x64xf32>
    %64 = vector.extract_strided_slice %4 {offsets = [0, 192], sizes = [8, 64], strides = [1, 1]} : vector<8x384xf32> to vector<8x64xf32>
    %65 = vector.extract_strided_slice %5 {offsets = [0, 192], sizes = [8, 64], strides = [1, 1]} : vector<8x384xf32> to vector<8x64xf32>
    %66 = vector.extract_strided_slice %6 {offsets = [0, 192], sizes = [8, 64], strides = [1, 1]} : vector<8x384xf32> to vector<8x64xf32>
    %cst_21 = arith.constant dense<0.000000e+00> : vector<8x8xf32>
    %67 = tpu.matmul %64, %65, %cst_21 {dimension_numbers = #tpu.dot_dimension_numbers<[1], [1], [0], [0], [0, 0, 1, 0], [], []>} : vector<8x64xf32>, vector<8x64xf32>, vector<8x8xf32> -> vector<8x8xf32>
    %cst_22 = arith.constant 0.0510310382 : f32
    %68 = vector.broadcast %cst_22 : f32 to vector<8x8xf32>
    %69 = arith.mulf %67, %68 : vector<8x8xf32>
    %70 = arith.addf %69, %12 : vector<8x8xf32>
    %cst_23 = arith.constant dense<0xFF800000> : vector<8xf32>
    %71 = vector.multi_reduction <maximumf>, %70, %cst_23 [1] : vector<8x8xf32> to vector<8xf32>
    %72 = vector.shape_cast %71 : vector<8xf32> to vector<8x1xf32>
    %73 = vector.broadcast %72 : vector<8x1xf32> to vector<8x8xf32>
    %74 = arith.subf %70, %73 : vector<8x8xf32>
    %75 = math.exp %74 : vector<8x8xf32>
    %cst_24 = arith.constant dense<0.000000e+00> : vector<8xf32>
    %76 = vector.multi_reduction <add>, %75, %cst_24 [1] : vector<8x8xf32> to vector<8xf32>
    %77 = vector.shape_cast %76 : vector<8xf32> to vector<8x1xf32>
    %cst_25 = arith.constant dense<0.000000e+00> : vector<8x64xf32>
    %78 = tpu.matmul %75, %66, %cst_25 {dimension_numbers = #tpu.dot_dimension_numbers<[1], [0], [0], [1], [0, 0, 1, 1], [], []>} : vector<8x8xf32>, vector<8x64xf32>, vector<8x64xf32> -> vector<8x64xf32>
    %79 = vector.broadcast %77 : vector<8x1xf32> to vector<8x64xf32>
    %80 = arith.divf %78, %79 : vector<8x64xf32>
    %81 = vector.extract_strided_slice %4 {offsets = [0, 256], sizes = [8, 64], strides = [1, 1]} : vector<8x384xf32> to vector<8x64xf32>
    %82 = vector.extract_strided_slice %5 {offsets = [0, 256], sizes = [8, 64], strides = [1, 1]} : vector<8x384xf32> to vector<8x64xf32>
    %83 = vector.extract_strided_slice %6 {offsets = [0, 256], sizes = [8, 64], strides = [1, 1]} : vector<8x384xf32> to vector<8x64xf32>
    %cst_26 = arith.constant dense<0.000000e+00> : vector<8x8xf32>
    %84 = tpu.matmul %81, %82, %cst_26 {dimension_numbers = #tpu.dot_dimension_numbers<[1], [1], [0], [0], [0, 0, 1, 0], [], []>} : vector<8x64xf32>, vector<8x64xf32>, vector<8x8xf32> -> vector<8x8xf32>
    %cst_27 = arith.constant 0.0510310382 : f32
    %85 = vector.broadcast %cst_27 : f32 to vector<8x8xf32>
    %86 = arith.mulf %84, %85 : vector<8x8xf32>
    %87 = arith.addf %86, %12 : vector<8x8xf32>
    %cst_28 = arith.constant dense<0xFF800000> : vector<8xf32>
    %88 = vector.multi_reduction <maximumf>, %87, %cst_28 [1] : vector<8x8xf32> to vector<8xf32>
    %89 = vector.shape_cast %88 : vector<8xf32> to vector<8x1xf32>
    %90 = vector.broadcast %89 : vector<8x1xf32> to vector<8x8xf32>
    %91 = arith.subf %87, %90 : vector<8x8xf32>
    %92 = math.exp %91 : vector<8x8xf32>
    %cst_29 = arith.constant dense<0.000000e+00> : vector<8xf32>
    %93 = vector.multi_reduction <add>, %92, %cst_29 [1] : vector<8x8xf32> to vector<8xf32>
    %94 = vector.shape_cast %93 : vector<8xf32> to vector<8x1xf32>
    %cst_30 = arith.constant dense<0.000000e+00> : vector<8x64xf32>
    %95 = tpu.matmul %92, %83, %cst_30 {dimension_numbers = #tpu.dot_dimension_numbers<[1], [0], [0], [1], [0, 0, 1, 1], [], []>} : vector<8x8xf32>, vector<8x64xf32>, vector<8x64xf32> -> vector<8x64xf32>
    %96 = vector.broadcast %94 : vector<8x1xf32> to vector<8x64xf32>
    %97 = arith.divf %95, %96 : vector<8x64xf32>
    %98 = vector.extract_strided_slice %4 {offsets = [0, 320], sizes = [8, 64], strides = [1, 1]} : vector<8x384xf32> to vector<8x64xf32>
    %99 = vector.extract_strided_slice %5 {offsets = [0, 320], sizes = [8, 64], strides = [1, 1]} : vector<8x384xf32> to vector<8x64xf32>
    %100 = vector.extract_strided_slice %6 {offsets = [0, 320], sizes = [8, 64], strides = [1, 1]} : vector<8x384xf32> to vector<8x64xf32>
    %cst_31 = arith.constant dense<0.000000e+00> : vector<8x8xf32>
    %101 = tpu.matmul %98, %99, %cst_31 {dimension_numbers = #tpu.dot_dimension_numbers<[1], [1], [0], [0], [0, 0, 1, 0], [], []>} : vector<8x64xf32>, vector<8x64xf32>, vector<8x8xf32> -> vector<8x8xf32>
    %cst_32 = arith.constant 0.0510310382 : f32
    %102 = vector.broadcast %cst_32 : f32 to vector<8x8xf32>
    %103 = arith.mulf %101, %102 : vector<8x8xf32>
    %104 = arith.addf %103, %12 : vector<8x8xf32>
    %cst_33 = arith.constant dense<0xFF800000> : vector<8xf32>
    %105 = vector.multi_reduction <maximumf>, %104, %cst_33 [1] : vector<8x8xf32> to vector<8xf32>
    %106 = vector.shape_cast %105 : vector<8xf32> to vector<8x1xf32>
    %107 = vector.broadcast %106 : vector<8x1xf32> to vector<8x8xf32>
    %108 = arith.subf %104, %107 : vector<8x8xf32>
    %109 = math.exp %108 : vector<8x8xf32>
    %cst_34 = arith.constant dense<0.000000e+00> : vector<8xf32>
    %110 = vector.multi_reduction <add>, %109, %cst_34 [1] : vector<8x8xf32> to vector<8xf32>
    %111 = vector.shape_cast %110 : vector<8xf32> to vector<8x1xf32>
    %cst_35 = arith.constant dense<0.000000e+00> : vector<8x64xf32>
    %112 = tpu.matmul %109, %100, %cst_35 {dimension_numbers = #tpu.dot_dimension_numbers<[1], [0], [0], [1], [0, 0, 1, 1], [], []>} : vector<8x8xf32>, vector<8x64xf32>, vector<8x64xf32> -> vector<8x64xf32>
    %113 = vector.broadcast %111 : vector<8x1xf32> to vector<8x64xf32>
    %114 = arith.divf %112, %113 : vector<8x64xf32>
    %115 = tpu.concatenate %29, %46, %63, %80, %97, %114 in 1 : vector<8x64xf32>, vector<8x64xf32>, vector<8x64xf32>, vector<8x64xf32>, vector<8x64xf32>, vector<8x64xf32> -> vector<8x384xf32>
    %c0_36 = arith.constant 0 : index
    %c0_37 = arith.constant 0 : index
    %116 = vector.load %arg3[%c0_36, %c0_37] : memref<384x384xf32, #tpu.memory_space<vmem>>, vector<384x384xf32>
    %cst_38 = arith.constant dense<0.000000e+00> : vector<8x384xf32>
    %117 = tpu.matmul %115, %116, %cst_38 {dimension_numbers = #tpu.dot_dimension_numbers<[1], [0], [0], [1], [0, 0, 1, 1], [], []>} : vector<8x384xf32>, vector<384x384xf32>, vector<8x384xf32> -> vector<8x384xf32>
    %c0_39 = arith.constant 0 : index
    %c0_40 = arith.constant 0 : index
    %118 = vector.load %arg4[%c0_39, %c0_40] : memref<1x384xf32, #tpu.memory_space<vmem>>, vector<1x384xf32>
    %119 = vector.broadcast %118 : vector<1x384xf32> to vector<8x384xf32>
    %120 = arith.addf %117, %119 : vector<8x384xf32>
    %c0_41 = arith.constant 0 : index
    %c0_42 = arith.constant 0 : index
    %c0_43 = arith.constant 0 : index
    %121 = vector.load %arg5[%c0_41, %c0_42, %c0_43] : memref<1x8x384xf32, #tpu.memory_space<vmem>>, vector<1x8x384xf32>
    %122 = vector.shape_cast %121 : vector<1x8x384xf32> to vector<8x384xf32>
    %123 = vector.shape_cast %120 : vector<8x384xf32> to vector<1x8x384xf32>
    tpu.vector_store %arg5[%c0_41, %c0_42, %c0_43], %123 {strides = array<i32>} : memref<1x8x384xf32, #tpu.memory_space<vmem>>, vector<1x8x384xf32>,
    return
  }
  func.func @transform_0(%arg0: i32) -> (i32, i32, i32) {
    %c0_i32 = arith.constant 0 : i32
    %c0_i32_0 = arith.constant 0 : i32
    %c0_i32_1 = arith.constant 0 : i32
    return %arg0, %c0_i32, %c0_i32_0 : i32, i32, i32
  }
  func.func @transform_1(%arg0: i32) -> (i32, i32) {
    %c0_i32 = arith.constant 0 : i32
    %c0_i32_0 = arith.constant 0 : i32
    %c0_i32_1 = arith.constant 0 : i32
    return %c0_i32, %c0_i32_0 : i32, i32
  }
  func.func @transform_2(%arg0: i32) -> (i32, i32) {
    %c0_i32 = arith.constant 0 : i32
    %c0_i32_0 = arith.constant 0 : i32
    %c0_i32_1 = arith.constant 0 : i32
    return %c0_i32, %c0_i32_0 : i32, i32
  }
  func.func @transform_3(%arg0: i32) -> (i32, i32) {
    %c0_i32 = arith.constant 0 : i32
    %c0_i32_0 = arith.constant 0 : i32
    %c0_i32_1 = arith.constant 0 : i32
    return %c0_i32, %c0_i32_0 : i32, i32
  }
  func.func @transform_4(%arg0: i32) -> (i32, i32, i32) {
    %c0_i32 = arith.constant 0 : i32
    %c0_i32_0 = arith.constant 0 : i32
    %c0_i32_1 = arith.constant 0 : i32
    return %arg0, %c0_i32, %c0_i32_0 : i32, i32, i32
  }
}

</mosaic_0001>

<llo_original>
// kernel: tpu_custom_call.1
$region0: #{tpu_custom_call.1}
  #allocation0 [shape = 'u32[]', space=smem, size = 0x4, offset = 0x4, fixed_abs, tag = 'smem constant byte address 0x4 - core index']
  #allocation1 [shape = 'u32[144,128]{1,0:T(1,128)}', space=vmem, size = 0x12000, scoped, tag = 'internal scratch']
  %s0 = inlined_call_operand.hbm [shape: f32[2,8,384], index: 0, kind: input, shape index: {}]
  %s1 = inlined_call_operand.hbm [shape: f32[384,1152], index: 1, kind: input, shape index: {}]
  %s2 = inlined_call_operand.hbm [shape: f32[384,384], index: 2, kind: input, shape index: {}]
  %s3 = inlined_call_operand.hbm [shape: f32[1,384], index: 3, kind: input, shape index: {}]
  %s4 = inlined_call_operand.hbm [shape: f32[2,8,384], index: 4, kind: output, shape index: {}]
  %s5 = sld [smem:[#allocation0]]
  $region65: #{tpu_custom_call.1} parent=0
    _
  %s7 = ssub.s32 1, %s5
  %s8 = scalar_select 0, %s7, %s5
  $region1: #{tpu_custom_call.1} parent=0
    #allocation2 [shape = 'u8[24576]{0}', space=vmem, size = 0x6000, scoped, tag = 'input window, operand 0']
    #allocation3 [shape = 's32[2]{0}', space=sflag, size = 0x8, scoped, tag = 'scoped memory for tpu_custom_call.1']
    #allocation4 [shape = 's32[2]{0}', space=sflag, size = 0x8, scoped, tag = 'scoped memory for tpu_custom_call.1']
    #allocation5 [shape = 'u8[1769472]{0}', space=vmem, size = 0x1b0000, scoped, tag = 'input window, operand 1, single buffered']
    #allocation6 [shape = 's32[1]{0}', space=sflag, size = 0x4, scoped, tag = 'scoped memory for tpu_custom_call.1']
    #allocation7 [shape = 'u8[589824]{0}', space=vmem, size = 0x90000, scoped, tag = 'input window, operand 2, single buffered']
    #allocation8 [shape = 'u8[1536]{0}', space=vmem, size = 0x800, scoped, tag = 'input window, operand 3, single buffered']
    #allocation9 [shape = 's32[1]{0}', space=sflag, size = 0x4, scoped, tag = 'scoped memory for tpu_custom_call.1']
    #allocation10 [shape = 'u8[24576]{0}', space=vmem, size = 0x6000, scoped, tag = 'output window, operand 0']
    %9 = vsyncpa [#allocation3], 0
    %s10 = scalar_lea.sflag [#allocation3], 1
    %11 = vsyncpa %s10, 0
    %12 = vsyncpa [#allocation6], 0
    %13 = vsyncpa [#allocation9], 0
    %14 = vsyncpa [#allocation4], 0
    %s15 = scalar_lea.sflag [#allocation4], 1
    %16 = vsyncpa %s15, 0
    loop: start=0, step=1, limit=4
    $region2: #{tpu_custom_call.1} parent=1 // loop_pre_header
      _
    $region3: #{tpu_custom_call.1} parent=1 // loop_header
      %s18 = sphi 0, %s22
      %p19 = scmp.ge.s32.totalorder %s18, 4
      %s28 = sphi 0, %s30
      %s31 = sphi 0, %s28
      %s32 = sphi 0, %s31
      %s48 = sphi 0, %s32
      %s52 = sphi 0, %s52
      %s54 = sphi 0, %s52
      %s55 = sphi 0, %s54
      %s69 = sphi 0, %s55
      %s73 = sphi 0, %s73
      %s75 = sphi 0, %s73
      %s76 = sphi 0, %s75
      %s90 = sphi 0, %s76
      %s94 = sphi 0, %s94
      %s96 = sphi 0, %s94
      %s97 = sphi 0, %s96
      %s111 = sphi 0, %s97
      %s117 = sphi 0, %s119
      %s120 = sphi 0, %s117
      %s121 = sphi 0, %s120
      %s137 = sphi 0, %s121
    $region4: #{tpu_custom_call.1} parent=1 // loop_header_branch
      %21 = sbr.rel (%p19) target = $region8
    $region5: #{tpu_custom_call.1} parent=1 // loop_body
      %s23 = ssub.s32 %s18, 1
      %s24 = ssub.s32 %s18, 2
      %s25 = sadd.s32 %s18, 1
      %s26 = ssub.s32 %s18, %s25
      %p27 = scmp.eq.s32.totalorder %s26, 0
      %s29 = sadd.s32 %s28, 1
      %s30 = scalar_select %p27, %s28, %s29
      %p33 = pneg %p27
      %p34 = scmp.eq.s32.totalorder %s18, 1
      %p35 = por %p33, %p34
      %p36 = scmp.ne.s32.totalorder %s28, %s31
      %p37 = scmp.eq.s32.totalorder %s18, 0
      %p38 = por %p36, %p37
      %p39 = scmp.ne.s32.totalorder %s28, %s31
      %p40 = scmp.eq.s32.totalorder %s23, 1
      %p41 = por %p39, %p40
      %p42 = scmp.ne.s32.totalorder %s31, %s32
      %p43 = scmp.eq.s32.totalorder %s23, 0
      %p44 = por %p42, %p43
      %p45 = scmp.ne.s32.totalorder %s31, %s32
      %p46 = scmp.eq.s32.totalorder %s24, 1
      %p47 = por %p45, %p46
      %p49 = scmp.ne.s32.totalorder %s32, %s48
      %p50 = scmp.eq.s32.totalorder %s24, 0
      %p51 = por %p49, %p50
      %s53 = sadd.s32 %s52, 1
      %p56 = scmp.eq.s32.totalorder %s18, 1
      %p57 = scmp.ne.s32.totalorder %s52, %s54
      %p58 = scmp.eq.s32.totalorder %s18, 0
      %p59 = por %p57, %p58
      %p60 = scmp.ne.s32.totalorder %s52, %s54
      %p61 = scmp.eq.s32.totalorder %s23, 1
      %p62 = por %p60, %p61
      %p63 = scmp.ne.s32.totalorder %s54, %s55
      %p64 = scmp.eq.s32.totalorder %s23, 0
      %p65 = por %p63, %p64
      %p66 = scmp.ne.s32.totalorder %s54, %s55
      %p67 = scmp.eq.s32.totalorder %s24, 1
      %p68 = por %p66, %p67
      %p70 = scmp.ne.s32.totalorder %s55, %s69
      %p71 = scmp.eq.s32.totalorder %s24, 0
      %p72 = por %p70, %p71
      %s74 = sadd.s32 %s73, 1
      %p77 = scmp.eq.s32.totalorder %s18, 1
      %p78 = scmp.ne.s32.totalorder %s73, %s75
      %p79 = scmp.eq.s32.totalorder %s18, 0
      %p80 = por %p78, %p79
      %p81 = scmp.ne.s32.totalorder %s73, %s75
      %p82 = scmp.eq.s32.totalorder %s23, 1
      %p83 = por %p81, %p82
      %p84 = scmp.ne.s32.totalorder %s75, %s76
      %p85 = scmp.eq.s32.totalorder %s23, 0
      %p86 = por %p84, %p85
      %p87 = scmp.ne.s32.totalorder %s75, %s76
      %p88 = scmp.eq.s32.totalorder %s24, 1
      %p89 = por %p87, %p88
      %p91 = scmp.ne.s32.totalorder %s76, %s90
      %p92 = scmp.eq.s32.totalorder %s24, 0
      %p93 = por %p91, %p92
      %s95 = sadd.s32 %s94, 1
      %p98 = scmp.eq.s32.totalorder %s18, 1
      %p99 = scmp.ne.s32.totalorder %s94, %s96
      %p100 = scmp.eq.s32.totalorder %s18, 0
      %p101 = por %p99, %p100
      %p102 = scmp.ne.s32.totalorder %s94, %s96
      %p103 = scmp.eq.s32.totalorder %s23, 1
      %p104 = por %p102, %p103
      %p105 = scmp.ne.s32.totalorder %s96, %s97
      %p106 = scmp.eq.s32.totalorder %s23, 0
      %p107 = por %p105, %p106
      %p108 = scmp.ne.s32.totalorder %s96, %s97
      %p109 = scmp.eq.s32.totalorder %s24, 1
      %p110 = por %p108, %p109
      %p112 = scmp.ne.s32.totalorder %s97, %s111
      %p113 = scmp.eq.s32.totalorder %s24, 0
      %p114 = por %p112, %p113
      %s115 = ssub.s32 %s18, %s25
      %p116 = scmp.eq.s32.totalorder %s115, 0
      %s118 = sadd.s32 %s117, 1
      %s119 = scalar_select %p116, %s117, %s118
      %p122 = pneg %p116
      %p123 = scmp.eq.s32.totalorder %s18, 1
      %p124 = por %p122, %p123
      %p125 = scmp.ne.s32.totalorder %s117, %s120
      %p126 = scmp.eq.s32.totalorder %s18, 0
      %p127 = por %p125, %p126
      %p128 = scmp.ne.s32.totalorder %s117, %s120
      %p129 = scmp.eq.s32.totalorder %s23, 1
      %p130 = por %p128, %p129
      %p131 = scmp.ne.s32.totalorder %s120, %s121
      %p132 = scmp.eq.s32.totalorder %s23, 0
      %p133 = por %p131, %p132
      %p134 = scmp.ne.s32.totalorder %s120, %s121
      %p135 = scmp.eq.s32.totalorder %s24, 1
      %p136 = por %p134, %p135
      %p138 = scmp.ne.s32.totalorder %s121, %s137
      %p139 = scmp.eq.s32.totalorder %s24, 0
      %p140 = por %p138, %p139
      %p141 = scmp.le.s32.totalorder 1, %s18
      %p142 = scmp.lt.s32.totalorder %s18, 3
      %p143 = pnand %p141, %p142
      %p144 = pneg %p143
      // Predicated region
      $region9: #{tpu_custom_call.1} parent=5 // pred_check
        _
      $region10: #{tpu_custom_call.1} parent=5 // pred_check_branch
        %146 = sbr.rel (%p143) target = $region12
      $region11: #{tpu_custom_call.1} parent=5 // pred_region
        %s147 = ssub.s32 %s18, 1
        // Predicated region
        $region13: #{tpu_custom_call.1} parent=11 // pred_check
          %p148 = pneg %p65
        $region14: #{tpu_custom_call.1} parent=11 // pred_check_branch
          %150 = sbr.rel (%p148) target = $region16
        $region15: #{tpu_custom_call.1} parent=11 // pred_region
          %s152 = ssub.s32 55296, 55296
          %153 = vsyncadd [#allocation6], %s152
          %s154 = sshll.u32 [#allocation5], 4
          %s155 = int_to_ptr.vmem [resolvable:$true] %s154
          %160 = dma.hbm_to_vmem [thread:$0]  %s1, 55296, %s155, [#allocation6], 1152, 1152, 72
        $region16: #{tpu_custom_call.1} parent=11 // pred_fallthru
          _
        // Predicated region
        $region17: #{tpu_custom_call.1} parent=11 // pred_check
          %p161 = pneg %p86
        $region18: #{tpu_custom_call.1} parent=11 // pred_check_branch
          %163 = sbr.rel (%p161) target = $region20
        $region19: #{tpu_custom_call.1} parent=11 // pred_region
          %s165 = ssub.s32 18432, 18432
          %166 = vsyncadd [#allocation6], %s165
          %s167 = sshll.u32 [#allocation7], 4
          %s168 = int_to_ptr.vmem [resolvable:$true] %s167
          %173 = dma.hbm_to_vmem [thread:$0]  %s2, 18432, %s168, [#allocation6], 384, 384, 24
        $region20: #{tpu_custom_call.1} parent=11 // pred_fallthru
          _
        // Predicated region
        $region21: #{tpu_custom_call.1} parent=11 // pred_check
          %p174 = pneg %p107
        $region22: #{tpu_custom_call.1} parent=11 // pred_check_branch
          %176 = sbr.rel (%p174) target = $region24
        $region23: #{tpu_custom_call.1} parent=11 // pred_region
          %s178 = ssub.s32 48, 48
          %179 = vsyncadd [#allocation9], %s178
          %s181 = sshll.u32 [#allocation8], 4
          %s182 = int_to_ptr.vmem [resolvable:$true] %s181
          %184 = dma.hbm_to_vmem [thread:$0]  %s3, 48, %s182, [#allocation9]
        $region24: #{tpu_custom_call.1} parent=11 // pred_fallthru
          _
      $region12: #{tpu_custom_call.1} parent=5 // pred_fallthru
        _
      %p185 = scmp.lt.s32.totalorder %s18, 2
      // Predicated region
      $region25: #{tpu_custom_call.1} parent=5 // pred_check
        %p186 = pneg %p185
      $region26: #{tpu_custom_call.1} parent=5 // pred_check_branch
        %188 = sbr.rel (%p186) target = $region28
      $region27: #{tpu_custom_call.1} parent=5 // pred_region
        // Predicated region
        $region29: #{tpu_custom_call.1} parent=27 // pred_check
          %p189 = pneg %p38
        $region30: #{tpu_custom_call.1} parent=27 // pred_check_branch
          %191 = sbr.rel (%p189) target = $region32
        $region31: #{tpu_custom_call.1} parent=27 // pred_region
          %s192 = sand.u32 %s28, 1
          %s193 = scalar_lea.sflag [#allocation3], %s192
          %s194 = sand.u32 %s28, 1
          %s195 = smul.addr %s194, 24
          %s196 = scalar_lea.vmem [#allocation2], %s195
          %s198 = ssub.s32 384, 384
          %199 = vsyncadd %s193, %s198
          %s200 = smul.addr %s18, 3
          %s201 = smul.addr %s200, 128
          %s202 = scalar_lea.hbm %s0, %s201
          %s204 = sshll.u32 %s196, 4
          %s205 = int_to_ptr.vmem [resolvable:$true] %s204
          %207 = dma.hbm_to_vmem [thread:$0]  %s202, 384, %s205, %s193
        $region32: #{tpu_custom_call.1} parent=27 // pred_fallthru
          _
      $region28: #{tpu_custom_call.1} parent=5 // pred_fallthru
        _
      %p208 = scmp.le.s32.totalorder 1, %s18
      %p209 = scmp.lt.s32.totalorder %s18, 3
      %p210 = pnand %p208, %p209
      %p211 = pneg %p210
      // Predicated region
      $region33: #{tpu_custom_call.1} parent=5 // pred_check
        _
      $region34: #{tpu_custom_call.1} parent=5 // pred_check_branch
        %213 = sbr.rel (%p210) target = $region36
      $region35: #{tpu_custom_call.1} parent=5 // pred_region
        %s214 = ssub.s32 %s18, 1
        %s215 = sand.u32 %s31, 1
        %s216 = scalar_lea.sflag [#allocation3], %s215
        %s217 = sand.u32 %s31, 1
        %s218 = smul.addr %s217, 24
        %s219 = scalar_lea.vmem [#allocation2], %s218
        // Predicated region
        $region37: #{tpu_custom_call.1} parent=35 // pred_check
          %p220 = pneg %p44
        $region38: #{tpu_custom_call.1} parent=35 // pred_check_branch
          %222 = sbr.rel (%p220) target = $region40
        $region39: #{tpu_custom_call.1} parent=35 // pred_region
          %223 = dma.done %s216, 384
        $region40: #{tpu_custom_call.1} parent=35 // pred_fallthru
          _
        // Predicated region
        $region41: #{tpu_custom_call.1} parent=35 // pred_check
          %p224 = pneg %p65
        $region42: #{tpu_custom_call.1} parent=35 // pred_check_branch
          %226 = sbr.rel (%p224) target = $region44
        $region43: #{tpu_custom_call.1} parent=35 // pred_region
          %227 = dma.done [#allocation6], 55296
        $region44: #{tpu_custom_call.1} parent=35 // pred_fallthru
          _
        // Predicated region
        $region45: #{tpu_custom_call.1} parent=35 // pred_check
          %p228 = pneg %p86
        $region46: #{tpu_custom_call.1} parent=35 // pred_check_branch
          %230 = sbr.rel (%p228) target = $region48
        $region47: #{tpu_custom_call.1} parent=35 // pred_region
          %231 = dma.done [#allocation6], 18432
        $region48: #{tpu_custom_call.1} parent=35 // pred_fallthru
          _
        // Predicated region
        $region49: #{tpu_custom_call.1} parent=35 // pred_check
          %p232 = pneg %p107
        $region50: #{tpu_custom_call.1} parent=35 // pred_check_branch
          %234 = sbr.rel (%p232) target = $region52
        $region51: #{tpu_custom_call.1} parent=35 // pred_region
          %235 = dma.done [#allocation9], 48
        $region52: #{tpu_custom_call.1} parent=35 // pred_fallthru
          _
        %s236 = sand.u32 %s31, 1
        %s237 = scalar_lea.sflag [#allocation3], %s236
        %s238 = sand.u32 %s31, 1
        %s239 = smul.addr %s238, 24
        %s240 = scalar_lea.vmem [#allocation2], %s239
        %p241 = pneg %p44
        %p242 = pneg %p41
        %p243 = pneg %p65
        %p244 = pneg %p62
        %p245 = pneg %p86
        %p246 = pneg %p83
        %p247 = pneg %p107
        %p248 = pneg %p104
        %p249 = pneg %p133
        %p250 = pneg %p130
        %s251 = sand.u32 %s120, 1
        %s252 = scalar_lea.sflag [#allocation4], %s251
        %s253 = sand.u32 %s120, 1
        %s254 = smul.addr %s253, 24
        %s255 = scalar_lea.vmem [#allocation10], %s254
        %v256 = vld [vmem:[%s219] sm:$0xff]
        %v257 = vld [vmem:[%s219 + $0x8] sm:$0xff]
        %v258 = vld [vmem:[%s219 + $0x10] sm:$0xff]
        %v259 = vld [vmem:[#allocation5] sm:$0xff]
        %v260 = vld [vmem:[#allocation5 + $0x8] sm:$0xff]
        %v261 = vld [vmem:[#allocation5 + $0x10] sm:$0xff]
        %v262 = vld [vmem:[#allocation5 + $0x18] sm:$0xff]
        %v263 = vld [vmem:[#allocation5 + $0x20] sm:$0xff]
        %v264 = vld [vmem:[#allocation5 + $0x28] sm:$0xff]
        %v265 = vld [vmem:[#allocation5 + $0x30] sm:$0xff]
        %v266 = vld [vmem:[#allocation5 + $0x38] sm:$0xff]
        %v267 = vld [vmem:[#allocation5 + $0x40] sm:$0xff]
        %v268 = vld [vmem:[#allocation5 + $0x48] sm:$0xff]
        %v269 = vld [vmem:[#allocation5 + $0x50] sm:$0xff]
        %v270 = vld [vmem:[#allocation5 + $0x58] sm:$0xff]
        %v271 = vld [vmem:[#allocation5 + $0x60] sm:$0xff]
        %v272 = vld [vmem:[#allocation5 + $0x68] sm:$0xff]
        %v273 = vld [vmem:[#allocation5 + $0x70] sm:$0xff]
        %v274 = vld [vmem:[#allocation5 + $0x78] sm:$0xff]
        %v275 = vld [vmem:[#allocation5 + $0x80] sm:$0xff]
        %v276 = vld [vmem:[#allocation5 + $0x88] sm:$0xff]
        %v277 = vld [vmem:[#allocation5 + $0x90] sm:$0xff]
        %v278 = vld [vmem:[#allocation5 + $0x98] sm:$0xff]
        %v279 = vld [vmem:[#allocation5 + $0xa0] sm:$0xff]
        %v280 = vld [vmem:[#allocation5 + $0xa8] sm:$0xff]
        %v281 = vld [vmem:[#allocation5 + $0xb0] sm:$0xff]
        %v282 = vld [vmem:[#allocation5 + $0xb8] sm:$0xff]
        %v283 = vld [vmem:[#allocation5 + $0xc0] sm:$0xff]
        %v284 = vld [vmem:[#allocation5 + $0xc8] sm:$0xff]
        %v285 = vld [vmem:[#allocation5 + $0xd0] sm:$0xff]
        %v286 = vld [vmem:[#allocation5 + $0xd8] sm:$0xff]
        %v287 = vld [vmem:[#allocation5 + $0xe0] sm:$0xff]
        %v288 = vld [vmem:[#allocation5 + $0xe8] sm:$0xff]
        %v289 = vld [vmem:[#allocation5 + $0xf0] sm:$0xff]
        %v290 = vld [vmem:[#allocation5 + $0xf8] sm:$0xff]
        %v291 = vld [vmem:[#allocation5 + $0x100] sm:$0xff]
        %v292 = vld [vmem:[#allocation5 + $0x108] sm:$0xff]
        %v293 = vld [vmem:[#allocation5 + $0x110] sm:$0xff]
        %v294 = vld [vmem:[#allocation5 + $0x118] sm:$0xff]
        %v295 = vld [vmem:[#allocation5 + $0x120] sm:$0xff]
        %v296 = vld [vmem:[#allocation5 + $0x128] sm:$0xff]
        %v297 = vld [vmem:[#allocation5 + $0x130] sm:$0xff]
        %v298 = vld [vmem:[#allocation5 + $0x138] sm:$0xff]
        %v299 = vld [vmem:[#allocation5 + $0x140] sm:$0xff]
        %v300 = vld [vmem:[#allocation5 + $0x148] sm:$0xff]
        %v301 = vld [vmem:[#allocation5 + $0x150] sm:$0xff]
        %v302 = vld [vmem:[#allocation5 + $0x158] sm:$0xff]
        %v303 = vld [vmem:[#allocation5 + $0x160] sm:$0xff]
        %v304 = vld [vmem:[#allocation5 + $0x168] sm:$0xff]
        %v305 = vld [vmem:[#allocation5 + $0x170] sm:$0xff]
        %v306 = vld [vmem:[#allocation5 + $0x178] sm:$0xff]
        %v307 = vld [vmem:[#allocation5 + $0x180] sm:$0xff]
        %v308 = vld [vmem:[#allocation5 + $0x188] sm:$0xff]
        %v309 = vld [vmem:[#allocation5 + $0x190] sm:$0xff]
        %v310 = vld [vmem:[#allocation5 + $0x198] sm:$0xff]
        %v311 = vld [vmem:[#allocation5 + $0x1a0] sm:$0xff]
        %v312 = vld [vmem:[#allocation5 + $0x1a8] sm:$0xff]
        %v313 = vld [vmem:[#allocation5 + $0x1b0] sm:$0xff]
        %v314 = vld [vmem:[#allocation5 + $0x1b8] sm:$0xff]
        %v315 = vld [vmem:[#allocation5 + $0x1c0] sm:$0xff]
        %v316 = vld [vmem:[#allocation5 + $0x1c8] sm:$0xff]
        %v317 = vld [vmem:[#allocation5 + $0x1d0] sm:$0xff]
        %v318 = vld [vmem:[#allocation5 + $0x1d8] sm:$0xff]
        %v319 = vld [vmem:[#allocation5 + $0x1e0] sm:$0xff]
        %v320 = vld [vmem:[#allocation5 + $0x1e8] sm:$0xff]
        %v321 = vld [vmem:[#allocation5 + $0x1f0] sm:$0xff]
        %v322 = vld [vmem:[#allocation5 + $0x1f8] sm:$0xff]
        %v323 = vld [vmem:[#allocation5 + $0x200] sm:$0xff]
        %v324 = vld [vmem:[#allocation5 + $0x208] sm:$0xff]
        %v325 = vld [vmem:[#allocation5 + $0x210] sm:$0xff]
        %v326 = vld [vmem:[#allocation5 + $0x218] sm:$0xff]
        %v327 = vld [vmem:[#allocation5 + $0x220] sm:$0xff]
        %v328 = vld [vmem:[#allocation5 + $0x228] sm:$0xff]
        %v329 = vld [vmem:[#allocation5 + $0x230] sm:$0xff]
        %v330 = vld [vmem:[#allocation5 + $0x238] sm:$0xff]
        %v331 = vld [vmem:[#allocation5 + $0x240] sm:$0xff]
        %v332 = vld [vmem:[#allocation5 + $0x248] sm:$0xff]
        %v333 = vld [vmem:[#allocation5 + $0x250] sm:$0xff]
        %v334 = vld [vmem:[#allocation5 + $0x258] sm:$0xff]
        %v335 = vld [vmem:[#allocation5 + $0x260] sm:$0xff]
        %v336 = vld [vmem:[#allocation5 + $0x268] sm:$0xff]
        %v337 = vld [vmem:[#allocation5 + $0x270] sm:$0xff]
        %v338 = vld [vmem:[#allocation5 + $0x278] sm:$0xff]
        %v339 = vld [vmem:[#allocation5 + $0x280] sm:$0xff]
        %v340 = vld [vmem:[#allocation5 + $0x288] sm:$0xff]
        %v341 = vld [vmem:[#allocation5 + $0x290] sm:$0xff]
        %v342 = vld [vmem:[#allocation5 + $0x298] sm:$0xff]
        %v343 = vld [vmem:[#allocation5 + $0x2a0] sm:$0xff]
        %v344 = vld [vmem:[#allocation5 + $0x2a8] sm:$0xff]
        %v345 = vld [vmem:[#allocation5 + $0x2b0] sm:$0xff]
        %v346 = vld [vmem:[#allocation5 + $0x2b8] sm:$0xff]
        %v347 = vld [vmem:[#allocation5 + $0x2c0] sm:$0xff]
        %v348 = vld [vmem:[#allocation5 + $0x2c8] sm:$0xff]
        %v349 = vld [vmem:[#allocation5 + $0x2d0] sm:$0xff]
        %v350 = vld [vmem:[#allocation5 + $0x2d8] sm:$0xff]
        %v351 = vld [vmem:[#allocation5 + $0x2e0] sm:$0xff]
        %v352 = vld [vmem:[#allocation5 + $0x2e8] sm:$0xff]
        %v353 = vld [vmem:[#allocation5 + $0x2f0] sm:$0xff]
        %v354 = vld [vmem:[#allocation5 + $0x2f8] sm:$0xff]
        %v355 = vld [vmem:[#allocation5 + $0x300] sm:$0xff]
        %v356 = vld [vmem:[#allocation5 + $0x308] sm:$0xff]
        %v357 = vld [vmem:[#allocation5 + $0x310] sm:$0xff]
        %v358 = vld [vmem:[#allocation5 + $0x318] sm:$0xff]
        %v359 = vld [vmem:[#allocation5 + $0x320] sm:$0xff]
        %v360 = vld [vmem:[#allocation5 + $0x328] sm:$0xff]
        %v361 = vld [vmem:[#allocation5 + $0x330] sm:$0xff]
        %v362 = vld [vmem:[#allocation5 + $0x338] sm:$0xff]
        %v363 = vld [vmem:[#allocation5 + $0x340] sm:$0xff]
        %v364 = vld [vmem:[#allocation5 + $0x348] sm:$0xff]
        %v365 = vld [vmem:[#allocation5 + $0x350] sm:$0xff]
        %v366 = vld [vmem:[#allocation5 + $0x358] sm:$0xff]
        %v367 = vld [vmem:[#allocation5 + $0x360] sm:$0xff]
        %v368 = vld [vmem:[#allocation5 + $0x368] sm:$0xff]
        %v369 = vld [vmem:[#allocation5 + $0x370] sm:$0xff]
        %v370 = vld [vmem:[#allocation5 + $0x378] sm:$0xff]
        %v371 = vld [vmem:[#allocation5 + $0x380] sm:$0xff]
        %v372 = vld [vmem:[#allocation5 + $0x388] sm:$0xff]
        %v373 = vld [vmem:[#allocation5 + $0x390] sm:$0xff]
        %v374 = vld [vmem:[#allocation5 + $0x398] sm:$0xff]
        %v375 = vld [vmem:[#allocation5 + $0x3a0] sm:$0xff]
        %v376 = vld [vmem:[#allocation5 + $0x3a8] sm:$0xff]
        %v377 = vld [vmem:[#allocation5 + $0x3b0] sm:$0xff]
        %v378 = vld [vmem:[#allocation5 + $0x3b8] sm:$0xff]
        %v379 = vld [vmem:[#allocation5 + $0x3c0] sm:$0xff]
        %v380 = vld [vmem:[#allocation5 + $0x3c8] sm:$0xff]
        %v381 = vld [vmem:[#allocation5 + $0x3d0] sm:$0xff]
        %v382 = vld [vmem:[#allocation5 + $0x3d8] sm:$0xff]
        %v383 = vld [vmem:[#allocation5 + $0x3e0] sm:$0xff]
        %v384 = vld [vmem:[#allocation5 + $0x3e8] sm:$0xff]
        %v385 = vld [vmem:[#allocation5 + $0x3f0] sm:$0xff]
        %v386 = vld [vmem:[#allocation5 + $0x3f8] sm:$0xff]
        %v387 = vld [vmem:[#allocation5 + $0x400] sm:$0xff]
        %v388 = vld [vmem:[#allocation5 + $0x408] sm:$0xff]
        %v389 = vld [vmem:[#allocation5 + $0x410] sm:$0xff]
        %v390 = vld [vmem:[#allocation5 + $0x418] sm:$0xff]
        %v391 = vld [vmem:[#allocation5 + $0x420] sm:$0xff]
        %v392 = vld [vmem:[#allocation5 + $0x428] sm:$0xff]
        %v393 = vld [vmem:[#allocation5 + $0x430] sm:$0xff]
        %v394 = vld [vmem:[#allocation5 + $0x438] sm:$0xff]
        %v395 = vld [vmem:[#allocation5 + $0x440] sm:$0xff]
        %v396 = vld [vmem:[#allocation5 + $0x448] sm:$0xff]
        %v397 = vld [vmem:[#allocation5 + $0x450] sm:$0xff]
        %v398 = vld [vmem:[#allocation5 + $0x458] sm:$0xff]
        %v399 = vld [vmem:[#allocation5 + $0x460] sm:$0xff]
        %v400 = vld [vmem:[#allocation5 + $0x468] sm:$0xff]
        %v401 = vld [vmem:[#allocation5 + $0x470] sm:$0xff]
        %v402 = vld [vmem:[#allocation5 + $0x478] sm:$0xff]
        %v403 = vld [vmem:[#allocation5 + $0x480] sm:$0xff]
        %v404 = vld [vmem:[#allocation5 + $0x488] sm:$0xff]
        %v405 = vld [vmem:[#allocation5 + $0x490] sm:$0xff]
        %v406 = vld [vmem:[#allocation5 + $0x498] sm:$0xff]
        %v407 = vld [vmem:[#allocation5 + $0x4a0] sm:$0xff]
        %v408 = vld [vmem:[#allocation5 + $0x4a8] sm:$0xff]
        %v409 = vld [vmem:[#allocation5 + $0x4b0] sm:$0xff]
        %v410 = vld [vmem:[#allocation5 + $0x4b8] sm:$0xff]
        %v411 = vld [vmem:[#allocation5 + $0x4c0] sm:$0xff]
        %v412 = vld [vmem:[#allocation5 + $0x4c8] sm:$0xff]
        %v413 = vld [vmem:[#allocation5 + $0x4d0] sm:$0xff]
        %v414 = vld [vmem:[#allocation5 + $0x4d8] sm:$0xff]
        %v415 = vld [vmem:[#allocation5 + $0x4e0] sm:$0xff]
        %v416 = vld [vmem:[#allocation5 + $0x4e8] sm:$0xff]
        %v417 = vld [vmem:[#allocation5 + $0x4f0] sm:$0xff]
        %v418 = vld [vmem:[#allocation5 + $0x4f8] sm:$0xff]
        %v419 = vld [vmem:[#allocation5 + $0x500] sm:$0xff]
        %v420 = vld [vmem:[#allocation5 + $0x508] sm:$0xff]
        %v421 = vld [vmem:[#allocation5 + $0x510] sm:$0xff]
        %v422 = vld [vmem:[#allocation5 + $0x518] sm:$0xff]
        %v423 = vld [vmem:[#allocation5 + $0x520] sm:$0xff]
        %v424 = vld [vmem:[#allocation5 + $0x528] sm:$0xff]
        %v425 = vld [vmem:[#allocation5 + $0x530] sm:$0xff]
        %v426 = vld [vmem:[#allocation5 + $0x538] sm:$0xff]
        %v427 = vld [vmem:[#allocation5 + $0x540] sm:$0xff]
        %v428 = vld [vmem:[#allocation5 + $0x548] sm:$0xff]
        %v429 = vld [vmem:[#allocation5 + $0x550] sm:$0xff]
        %v430 = vld [vmem:[#allocation5 + $0x558] sm:$0xff]
        %v431 = vld [vmem:[#allocation5 + $0x560] sm:$0xff]
        %v432 = vld [vmem:[#allocation5 + $0x568] sm:$0xff]
        %v433 = vld [vmem:[#allocation5 + $0x570] sm:$0xff]
        %v434 = vld [vmem:[#allocation5 + $0x578] sm:$0xff]
        %v435 = vld [vmem:[#allocation5 + $0x580] sm:$0xff]
        %v436 = vld [vmem:[#allocation5 + $0x588] sm:$0xff]
        %v437 = vld [vmem:[#allocation5 + $0x590] sm:$0xff]
        %v438 = vld [vmem:[#allocation5 + $0x598] sm:$0xff]
        %v439 = vld [vmem:[#allocation5 + $0x5a0] sm:$0xff]
        %v440 = vld [vmem:[#allocation5 + $0x5a8] sm:$0xff]
        %v441 = vld [vmem:[#allocation5 + $0x5b0] sm:$0xff]
        %v442 = vld [vmem:[#allocation5 + $0x5b8] sm:$0xff]
        %v443 = vld [vmem:[#allocation5 + $0x5c0] sm:$0xff]
        %v444 = vld [vmem:[#allocation5 + $0x5c8] sm:$0xff]
        %v445 = vld [vmem:[#allocation5 + $0x5d0] sm:$0xff]
        %v446 = vld [vmem:[#allocation5 + $0x5d8] sm:$0xff]
        %v447 = vld [vmem:[#allocation5 + $0x5e0] sm:$0xff]
        %v448 = vld [vmem:[#allocation5 + $0x5e8] sm:$0xff]
        %v449 = vld [vmem:[#allocation5 + $0x5f0] sm:$0xff]
        %v450 = vld [vmem:[#allocation5 + $0x5f8] sm:$0xff]
        %v451 = vld [vmem:[#allocation5 + $0x600] sm:$0xff]
        %v452 = vld [vmem:[#allocation5 + $0x608] sm:$0xff]
        %v453 = vld [vmem:[#allocation5 + $0x610] sm:$0xff]
        %v454 = vld [vmem:[#allocation5 + $0x618] sm:$0xff]
        %v455 = vld [vmem:[#allocation5 + $0x620] sm:$0xff]
        %v456 = vld [vmem:[#allocation5 + $0x628] sm:$0xff]
        %v457 = vld [vmem:[#allocation5 + $0x630] sm:$0xff]
        %v458 = vld [vmem:[#allocation5 + $0x638] sm:$0xff]
        %v459 = vld [vmem:[#allocation5 + $0x640] sm:$0xff]
        %v460 = vld [vmem:[#allocation5 + $0x648] sm:$0xff]
        %v461 = vld [vmem:[#allocation5 + $0x650] sm:$0xff]
        %v462 = vld [vmem:[#allocation5 + $0x658] sm:$0xff]
        %v463 = vld [vmem:[#allocation5 + $0x660] sm:$0xff]
        %v464 = vld [vmem:[#allocation5 + $0x668] sm:$0xff]
        %v465 = vld [vmem:[#allocation5 + $0x670] sm:$0xff]
        %v466 = vld [vmem:[#allocation5 + $0x678] sm:$0xff]
        %v467 = vld [vmem:[#allocation5 + $0x680] sm:$0xff]
        %v468 = vld [vmem:[#allocation5 + $0x688] sm:$0xff]
        %v469 = vld [vmem:[#allocation5 + $0x690] sm:$0xff]
        %v470 = vld [vmem:[#allocation5 + $0x698] sm:$0xff]
        %v471 = vld [vmem:[#allocation5 + $0x6a0] sm:$0xff]
        %v472 = vld [vmem:[#allocation5 + $0x6a8] sm:$0xff]
        %v473 = vld [vmem:[#allocation5 + $0x6b0] sm:$0xff]
        %v474 = vld [vmem:[#allocation5 + $0x6b8] sm:$0xff]
        %v475 = vld [vmem:[#allocation5 + $0x6c0] sm:$0xff]
        %v476 = vld [vmem:[#allocation5 + $0x6c8] sm:$0xff]
        %v477 = vld [vmem:[#allocation5 + $0x6d0] sm:$0xff]
        %v478 = vld [vmem:[#allocation5 + $0x6d8] sm:$0xff]
        %v479 = vld [vmem:[#allocation5 + $0x6e0] sm:$0xff]
        %v480 = vld [vmem:[#allocation5 + $0x6e8] sm:$0xff]
        %v481 = vld [vmem:[#allocation5 + $0x6f0] sm:$0xff]
        %v482 = vld [vmem:[#allocation5 + $0x6f8] sm:$0xff]
        %v483 = vld [vmem:[#allocation5 + $0x700] sm:$0xff]
        %v484 = vld [vmem:[#allocation5 + $0x708] sm:$0xff]
        %v485 = vld [vmem:[#allocation5 + $0x710] sm:$0xff]
        %v486 = vld [vmem:[#allocation5 + $0x718] sm:$0xff]
        %v487 = vld [vmem:[#allocation5 + $0x720] sm:$0xff]
        %v488 = vld [vmem:[#allocation5 + $0x728] sm:$0xff]
        %v489 = vld [vmem:[#allocation5 + $0x730] sm:$0xff]
        %v490 = vld [vmem:[#allocation5 + $0x738] sm:$0xff]
        %v491 = vld [vmem:[#allocation5 + $0x740] sm:$0xff]
        %v492 = vld [vmem:[#allocation5 + $0x748] sm:$0xff]
        %v493 = vld [vmem:[#allocation5 + $0x750] sm:$0xff]
        %v494 = vld [vmem:[#allocation5 + $0x758] sm:$0xff]
        %v495 = vld [vmem:[#allocation5 + $0x760] sm:$0xff]
        %v496 = vld [vmem:[#allocation5 + $0x768] sm:$0xff]
        %v497 = vld [vmem:[#allocation5 + $0x770] sm:$0xff]
        %v498 = vld [vmem:[#allocation5 + $0x778] sm:$0xff]
        %v499 = vld [vmem:[#allocation5 + $0x780] sm:$0xff]
        %v500 = vld [vmem:[#allocation5 + $0x788] sm:$0xff]
        %v501 = vld [vmem:[#allocation5 + $0x790] sm:$0xff]
        %v502 = vld [vmem:[#allocation5 + $0x798] sm:$0xff]
        %v503 = vld [vmem:[#allocation5 + $0x7a0] sm:$0xff]
        %v504 = vld [vmem:[#allocation5 + $0x7a8] sm:$0xff]
        %v505 = vld [vmem:[#allocation5 + $0x7b0] sm:$0xff]
        %v506 = vld [vmem:[#allocation5 + $0x7b8] sm:$0xff]
        %v507 = vld [vmem:[#allocation5 + $0x7c0] sm:$0xff]
        %v508 = vld [vmem:[#allocation5 + $0x7c8] sm:$0xff]
        %v509 = vld [vmem:[#allocation5 + $0x7d0] sm:$0xff]
        %v510 = vld [vmem:[#allocation5 + $0x7d8] sm:$0xff]
        %v511 = vld [vmem:[#allocation5 + $0x7e0] sm:$0xff]
        %v512 = vld [vmem:[#allocation5 + $0x7e8] sm:$0xff]
        %v513 = vld [vmem:[#allocation5 + $0x7f0] sm:$0xff]
        %v514 = vld [vmem:[#allocation5 + $0x7f8] sm:$0xff]
        %v515 = vld [vmem:[#allocation5 + $0x800] sm:$0xff]
        %v516 = vld [vmem:[#allocation5 + $0x808] sm:$0xff]
        %v517 = vld [vmem:[#allocation5 + $0x810] sm:$0xff]
        %v518 = vld [vmem:[#allocation5 + $0x818] sm:$0xff]
        %v519 = vld [vmem:[#allocation5 + $0x820] sm:$0xff]
        %v520 = vld [vmem:[#allocation5 + $0x828] sm:$0xff]
        %v521 = vld [vmem:[#allocation5 + $0x830] sm:$0xff]
        %v522 = vld [vmem:[#allocation5 + $0x838] sm:$0xff]
        %v523 = vld [vmem:[#allocation5 + $0x840] sm:$0xff]
        %v524 = vld [vmem:[#allocation5 + $0x848] sm:$0xff]
        %v525 = vld [vmem:[#allocation5 + $0x850] sm:$0xff]
        %v526 = vld [vmem:[#allocation5 + $0x858] sm:$0xff]
        %v527 = vld [vmem:[#allocation5 + $0x860] sm:$0xff]
        %v528 = vld [vmem:[#allocation5 + $0x868] sm:$0xff]
        %v529 = vld [vmem:[#allocation5 + $0x870] sm:$0xff]
        %v530 = vld [vmem:[#allocation5 + $0x878] sm:$0xff]
        %v531 = vld [vmem:[#allocation5 + $0x880] sm:$0xff]
        %v532 = vld [vmem:[#allocation5 + $0x888] sm:$0xff]
        %v533 = vld [vmem:[#allocation5 + $0x890] sm:$0xff]
        %v534 = vld [vmem:[#allocation5 + $0x898] sm:$0xff]
        %v535 = vld [vmem:[#allocation5 + $0x8a0] sm:$0xff]
        %v536 = vld [vmem:[#allocation5 + $0x8a8] sm:$0xff]
        %v537 = vld [vmem:[#allocation5 + $0x8b0] sm:$0xff]
        %v538 = vld [vmem:[#allocation5 + $0x8b8] sm:$0xff]
        %v539 = vld [vmem:[#allocation5 + $0x8c0] sm:$0xff]
        %v540 = vld [vmem:[#allocation5 + $0x8c8] sm:$0xff]
        %v541 = vld [vmem:[#allocation5 + $0x8d0] sm:$0xff]
        %v542 = vld [vmem:[#allocation5 + $0x8d8] sm:$0xff]
        %v543 = vld [vmem:[#allocation5 + $0x8e0] sm:$0xff]
        %v544 = vld [vmem:[#allocation5 + $0x8e8] sm:$0xff]
        %v545 = vld [vmem:[#allocation5 + $0x8f0] sm:$0xff]
        %v546 = vld [vmem:[#allocation5 + $0x8f8] sm:$0xff]
        %v547 = vld [vmem:[#allocation5 + $0x900] sm:$0xff]
        %v548 = vld [vmem:[#allocation5 + $0x908] sm:$0xff]
        %v549 = vld [vmem:[#allocation5 + $0x910] sm:$0xff]
        %v550 = vld [vmem:[#allocation5 + $0x918] sm:$0xff]
        %v551 = vld [vmem:[#allocation5 + $0x920] sm:$0xff]
        %v552 = vld [vmem:[#allocation5 + $0x928] sm:$0xff]
        %v553 = vld [vmem:[#allocation5 + $0x930] sm:$0xff]
        %v554 = vld [vmem:[#allocation5 + $0x938] sm:$0xff]
        %v555 = vld [vmem:[#allocation5 + $0x940] sm:$0xff]
        %v556 = vld [vmem:[#allocation5 + $0x948] sm:$0xff]
        %v557 = vld [vmem:[#allocation5 + $0x950] sm:$0xff]
        %v558 = vld [vmem:[#allocation5 + $0x958] sm:$0xff]
        %v559 = vld [vmem:[#allocation5 + $0x960] sm:$0xff]
        %v560 = vld [vmem:[#allocation5 + $0x968] sm:$0xff]
        %v561 = vld [vmem:[#allocation5 + $0x970] sm:$0xff]
        %v562 = vld [vmem:[#allocation5 + $0x978] sm:$0xff]
        %v563 = vld [vmem:[#allocation5 + $0x980] sm:$0xff]
        %v564 = vld [vmem:[#allocation5 + $0x988] sm:$0xff]
        %v565 = vld [vmem:[#allocation5 + $0x990] sm:$0xff]
        %v566 = vld [vmem:[#allocation5 + $0x998] sm:$0xff]
        %v567 = vld [vmem:[#allocation5 + $0x9a0] sm:$0xff]
        %v568 = vld [vmem:[#allocation5 + $0x9a8] sm:$0xff]
        %v569 = vld [vmem:[#allocation5 + $0x9b0] sm:$0xff]
        %v570 = vld [vmem:[#allocation5 + $0x9b8] sm:$0xff]
        %v571 = vld [vmem:[#allocation5 + $0x9c0] sm:$0xff]
        %v572 = vld [vmem:[#allocation5 + $0x9c8] sm:$0xff]
        %v573 = vld [vmem:[#allocation5 + $0x9d0] sm:$0xff]
        %v574 = vld [vmem:[#allocation5 + $0x9d8] sm:$0xff]
        %v575 = vld [vmem:[#allocation5 + $0x9e0] sm:$0xff]
        %v576 = vld [vmem:[#allocation5 + $0x9e8] sm:$0xff]
        %v577 = vld [vmem:[#allocation5 + $0x9f0] sm:$0xff]
        %v578 = vld [vmem:[#allocation5 + $0x9f8] sm:$0xff]
        %v579 = vld [vmem:[#allocation5 + $0xa00] sm:$0xff]
        %v580 = vld [vmem:[#allocation5 + $0xa08] sm:$0xff]
        %v581 = vld [vmem:[#allocation5 + $0xa10] sm:$0xff]
        %v582 = vld [vmem:[#allocation5 + $0xa18] sm:$0xff]
        %v583 = vld [vmem:[#allocation5 + $0xa20] sm:$0xff]
        %v584 = vld [vmem:[#allocation5 + $0xa28] sm:$0xff]
        %v585 = vld [vmem:[#allocation5 + $0xa30] sm:$0xff]
        %v586 = vld [vmem:[#allocation5 + $0xa38] sm:$0xff]
        %v587 = vld [vmem:[#allocation5 + $0xa40] sm:$0xff]
        %v588 = vld [vmem:[#allocation5 + $0xa48] sm:$0xff]
        %v589 = vld [vmem:[#allocation5 + $0xa50] sm:$0xff]
        %v590 = vld [vmem:[#allocation5 + $0xa58] sm:$0xff]
        %v591 = vld [vmem:[#allocation5 + $0xa60] sm:$0xff]
        %v592 = vld [vmem:[#allocation5 + $0xa68] sm:$0xff]
        %v593 = vld [vmem:[#allocation5 + $0xa70] sm:$0xff]
        %v594 = vld [vmem:[#allocation5 + $0xa78] sm:$0xff]
        %v595 = vld [vmem:[#allocation5 + $0xa80] sm:$0xff]
        %v596 = vld [vmem:[#allocation5 + $0xa88] sm:$0xff]
        %v597 = vld [vmem:[#allocation5 + $0xa90] sm:$0xff]
        %v598 = vld [vmem:[#allocation5 + $0xa98] sm:$0xff]
        %v599 = vld [vmem:[#allocation5 + $0xaa0] sm:$0xff]
        %v600 = vld [vmem:[#allocation5 + $0xaa8] sm:$0xff]
        %v601 = vld [vmem:[#allocation5 + $0xab0] sm:$0xff]
        %v602 = vld [vmem:[#allocation5 + $0xab8] sm:$0xff]
        %v603 = vld [vmem:[#allocation5 + $0xac0] sm:$0xff]
        %v604 = vld [vmem:[#allocation5 + $0xac8] sm:$0xff]
        %v605 = vld [vmem:[#allocation5 + $0xad0] sm:$0xff]
        %v606 = vld [vmem:[#allocation5 + $0xad8] sm:$0xff]
        %v607 = vld [vmem:[#allocation5 + $0xae0] sm:$0xff]
        %v608 = vld [vmem:[#allocation5 + $0xae8] sm:$0xff]
        %v609 = vld [vmem:[#allocation5 + $0xaf0] sm:$0xff]
        %v610 = vld [vmem:[#allocation5 + $0xaf8] sm:$0xff]
        %v611 = vld [vmem:[#allocation5 + $0xb00] sm:$0xff]
        %v612 = vld [vmem:[#allocation5 + $0xb08] sm:$0xff]
        %v613 = vld [vmem:[#allocation5 + $0xb10] sm:$0xff]
        %v614 = vld [vmem:[#allocation5 + $0xb18] sm:$0xff]
        %v615 = vld [vmem:[#allocation5 + $0xb20] sm:$0xff]
        %v616 = vld [vmem:[#allocation5 + $0xb28] sm:$0xff]
        %v617 = vld [vmem:[#allocation5 + $0xb30] sm:$0xff]
        %v618 = vld [vmem:[#allocation5 + $0xb38] sm:$0xff]
        %v619 = vld [vmem:[#allocation5 + $0xb40] sm:$0xff]
        %v620 = vld [vmem:[#allocation5 + $0xb48] sm:$0xff]
        %v621 = vld [vmem:[#allocation5 + $0xb50] sm:$0xff]
        %v622 = vld [vmem:[#allocation5 + $0xb58] sm:$0xff]
        %v623 = vld [vmem:[#allocation5 + $0xb60] sm:$0xff]
        %v624 = vld [vmem:[#allocation5 + $0xb68] sm:$0xff]
        %v625 = vld [vmem:[#allocation5 + $0xb70] sm:$0xff]
        %v626 = vld [vmem:[#allocation5 + $0xb78] sm:$0xff]
        %v627 = vld [vmem:[#allocation5 + $0xb80] sm:$0xff]
        %v628 = vld [vmem:[#allocation5 + $0xb88] sm:$0xff]
        %v629 = vld [vmem:[#allocation5 + $0xb90] sm:$0xff]
        %v630 = vld [vmem:[#allocation5 + $0xb98] sm:$0xff]
        %v631 = vld [vmem:[#allocation5 + $0xba0] sm:$0xff]
        %v632 = vld [vmem:[#allocation5 + $0xba8] sm:$0xff]
        %v633 = vld [vmem:[#allocation5 + $0xbb0] sm:$0xff]
        %v634 = vld [vmem:[#allocation5 + $0xbb8] sm:$0xff]
        %v635 = vld [vmem:[#allocation5 + $0xbc0] sm:$0xff]
        %v636 = vld [vmem:[#allocation5 + $0xbc8] sm:$0xff]
        %v637 = vld [vmem:[#allocation5 + $0xbd0] sm:$0xff]
        %v638 = vld [vmem:[#allocation5 + $0xbd8] sm:$0xff]
        %v639 = vld [vmem:[#allocation5 + $0xbe0] sm:$0xff]
        %v640 = vld [vmem:[#allocation5 + $0xbe8] sm:$0xff]
        %v641 = vld [vmem:[#allocation5 + $0xbf0] sm:$0xff]
        %v642 = vld [vmem:[#allocation5 + $0xbf8] sm:$0xff]
        %v643 = vld [vmem:[#allocation5 + $0xc00] sm:$0xff]
        %v644 = vld [vmem:[#allocation5 + $0xc08] sm:$0xff]
        %v645 = vld [vmem:[#allocation5 + $0xc10] sm:$0xff]
        %v646 = vld [vmem:[#allocation5 + $0xc18] sm:$0xff]
        %v647 = vld [vmem:[#allocation5 + $0xc20] sm:$0xff]
        %v648 = vld [vmem:[#allocation5 + $0xc28] sm:$0xff]
        %v649 = vld [vmem:[#allocation5 + $0xc30] sm:$0xff]
        %v650 = vld [vmem:[#allocation5 + $0xc38] sm:$0xff]
        %v651 = vld [vmem:[#allocation5 + $0xc40] sm:$0xff]
        %v652 = vld [vmem:[#allocation5 + $0xc48] sm:$0xff]
        %v653 = vld [vmem:[#allocation5 + $0xc50] sm:$0xff]
        %v654 = vld [vmem:[#allocation5 + $0xc58] sm:$0xff]
        %v655 = vld [vmem:[#allocation5 + $0xc60] sm:$0xff]
        %v656 = vld [vmem:[#allocation5 + $0xc68] sm:$0xff]
        %v657 = vld [vmem:[#allocation5 + $0xc70] sm:$0xff]
        %v658 = vld [vmem:[#allocation5 + $0xc78] sm:$0xff]
        %v659 = vld [vmem:[#allocation5 + $0xc80] sm:$0xff]
        %v660 = vld [vmem:[#allocation5 + $0xc88] sm:$0xff]
        %v661 = vld [vmem:[#allocation5 + $0xc90] sm:$0xff]
        %v662 = vld [vmem:[#allocation5 + $0xc98] sm:$0xff]
        %v663 = vld [vmem:[#allocation5 + $0xca0] sm:$0xff]
        %v664 = vld [vmem:[#allocation5 + $0xca8] sm:$0xff]
        %v665 = vld [vmem:[#allocation5 + $0xcb0] sm:$0xff]
        %v666 = vld [vmem:[#allocation5 + $0xcb8] sm:$0xff]
        %v667 = vld [vmem:[#allocation5 + $0xcc0] sm:$0xff]
        %v668 = vld [vmem:[#allocation5 + $0xcc8] sm:$0xff]
        %v669 = vld [vmem:[#allocation5 + $0xcd0] sm:$0xff]
        %v670 = vld [vmem:[#allocation5 + $0xcd8] sm:$0xff]
        %v671 = vld [vmem:[#allocation5 + $0xce0] sm:$0xff]
        %v672 = vld [vmem:[#allocation5 + $0xce8] sm:$0xff]
        %v673 = vld [vmem:[#allocation5 + $0xcf0] sm:$0xff]
        %v674 = vld [vmem:[#allocation5 + $0xcf8] sm:$0xff]
        %v675 = vld [vmem:[#allocation5 + $0xd00] sm:$0xff]
        %v676 = vld [vmem:[#allocation5 + $0xd08] sm:$0xff]
        %v677 = vld [vmem:[#allocation5 + $0xd10] sm:$0xff]
        %v678 = vld [vmem:[#allocation5 + $0xd18] sm:$0xff]
        %v679 = vld [vmem:[#allocation5 + $0xd20] sm:$0xff]
        %v680 = vld [vmem:[#allocation5 + $0xd28] sm:$0xff]
        %v681 = vld [vmem:[#allocation5 + $0xd30] sm:$0xff]
        %v682 = vld [vmem:[#allocation5 + $0xd38] sm:$0xff]
        %v683 = vld [vmem:[#allocation5 + $0xd40] sm:$0xff]
        %v684 = vld [vmem:[#allocation5 + $0xd48] sm:$0xff]
        %v685 = vld [vmem:[#allocation5 + $0xd50] sm:$0xff]
        %v686 = vld [vmem:[#allocation5 + $0xd58] sm:$0xff]
        %v687 = vld [vmem:[#allocation5 + $0xd60] sm:$0xff]
        %v688 = vld [vmem:[#allocation5 + $0xd68] sm:$0xff]
        %v689 = vld [vmem:[#allocation5 + $0xd70] sm:$0xff]
        %v690 = vld [vmem:[#allocation5 + $0xd78] sm:$0xff]
        %691 = vmatprep.subr.mxu0 %v395
        %692 = vmatpush1.msra.mxu0 %v394
        %693 = vmatprep.subr.mxu0 %v386
        %694 = vmatpush1.msra.mxu0 %v385
        %695 = vmatprep.subr.mxu0 %v377
        %696 = vmatpush1.msra.mxu0 %v376
        %697 = vmatprep.subr.mxu0 %v368
        %698 = vmatpush1.msra.mxu0 %v367
        %699 = vmatprep.subr.mxu0 %v359
        %700 = vmatpush1.msra.mxu0 %v358
        %701 = vmatprep.subr.mxu0 %v350
        %702 = vmatpush1.msra.mxu0 %v349
        %703 = vmatprep.subr.mxu0 %v341
        %704 = vmatpush1.msra.mxu0 %v340
        %705 = vmatprep.subr.mxu0 %v332
        %706 = vmatpush1.msra.mxu0 %v331
        %707 = vmatprep.subr.mxu0 %v323
        %708 = vmatpush1.msra.mxu0 %v322
        %709 = vmatprep.subr.mxu0 %v314
        %710 = vmatpush1.msra.mxu0 %v313
        %711 = vmatprep.subr.mxu0 %v305
        %712 = vmatpush1.msra.mxu0 %v304
        %713 = vmatprep.subr.mxu0 %v296
        %714 = vmatpush1.msra.mxu0 %v295
        %715 = vmatprep.subr.mxu0 %v287
        %716 = vmatpush1.msra.mxu0 %v286
        %717 = vmatprep.subr.mxu0 %v278
        %718 = vmatpush1.msra.mxu0 %v277
        %719 = vmatprep.subr.mxu0 %v269
        %720 = vmatpush1.msra.mxu0 %v268
        %721 = vmatprep.subr.mxu0 %v260
        %722 = vmatpush1.msra.mxu0 %v259
        %723 = vmatprep.subr.mxu0 %v539
        %724 = vmatpush2.msra.mxu0 %v538
        %725 = vmatprep.subr.mxu0 %v530
        %726 = vmatpush2.msra.mxu0 %v529
        %727 = vmatprep.subr.mxu0 %v521
        %728 = vmatpush2.msra.mxu0 %v520
        %729 = vmatprep.subr.mxu0 %v512
        %730 = vmatpush2.msra.mxu0 %v511
        %731 = vmatprep.subr.mxu0 %v503
        %732 = vmatpush2.msra.mxu0 %v502
        %733 = vmatprep.subr.mxu0 %v494
        %734 = vmatpush2.msra.mxu0 %v493
        %735 = vmatprep.subr.mxu0 %v485
        %736 = vmatpush2.msra.mxu0 %v484
        %737 = vmatprep.subr.mxu0 %v476
        %738 = vmatpush2.msra.mxu0 %v475
        %739 = vmatprep.subr.mxu0 %v467
        %740 = vmatpush2.msra.mxu0 %v466
        %741 = vmatprep.subr.mxu0 %v458
        %742 = vmatpush2.msra.mxu0 %v457
        %743 = vmatprep.subr.mxu0 %v449
        %744 = vmatpush2.msra.mxu0 %v448
        %745 = vmatprep.subr.mxu0 %v440
        %746 = vmatpush2.msra.mxu0 %v439
        %747 = vmatprep.subr.mxu0 %v431
        %748 = vmatpush2.msra.mxu0 %v430
        %749 = vmatprep.subr.mxu0 %v422
        %750 = vmatpush2.msra.mxu0 %v421
        %751 = vmatprep.subr.mxu0 %v413
        %752 = vmatpush2.msra.mxu0 %v412
        %753 = vmatprep.subr.mxu0 %v404
        %754 = vmatpush2.msra.mxu0 %v403
        %755 = vmatprep.mubr.f32.mxu0 %v257
        %756 = vmatmul.mubr.f32.gmra.mxu0 %v256
        %v757 = vpop.f32.mrf.mxu0
        %v758 = vadd.f32 0.0, %v757
        %v759 = vpop.f32.mrf.mxu0
        %v760 = vadd.f32 0.0, %v759
        %761 = vdwg.mxu0
        %762 = vmatprep.subr.mxu0 %v683
        %763 = vmatpush1.msra.mxu0 %v682
        %764 = vmatprep.subr.mxu0 %v674
        %765 = vmatpush1.msra.mxu0 %v673
        %766 = vmatprep.subr.mxu0 %v665
        %767 = vmatpush1.msra.mxu0 %v664
        %768 = vmatprep.subr.mxu0 %v656
        %769 = vmatpush1.msra.mxu0 %v655
        %770 = vmatprep.subr.mxu0 %v647
        %771 = vmatpush1.msra.mxu0 %v646
        %772 = vmatprep.subr.mxu0 %v638
        %773 = vmatpush1.msra.mxu0 %v637
        %774 = vmatprep.subr.mxu0 %v629
        %775 = vmatpush1.msra.mxu0 %v628
        %776 = vmatprep.subr.mxu0 %v620
        %777 = vmatpush1.msra.mxu0 %v619
        %778 = vmatprep.subr.mxu0 %v611
        %779 = vmatpush1.msra.mxu0 %v610
        %780 = vmatprep.subr.mxu0 %v602
        %781 = vmatpush1.msra.mxu0 %v601
        %782 = vmatprep.subr.mxu0 %v593
        %783 = vmatpush1.msra.mxu0 %v592
        %784 = vmatprep.subr.mxu0 %v584
        %785 = vmatpush1.msra.mxu0 %v583
        %786 = vmatprep.subr.mxu0 %v575
        %787 = vmatpush1.msra.mxu0 %v574
        %788 = vmatprep.subr.mxu0 %v566
        %789 = vmatpush1.msra.mxu0 %v565
        %790 = vmatprep.subr.mxu0 %v557
        %791 = vmatpush1.msra.mxu0 %v556
        %792 = vmatprep.subr.mxu0 %v548
        %793 = vmatpush1.msra.mxu0 %v547
        %794 = vmatprep.subr.mxu0 0.0
        %795 = vmatpush2.msra.mxu0 0.0
        %796 = vmatprep.subr.mxu0 0.0
        %797 = vmatpush2.msra.mxu0 0.0
        %798 = vmatprep.subr.mxu0 0.0
        %799 = vmatpush2.msra.mxu0 0.0
        %800 = vmatprep.subr.mxu0 0.0
        %801 = vmatpush2.msra.mxu0 0.0
        %802 = vmatprep.subr.mxu0 0.0
        %803 = vmatpush2.msra.mxu0 0.0
        %804 = vmatprep.subr.mxu0 0.0
        %805 = vmatpush2.msra.mxu0 0.0
        %806 = vmatprep.subr.mxu0 0.0
        %807 = vmatpush2.msra.mxu0 0.0
        %808 = vmatprep.subr.mxu0 0.0
        %809 = vmatpush2.msra.mxu0 0.0
        %810 = vmatprep.subr.mxu0 0.0
        %811 = vmatpush2.msra.mxu0 0.0
        %812 = vmatprep.subr.mxu0 0.0
        %813 = vmatpush2.msra.mxu0 0.0
        %814 = vmatprep.subr.mxu0 0.0
        %815 = vmatpush2.msra.mxu0 0.0
        %816 = vmatprep.subr.mxu0 0.0
        %817 = vmatpush2.msra.mxu0 0.0
        %818 = vmatprep.subr.mxu0 0.0
        %819 = vmatpush2.msra.mxu0 0.0
        %820 = vmatprep.subr.mxu0 0.0
        %821 = vmatpush2.msra.mxu0 0.0
        %822 = vmatprep.subr.mxu0 0.0
        %823 = vmatpush2.msra.mxu0 0.0
        %824 = vmatprep.subr.mxu0 0.0
        %825 = vmatpush2.msra.mxu0 0.0
        %826 = vmatprep.mubr.f32.mxu0 0.0
        %827 = vmatmul.mubr.f32.gmra.mxu0 %v258
        %v828 = vpop.f32.mrf.mxu0
        %v829 = vadd.f32 %v758, %v828
        %v830 = vpop.f32.mrf.mxu0
        %v831 = vadd.f32 %v760, %v830
        %832 = vdwg.mxu0
        %833 = vmatprep.subr.mxu0 %v397
        %834 = vmatpush1.msra.mxu0 %v396
        %835 = vmatprep.subr.mxu0 %v388
        %836 = vmatpush1.msra.mxu0 %v387
        %837 = vmatprep.subr.mxu0 %v379
        %838 = vmatpush1.msra.mxu0 %v378
        %839 = vmatprep.subr.mxu0 %v370
        %840 = vmatpush1.msra.mxu0 %v369
        %841 = vmatprep.subr.mxu0 %v361
        %842 = vmatpush1.msra.mxu0 %v360
        %843 = vmatprep.subr.mxu0 %v352
        %844 = vmatpush1.msra.mxu0 %v351
        %845 = vmatprep.subr.mxu0 %v343
        %846 = vmatpush1.msra.mxu0 %v342
        %847 = vmatprep.subr.mxu0 %v334
        %848 = vmatpush1.msra.mxu0 %v333
        %849 = vmatprep.subr.mxu0 %v325
        %850 = vmatpush1.msra.mxu0 %v324
        %851 = vmatprep.subr.mxu0 %v316
        %852 = vmatpush1.msra.mxu0 %v315
        %853 = vmatprep.subr.mxu0 %v307
        %854 = vmatpush1.msra.mxu0 %v306
        %855 = vmatprep.subr.mxu0 %v298
        %856 = vmatpush1.msra.mxu0 %v297
        %857 = vmatprep.subr.mxu0 %v289
        %858 = vmatpush1.msra.mxu0 %v288
        %859 = vmatprep.subr.mxu0 %v280
        %860 = vmatpush1.msra.mxu0 %v279
        %861 = vmatprep.subr.mxu0 %v271
        %862 = vmatpush1.msra.mxu0 %v270
        %863 = vmatprep.subr.mxu0 %v262
        %864 = vmatpush1.msra.mxu0 %v261
        %865 = vmatprep.subr.mxu0 %v541
        %866 = vmatpush2.msra.mxu0 %v540
        %867 = vmatprep.subr.mxu0 %v532
        %868 = vmatpush2.msra.mxu0 %v531
        %869 = vmatprep.subr.mxu0 %v523
        %870 = vmatpush2.msra.mxu0 %v522
        %871 = vmatprep.subr.mxu0 %v514
        %872 = vmatpush2.msra.mxu0 %v513
        %873 = vmatprep.subr.mxu0 %v505
        %874 = vmatpush2.msra.mxu0 %v504
        %875 = vmatprep.subr.mxu0 %v496
        %876 = vmatpush2.msra.mxu0 %v495
        %877 = vmatprep.subr.mxu0 %v487
        %878 = vmatpush2.msra.mxu0 %v486
        %879 = vmatprep.subr.mxu0 %v478
        %880 = vmatpush2.msra.mxu0 %v477
        %881 = vmatprep.subr.mxu0 %v469
        %882 = vmatpush2.msra.mxu0 %v468
        %883 = vmatprep.subr.mxu0 %v460
        %884 = vmatpush2.msra.mxu0 %v459
        %885 = vmatprep.subr.mxu0 %v451
        %886 = vmatpush2.msra.mxu0 %v450
        %887 = vmatprep.subr.mxu0 %v442
        %888 = vmatpush2.msra.mxu0 %v441
        %889 = vmatprep.subr.mxu0 %v433
        %890 = vmatpush2.msra.mxu0 %v432
        %891 = vmatprep.subr.mxu0 %v424
        %892 = vmatpush2.msra.mxu0 %v423
        %893 = vmatprep.subr.mxu0 %v415
        %894 = vmatpush2.msra.mxu0 %v414
        %895 = vmatprep.subr.mxu0 %v406
        %896 = vmatpush2.msra.mxu0 %v405
        %897 = vmatprep.mubr.f32.mxu0 %v257
        %898 = vmatmul.mubr.f32.gmra.mxu0 %v256
        %v899 = vpop.f32.mrf.mxu0
        %v900 = vadd.f32 0.0, %v899
        %v901 = vpop.f32.mrf.mxu0
        %v902 = vadd.f32 0.0, %v901
        %903 = vdwg.mxu0
        %904 = vmatprep.subr.mxu0 %v685
        %905 = vmatpush1.msra.mxu0 %v684
        %906 = vmatprep.subr.mxu0 %v676
        %907 = vmatpush1.msra.mxu0 %v675
        %908 = vmatprep.subr.mxu0 %v667
        %909 = vmatpush1.msra.mxu0 %v666
        %910 = vmatprep.subr.mxu0 %v658
        %911 = vmatpush1.msra.mxu0 %v657
        %912 = vmatprep.subr.mxu0 %v649
        %913 = vmatpush1.msra.mxu0 %v648
        %914 = vmatprep.subr.mxu0 %v640
        %915 = vmatpush1.msra.mxu0 %v639
        %916 = vmatprep.subr.mxu0 %v631
        %917 = vmatpush1.msra.mxu0 %v630
        %918 = vmatprep.subr.mxu0 %v622
        %919 = vmatpush1.msra.mxu0 %v621
        %920 = vmatprep.subr.mxu0 %v613
        %921 = vmatpush1.msra.mxu0 %v612
        %922 = vmatprep.subr.mxu0 %v604
        %923 = vmatpush1.msra.mxu0 %v603
        %924 = vmatprep.subr.mxu0 %v595
        %925 = vmatpush1.msra.mxu0 %v594
        %926 = vmatprep.subr.mxu0 %v586
        %927 = vmatpush1.msra.mxu0 %v585
        %928 = vmatprep.subr.mxu0 %v577
        %929 = vmatpush1.msra.mxu0 %v576
        %930 = vmatprep.subr.mxu0 %v568
        %931 = vmatpush1.msra.mxu0 %v567
        %932 = vmatprep.subr.mxu0 %v559
        %933 = vmatpush1.msra.mxu0 %v558
        %934 = vmatprep.subr.mxu0 %v550
        %935 = vmatpush1.msra.mxu0 %v549
        %936 = vmatprep.subr.mxu0 0.0
        %937 = vmatpush2.msra.mxu0 0.0
        %938 = vmatprep.subr.mxu0 0.0
        %939 = vmatpush2.msra.mxu0 0.0
        %940 = vmatprep.subr.mxu0 0.0
        %941 = vmatpush2.msra.mxu0 0.0
        %942 = vmatprep.subr.mxu0 0.0
        %943 = vmatpush2.msra.mxu0 0.0
        %944 = vmatprep.subr.mxu0 0.0
        %945 = vmatpush2.msra.mxu0 0.0
        %946 = vmatprep.subr.mxu0 0.0
        %947 = vmatpush2.msra.mxu0 0.0
        %948 = vmatprep.subr.mxu0 0.0
        %949 = vmatpush2.msra.mxu0 0.0
        %950 = vmatprep.subr.mxu0 0.0
        %951 = vmatpush2.msra.mxu0 0.0
        %952 = vmatprep.subr.mxu0 0.0
        %953 = vmatpush2.msra.mxu0 0.0
        %954 = vmatprep.subr.mxu0 0.0
        %955 = vmatpush2.msra.mxu0 0.0
        %956 = vmatprep.subr.mxu0 0.0
        %957 = vmatpush2.msra.mxu0 0.0
        %958 = vmatprep.subr.mxu0 0.0
        %959 = vmatpush2.msra.mxu0 0.0
        %960 = vmatprep.subr.mxu0 0.0
        %961 = vmatpush2.msra.mxu0 0.0
        %962 = vmatprep.subr.mxu0 0.0
        %963 = vmatpush2.msra.mxu0 0.0
        %964 = vmatprep.subr.mxu0 0.0
        %965 = vmatpush2.msra.mxu0 0.0
        %966 = vmatprep.subr.mxu0 0.0
        %967 = vmatpush2.msra.mxu0 0.0
        %968 = vmatprep.mubr.f32.mxu0 0.0
        %969 = vmatmul.mubr.f32.gmra.mxu0 %v258
        %v970 = vpop.f32.mrf.mxu0
        %v971 = vadd.f32 %v900, %v970
        %v972 = vpop.f32.mrf.mxu0
        %v973 = vadd.f32 %v902, %v972
        %974 = vdwg.mxu0
        %975 = vmatprep.subr.mxu0 %v399
        %976 = vmatpush1.msra.mxu0 %v398
        %977 = vmatprep.subr.mxu0 %v390
        %978 = vmatpush1.msra.mxu0 %v389
        %979 = vmatprep.subr.mxu0 %v381
        %980 = vmatpush1.msra.mxu0 %v380
        %981 = vmatprep.subr.mxu0 %v372
        %982 = vmatpush1.msra.mxu0 %v371
        %983 = vmatprep.subr.mxu0 %v363
        %984 = vmatpush1.msra.mxu0 %v362
        %985 = vmatprep.subr.mxu0 %v354
        %986 = vmatpush1.msra.mxu0 %v353
        %987 = vmatprep.subr.mxu0 %v345
        %988 = vmatpush1.msra.mxu0 %v344
        %989 = vmatprep.subr.mxu0 %v336
        %990 = vmatpush1.msra.mxu0 %v335
        %991 = vmatprep.subr.mxu0 %v327
        %992 = vmatpush1.msra.mxu0 %v326
        %993 = vmatprep.subr.mxu0 %v318
        %994 = vmatpush1.msra.mxu0 %v317
        %995 = vmatprep.subr.mxu0 %v309
        %996 = vmatpush1.msra.mxu0 %v308
        %997 = vmatprep.subr.mxu0 %v300
        %998 = vmatpush1.msra.mxu0 %v299
        %999 = vmatprep.subr.mxu0 %v291
        %1000 = vmatpush1.msra.mxu0 %v290
        %1001 = vmatprep.subr.mxu0 %v282
        %1002 = vmatpush1.msra.mxu0 %v281
        %1003 = vmatprep.subr.mxu0 %v273
        %1004 = vmatpush1.msra.mxu0 %v272
        %1005 = vmatprep.subr.mxu0 %v264
        %1006 = vmatpush1.msra.mxu0 %v263
        %1007 = vmatprep.subr.mxu0 %v543
        %1008 = vmatpush2.msra.mxu0 %v542
        %1009 = vmatprep.subr.mxu0 %v534
        %1010 = vmatpush2.msra.mxu0 %v533
        %1011 = vmatprep.subr.mxu0 %v525
        %1012 = vmatpush2.msra.mxu0 %v524
        %1013 = vmatprep.subr.mxu0 %v516
        %1014 = vmatpush2.msra.mxu0 %v515
        %1015 = vmatprep.subr.mxu0 %v507
        %1016 = vmatpush2.msra.mxu0 %v506
        %1017 = vmatprep.subr.mxu0 %v498
        %1018 = vmatpush2.msra.mxu0 %v497
        %1019 = vmatprep.subr.mxu0 %v489
        %1020 = vmatpush2.msra.mxu0 %v488
        %1021 = vmatprep.subr.mxu0 %v480
        %1022 = vmatpush2.msra.mxu0 %v479
        %1023 = vmatprep.subr.mxu0 %v471
        %1024 = vmatpush2.msra.mxu0 %v470
        %1025 = vmatprep.subr.mxu0 %v462
        %1026 = vmatpush2.msra.mxu0 %v461
        %1027 = vmatprep.subr.mxu0 %v453
        %1028 = vmatpush2.msra.mxu0 %v452
        %1029 = vmatprep.subr.mxu0 %v444
        %1030 = vmatpush2.msra.mxu0 %v443
        %1031 = vmatprep.subr.mxu0 %v435
        %1032 = vmatpush2.msra.mxu0 %v434
        %1033 = vmatprep.subr.mxu0 %v426
        %1034 = vmatpush2.msra.mxu0 %v425
        %1035 = vmatprep.subr.mxu0 %v417
        %1036 = vmatpush2.msra.mxu0 %v416
        %1037 = vmatprep.subr.mxu0 %v408
        %1038 = vmatpush2.msra.mxu0 %v407
        %1039 = vmatprep.mubr.f32.mxu0 %v257
        %1040 = vmatmul.mubr.f32.gmra.mxu0 %v256
        %v1041 = vpop.f32.mrf.mxu0
        %v1042 = vadd.f32 0.0, %v1041
        %v1043 = vpop.f32.mrf.mxu0
        %v1044 = vadd.f32 0.0, %v1043
        %1045 = vdwg.mxu0
        %1046 = vmatprep.subr.mxu0 %v687
        %1047 = vmatpush1.msra.mxu0 %v686
        %1048 = vmatprep.subr.mxu0 %v678
        %1049 = vmatpush1.msra.mxu0 %v677
        %1050 = vmatprep.subr.mxu0 %v669
        %1051 = vmatpush1.msra.mxu0 %v668
        %1052 = vmatprep.subr.mxu0 %v660
        %1053 = vmatpush1.msra.mxu0 %v659
        %1054 = vmatprep.subr.mxu0 %v651
        %1055 = vmatpush1.msra.mxu0 %v650
        %1056 = vmatprep.subr.mxu0 %v642
        %1057 = vmatpush1.msra.mxu0 %v641
        %1058 = vmatprep.subr.mxu0 %v633
        %1059 = vmatpush1.msra.mxu0 %v632
        %1060 = vmatprep.subr.mxu0 %v624
        %1061 = vmatpush1.msra.mxu0 %v623
        %1062 = vmatprep.subr.mxu0 %v615
        %1063 = vmatpush1.msra.mxu0 %v614
        %1064 = vmatprep.subr.mxu0 %v606
        %1065 = vmatpush1.msra.mxu0 %v605
        %1066 = vmatprep.subr.mxu0 %v597
        %1067 = vmatpush1.msra.mxu0 %v596
        %1068 = vmatprep.subr.mxu0 %v588
        %1069 = vmatpush1.msra.mxu0 %v587
        %1070 = vmatprep.subr.mxu0 %v579
        %1071 = vmatpush1.msra.mxu0 %v578
        %1072 = vmatprep.subr.mxu0 %v570
        %1073 = vmatpush1.msra.mxu0 %v569
        %1074 = vmatprep.subr.mxu0 %v561
        %1075 = vmatpush1.msra.mxu0 %v560
        %1076 = vmatprep.subr.mxu0 %v552
        %1077 = vmatpush1.msra.mxu0 %v551
        %1078 = vmatprep.subr.mxu0 0.0
        %1079 = vmatpush2.msra.mxu0 0.0
        %1080 = vmatprep.subr.mxu0 0.0
        %1081 = vmatpush2.msra.mxu0 0.0
        %1082 = vmatprep.subr.mxu0 0.0
        %1083 = vmatpush2.msra.mxu0 0.0
        %1084 = vmatprep.subr.mxu0 0.0
        %1085 = vmatpush2.msra.mxu0 0.0
        %1086 = vmatprep.subr.mxu0 0.0
        %1087 = vmatpush2.msra.mxu0 0.0
        %1088 = vmatprep.subr.mxu0 0.0
        %1089 = vmatpush2.msra.mxu0 0.0
        %1090 = vmatprep.subr.mxu0 0.0
        %1091 = vmatpush2.msra.mxu0 0.0
        %1092 = vmatprep.subr.mxu0 0.0
        %1093 = vmatpush2.msra.mxu0 0.0
        %1094 = vmatprep.subr.mxu0 0.0
        %1095 = vmatpush2.msra.mxu0 0.0
        %1096 = vmatprep.subr.mxu0 0.0
        %1097 = vmatpush2.msra.mxu0 0.0
        %1098 = vmatprep.subr.mxu0 0.0
        %1099 = vmatpush2.msra.mxu0 0.0
        %1100 = vmatprep.subr.mxu0 0.0
        %1101 = vmatpush2.msra.mxu0 0.0
        %1102 = vmatprep.subr.mxu0 0.0
        %1103 = vmatpush2.msra.mxu0 0.0
        %1104 = vmatprep.subr.mxu0 0.0
        %1105 = vmatpush2.msra.mxu0 0.0
        %1106 = vmatprep.subr.mxu0 0.0
        %1107 = vmatpush2.msra.mxu0 0.0
        %1108 = vmatprep.subr.mxu0 0.0
        %1109 = vmatpush2.msra.mxu0 0.0
        %1110 = vmatprep.mubr.f32.mxu0 0.0
        %1111 = vmatmul.mubr.f32.gmra.mxu0 %v258
        %v1112 = vpop.f32.mrf.mxu0
        %v1113 = vadd.f32 %v1042, %v1112
        %v1114 = vpop.f32.mrf.mxu0
        %v1115 = vadd.f32 %v1044, %v1114
        %1116 = vdwg.mxu0
        %1117 = vmatprep.subr.mxu0 %v401
        %1118 = vmatpush1.msra.mxu0 %v400
        %1119 = vmatprep.subr.mxu0 %v392
        %1120 = vmatpush1.msra.mxu0 %v391
        %1121 = vmatprep.subr.mxu0 %v383
        %1122 = vmatpush1.msra.mxu0 %v382
        %1123 = vmatprep.subr.mxu0 %v374
        %1124 = vmatpush1.msra.mxu0 %v373
        %1125 = vmatprep.subr.mxu0 %v365
        %1126 = vmatpush1.msra.mxu0 %v364
        %1127 = vmatprep.subr.mxu0 %v356
        %1128 = vmatpush1.msra.mxu0 %v355
        %1129 = vmatprep.subr.mxu0 %v347
        %1130 = vmatpush1.msra.mxu0 %v346
        %1131 = vmatprep.subr.mxu0 %v338
        %1132 = vmatpush1.msra.mxu0 %v337
        %1133 = vmatprep.subr.mxu0 %v329
        %1134 = vmatpush1.msra.mxu0 %v328
        %1135 = vmatprep.subr.mxu0 %v320
        %1136 = vmatpush1.msra.mxu0 %v319
        %1137 = vmatprep.subr.mxu0 %v311
        %1138 = vmatpush1.msra.mxu0 %v310
        %1139 = vmatprep.subr.mxu0 %v302
        %1140 = vmatpush1.msra.mxu0 %v301
        %1141 = vmatprep.subr.mxu0 %v293
        %1142 = vmatpush1.msra.mxu0 %v292
        %1143 = vmatprep.subr.mxu0 %v284
        %1144 = vmatpush1.msra.mxu0 %v283
        %1145 = vmatprep.subr.mxu0 %v275
        %1146 = vmatpush1.msra.mxu0 %v274
        %1147 = vmatprep.subr.mxu0 %v266
        %1148 = vmatpush1.msra.mxu0 %v265
        %1149 = vmatprep.subr.mxu0 %v545
        %1150 = vmatpush2.msra.mxu0 %v544
        %1151 = vmatprep.subr.mxu0 %v536
        %1152 = vmatpush2.msra.mxu0 %v535
        %1153 = vmatprep.subr.mxu0 %v527
        %1154 = vmatpush2.msra.mxu0 %v526
        %1155 = vmatprep.subr.mxu0 %v518
        %1156 = vmatpush2.msra.mxu0 %v517
        %1157 = vmatprep.subr.mxu0 %v509
        %1158 = vmatpush2.msra.mxu0 %v508
        %1159 = vmatprep.subr.mxu0 %v500
        %1160 = vmatpush2.msra.mxu0 %v499
        %1161 = vmatprep.subr.mxu0 %v491
        %1162 = vmatpush2.msra.mxu0 %v490
        %1163 = vmatprep.subr.mxu0 %v482
        %1164 = vmatpush2.msra.mxu0 %v481
        %1165 = vmatprep.subr.mxu0 %v473
        %1166 = vmatpush2.msra.mxu0 %v472
        %1167 = vmatprep.subr.mxu0 %v464
        %1168 = vmatpush2.msra.mxu0 %v463
        %1169 = vmatprep.subr.mxu0 %v455
        %1170 = vmatpush2.msra.mxu0 %v454
        %1171 = vmatprep.subr.mxu0 %v446
        %1172 = vmatpush2.msra.mxu0 %v445
        %1173 = vmatprep.subr.mxu0 %v437
        %1174 = vmatpush2.msra.mxu0 %v436
        %1175 = vmatprep.subr.mxu0 %v428
        %1176 = vmatpush2.msra.mxu0 %v427
        %1177 = vmatprep.subr.mxu0 %v419
        %1178 = vmatpush2.msra.mxu0 %v418
        %1179 = vmatprep.subr.mxu0 %v410
        %1180 = vmatpush2.msra.mxu0 %v409
        %1181 = vmatprep.mubr.f32.mxu0 %v257
        %1182 = vmatmul.mubr.f32.gmra.mxu0 %v256
        %v1183 = vpop.f32.mrf.mxu0
        %v1184 = vadd.f32 0.0, %v1183
        %v1185 = vpop.f32.mrf.mxu0
        %v1186 = vadd.f32 0.0, %v1185
        %1187 = vdwg.mxu0
        %1188 = vmatprep.subr.mxu0 %v689
        %1189 = vmatpush1.msra.mxu0 %v688
        %1190 = vmatprep.subr.mxu0 %v680
        %1191 = vmatpush1.msra.mxu0 %v679
        %1192 = vmatprep.subr.mxu0 %v671
        %1193 = vmatpush1.msra.mxu0 %v670
        %1194 = vmatprep.subr.mxu0 %v662
        %1195 = vmatpush1.msra.mxu0 %v661
        %1196 = vmatprep.subr.mxu0 %v653
        %1197 = vmatpush1.msra.mxu0 %v652
        %1198 = vmatprep.subr.mxu0 %v644
        %1199 = vmatpush1.msra.mxu0 %v643
        %1200 = vmatprep.subr.mxu0 %v635
        %1201 = vmatpush1.msra.mxu0 %v634
        %1202 = vmatprep.subr.mxu0 %v626
        %1203 = vmatpush1.msra.mxu0 %v625
        %1204 = vmatprep.subr.mxu0 %v617
        %1205 = vmatpush1.msra.mxu0 %v616
        %1206 = vmatprep.subr.mxu0 %v608
        %1207 = vmatpush1.msra.mxu0 %v607
        %1208 = vmatprep.subr.mxu0 %v599
        %1209 = vmatpush1.msra.mxu0 %v598
        %1210 = vmatprep.subr.mxu0 %v590
        %1211 = vmatpush1.msra.mxu0 %v589
        %1212 = vmatprep.subr.mxu0 %v581
        %1213 = vmatpush1.msra.mxu0 %v580
        %1214 = vmatprep.subr.mxu0 %v572
        %1215 = vmatpush1.msra.mxu0 %v571
        %1216 = vmatprep.subr.mxu0 %v563
        %1217 = vmatpush1.msra.mxu0 %v562
        %1218 = vmatprep.subr.mxu0 %v554
        %1219 = vmatpush1.msra.mxu0 %v553
        %1220 = vmatprep.subr.mxu0 0.0
        %1221 = vmatpush2.msra.mxu0 0.0
        %1222 = vmatprep.subr.mxu0 0.0
        %1223 = vmatpush2.msra.mxu0 0.0
        %1224 = vmatprep.subr.mxu0 0.0
        %1225 = vmatpush2.msra.mxu0 0.0
        %1226 = vmatprep.subr.mxu0 0.0
        %1227 = vmatpush2.msra.mxu0 0.0
        %1228 = vmatprep.subr.mxu0 0.0
        %1229 = vmatpush2.msra.mxu0 0.0
        %1230 = vmatprep.subr.mxu0 0.0
        %1231 = vmatpush2.msra.mxu0 0.0
        %1232 = vmatprep.subr.mxu0 0.0
        %1233 = vmatpush2.msra.mxu0 0.0
        %1234 = vmatprep.subr.mxu0 0.0
        %1235 = vmatpush2.msra.mxu0 0.0
        %1236 = vmatprep.subr.mxu0 0.0
        %1237 = vmatpush2.msra.mxu0 0.0
        %1238 = vmatprep.subr.mxu0 0.0
        %1239 = vmatpush2.msra.mxu0 0.0
        %1240 = vmatprep.subr.mxu0 0.0
        %1241 = vmatpush2.msra.mxu0 0.0
        %1242 = vmatprep.subr.mxu0 0.0
        %1243 = vmatpush2.msra.mxu0 0.0
        %1244 = vmatprep.subr.mxu0 0.0
        %1245 = vmatpush2.msra.mxu0 0.0
        %1246 = vmatprep.subr.mxu0 0.0
        %1247 = vmatpush2.msra.mxu0 0.0
        %1248 = vmatprep.subr.mxu0 0.0
        %1249 = vmatpush2.msra.mxu0 0.0
        %1250 = vmatprep.subr.mxu0 0.0
        %1251 = vmatpush2.msra.mxu0 0.0
        %1252 = vmatprep.mubr.f32.mxu0 0.0
        %1253 = vmatmul.mubr.f32.gmra.mxu0 %v258
        %v1254 = vpop.f32.mrf.mxu0
        %v1255 = vadd.f32 %v1184, %v1254
        %v1256 = vpop.f32.mrf.mxu0
        %v1257 = vadd.f32 %v1186, %v1256
        %1258 = vdwg.mxu0
        %1259 = vmatprep.subr.mxu0 0.0
        %1260 = vmatpush1.msra.mxu0 %v402
        %1261 = vmatprep.subr.mxu0 0.0
        %1262 = vmatpush1.msra.mxu0 %v393
        %1263 = vmatprep.subr.mxu0 0.0
        %1264 = vmatpush1.msra.mxu0 %v384
        %1265 = vmatprep.subr.mxu0 0.0
        %1266 = vmatpush1.msra.mxu0 %v375
        %1267 = vmatprep.subr.mxu0 0.0
        %1268 = vmatpush1.msra.mxu0 %v366
        %1269 = vmatprep.subr.mxu0 0.0
        %1270 = vmatpush1.msra.mxu0 %v357
        %1271 = vmatprep.subr.mxu0 0.0
        %1272 = vmatpush1.msra.mxu0 %v348
        %1273 = vmatprep.subr.mxu0 0.0
        %1274 = vmatpush1.msra.mxu0 %v339
        %1275 = vmatprep.subr.mxu0 0.0
        %1276 = vmatpush1.msra.mxu0 %v330
        %1277 = vmatprep.subr.mxu0 0.0
        %1278 = vmatpush1.msra.mxu0 %v321
        %1279 = vmatprep.subr.mxu0 0.0
        %1280 = vmatpush1.msra.mxu0 %v312
        %1281 = vmatprep.subr.mxu0 0.0
        %1282 = vmatpush1.msra.mxu0 %v303
        %1283 = vmatprep.subr.mxu0 0.0
        %1284 = vmatpush1.msra.mxu0 %v294
        %1285 = vmatprep.subr.mxu0 0.0
        %1286 = vmatpush1.msra.mxu0 %v285
        %1287 = vmatprep.subr.mxu0 0.0
        %1288 = vmatpush1.msra.mxu0 %v276
        %1289 = vmatprep.subr.mxu0 0.0
        %1290 = vmatpush1.msra.mxu0 %v267
        %1291 = vmatprep.subr.mxu0 0.0
        %1292 = vmatpush2.msra.mxu0 %v546
        %1293 = vmatprep.subr.mxu0 0.0
        %1294 = vmatpush2.msra.mxu0 %v537
        %1295 = vmatprep.subr.mxu0 0.0
        %1296 = vmatpush2.msra.mxu0 %v528
        %1297 = vmatprep.subr.mxu0 0.0
        %1298 = vmatpush2.msra.mxu0 %v519
        %1299 = vmatprep.subr.mxu0 0.0
        %1300 = vmatpush2.msra.mxu0 %v510
        %1301 = vmatprep.subr.mxu0 0.0
        %1302 = vmatpush2.msra.mxu0 %v501
        %1303 = vmatprep.subr.mxu0 0.0
        %1304 = vmatpush2.msra.mxu0 %v492
        %1305 = vmatprep.subr.mxu0 0.0
        %1306 = vmatpush2.msra.mxu0 %v483
        %1307 = vmatprep.subr.mxu0 0.0
        %1308 = vmatpush2.msra.mxu0 %v474
        %1309 = vmatprep.subr.mxu0 0.0
        %1310 = vmatpush2.msra.mxu0 %v465
        %1311 = vmatprep.subr.mxu0 0.0
        %1312 = vmatpush2.msra.mxu0 %v456
        %1313 = vmatprep.subr.mxu0 0.0
        %1314 = vmatpush2.msra.mxu0 %v447
        %1315 = vmatprep.subr.mxu0 0.0
        %1316 = vmatpush2.msra.mxu0 %v438
        %1317 = vmatprep.subr.mxu0 0.0
        %1318 = vmatpush2.msra.mxu0 %v429
        %1319 = vmatprep.subr.mxu0 0.0
        %1320 = vmatpush2.msra.mxu0 %v420
        %1321 = vmatprep.subr.mxu0 0.0
        %1322 = vmatpush2.msra.mxu0 %v411
        %1323 = vmatprep.mubr.f32.mxu0 %v257
        %1324 = vmatmul.mubr.f32.gmra.mxu0 %v256
        %v1325 = vpop.f32.mrf.mxu0
        %v1326 = vadd.f32 0.0, %v1325
        %v1327 = vpop.f32.mrf.mxu0
        %1328 = vdwg.mxu0
        %1329 = vmatprep.subr.mxu0 0.0
        %1330 = vmatpush1.msra.mxu0 %v690
        %1331 = vmatprep.subr.mxu0 0.0
        %1332 = vmatpush1.msra.mxu0 %v681
        %1333 = vmatprep.subr.mxu0 0.0
        %1334 = vmatpush1.msra.mxu0 %v672
        %1335 = vmatprep.subr.mxu0 0.0
        %1336 = vmatpush1.msra.mxu0 %v663
        %1337 = vmatprep.subr.mxu0 0.0
        %1338 = vmatpush1.msra.mxu0 %v654
        %1339 = vmatprep.subr.mxu0 0.0
        %1340 = vmatpush1.msra.mxu0 %v645
        %1341 = vmatprep.subr.mxu0 0.0
        %1342 = vmatpush1.msra.mxu0 %v636
        %1343 = vmatprep.subr.mxu0 0.0
        %1344 = vmatpush1.msra.mxu0 %v627
        %1345 = vmatprep.subr.mxu0 0.0
        %1346 = vmatpush1.msra.mxu0 %v618
        %1347 = vmatprep.subr.mxu0 0.0
        %1348 = vmatpush1.msra.mxu0 %v609
        %1349 = vmatprep.subr.mxu0 0.0
        %1350 = vmatpush1.msra.mxu0 %v600
        %1351 = vmatprep.subr.mxu0 0.0
        %1352 = vmatpush1.msra.mxu0 %v591
        %1353 = vmatprep.subr.mxu0 0.0
        %1354 = vmatpush1.msra.mxu0 %v582
        %1355 = vmatprep.subr.mxu0 0.0
        %1356 = vmatpush1.msra.mxu0 %v573
        %1357 = vmatprep.subr.mxu0 0.0
        %1358 = vmatpush1.msra.mxu0 %v564
        %1359 = vmatprep.subr.mxu0 0.0
        %1360 = vmatpush1.msra.mxu0 %v555
        %1361 = vmatprep.subr.mxu0 0.0
        %1362 = vmatpush2.msra.mxu0 0.0
        %1363 = vmatprep.subr.mxu0 0.0
        %1364 = vmatpush2.msra.mxu0 0.0
        %1365 = vmatprep.subr.mxu0 0.0
        %1366 = vmatpush2.msra.mxu0 0.0
        %1367 = vmatprep.subr.mxu0 0.0
        %1368 = vmatpush2.msra.mxu0 0.0
        %1369 = vmatprep.subr.mxu0 0.0
        %1370 = vmatpush2.msra.mxu0 0.0
        %1371 = vmatprep.subr.mxu0 0.0
        %1372 = vmatpush2.msra.mxu0 0.0
        %1373 = vmatprep.subr.mxu0 0.0
        %1374 = vmatpush2.msra.mxu0 0.0
        %1375 = vmatprep.subr.mxu0 0.0
        %1376 = vmatpush2.msra.mxu0 0.0
        %1377 = vmatprep.subr.mxu0 0.0
        %1378 = vmatpush2.msra.mxu0 0.0
        %1379 = vmatprep.subr.mxu0 0.0
        %1380 = vmatpush2.msra.mxu0 0.0
        %1381 = vmatprep.subr.mxu0 0.0
        %1382 = vmatpush2.msra.mxu0 0.0
        %1383 = vmatprep.subr.mxu0 0.0
        %1384 = vmatpush2.msra.mxu0 0.0
        %1385 = vmatprep.subr.mxu0 0.0
        %1386 = vmatpush2.msra.mxu0 0.0
        %1387 = vmatprep.subr.mxu0 0.0
        %1388 = vmatpush2.msra.mxu0 0.0
        %1389 = vmatprep.subr.mxu0 0.0
        %1390 = vmatpush2.msra.mxu0 0.0
        %1391 = vmatprep.subr.mxu0 0.0
        %1392 = vmatpush2.msra.mxu0 0.0
        %1393 = vmatprep.mubr.f32.mxu0 0.0
        %1394 = vmatmul.mubr.f32.gmra.mxu0 %v258
        %v1395 = vpop.f32.mrf.mxu0
        %v1396 = vadd.f32 %v1326, %v1395
        %v1397 = vpop.f32.mrf.mxu0
        %1398 = vdwg.mxu0
        %v1399 = vlaneseq
        %v1400 = vshrl.u32 %v1399, 7
        %v1401 = vlaneseq
        %v1402 = vand.u32 %v1401, 127
        %vm1403 = vcmp.le.s32.totalorder %v1402, %v1400
        %v1404 = vsel %vm1403, 0.0, -inf
        %vm1405 = vcmask 523264
        %v1407 = vsel %vm1405, %v829, 0
        %v1410 = vsel %vm1405, %v973, 0
        %1412 = vmatprep.subr.mxu0 0.0
        %1413 = vmatpush1.xpose.msra.mxu0 0.0
        %1414 = vmatprep.subr.mxu0 0.0
        %1415 = vmatpush1.xpose.msra.mxu0 0.0
        %1416 = vmatprep.subr.mxu0 0.0
        %1417 = vmatpush1.xpose.msra.mxu0 0.0
        %1418 = vmatprep.subr.mxu0 0.0
        %1419 = vmatpush1.xpose.msra.mxu0 0.0
        %1420 = vmatprep.subr.mxu0 0.0
        %1421 = vmatpush1.xpose.msra.mxu0 0.0
        %1422 = vmatprep.subr.mxu0 0.0
        %1423 = vmatpush1.xpose.msra.mxu0 0.0
        %1424 = vmatprep.subr.mxu0 0.0
        %1425 = vmatpush1.xpose.msra.mxu0 0.0
        %1426 = vmatprep.subr.mxu0 0.0
        %1427 = vmatpush1.xpose.msra.mxu0 0.0
        %1428 = vmatprep.subr.mxu0 0.0
        %1429 = vmatpush1.xpose.msra.mxu0 0.0
        %1430 = vmatprep.subr.mxu0 0.0
        %1431 = vmatpush1.xpose.msra.mxu0 0.0
        %1432 = vmatprep.subr.mxu0 0.0
        %1433 = vmatpush1.xpose.msra.mxu0 0.0
        %1434 = vmatprep.subr.mxu0 0.0
        %1435 = vmatpush1.xpose.msra.mxu0 0.0
        %1436 = vmatprep.subr.mxu0 0.0
        %1437 = vmatpush1.xpose.msra.mxu0 0.0
        %1438 = vmatprep.subr.mxu0 0.0
        %1439 = vmatpush1.xpose.msra.mxu0 0.0
        %1440 = vmatprep.subr.mxu0 0.0
        %1441 = vmatpush1.xpose.msra.mxu0 0.0
        %1442 = vmatprep.subr.mxu0 0.0
        %1443 = vmatpush1.xpose.msra.mxu0 %v1410
        %1444 = vmatprep.subr.mxu0 0.0
        %1445 = vmatpush2.xpose.msra.mxu0 0.0
        %1446 = vmatprep.subr.mxu0 0.0
        %1447 = vmatpush2.xpose.msra.mxu0 0.0
        %1448 = vmatprep.subr.mxu0 0.0
        %1449 = vmatpush2.xpose.msra.mxu0 0.0
        %1450 = vmatprep.subr.mxu0 0.0
        %1451 = vmatpush2.xpose.msra.mxu0 0.0
        %1452 = vmatprep.subr.mxu0 0.0
        %1453 = vmatpush2.xpose.msra.mxu0 0.0
        %1454 = vmatprep.subr.mxu0 0.0
        %1455 = vmatpush2.xpose.msra.mxu0 0.0
        %1456 = vmatprep.subr.mxu0 0.0
        %1457 = vmatpush2.xpose.msra.mxu0 0.0
        %1458 = vmatprep.subr.mxu0 0.0
        %1459 = vmatpush2.xpose.msra.mxu0 0.0
        %1460 = vmatprep.subr.mxu0 0.0
        %1461 = vmatpush2.xpose.msra.mxu0 0.0
        %1462 = vmatprep.subr.mxu0 0.0
        %1463 = vmatpush2.xpose.msra.mxu0 0.0
        %1464 = vmatprep.subr.mxu0 0.0
        %1465 = vmatpush2.xpose.msra.mxu0 0.0
        %1466 = vmatprep.subr.mxu0 0.0
        %1467 = vmatpush2.xpose.msra.mxu0 0.0
        %1468 = vmatprep.subr.mxu0 0.0
        %1469 = vmatpush2.xpose.msra.mxu0 0.0
        %1470 = vmatprep.subr.mxu0 0.0
        %1471 = vmatpush2.xpose.msra.mxu0 0.0
        %1472 = vmatprep.subr.mxu0 0.0
        %1473 = vmatpush2.xpose.msra.mxu0 0.0
        %1474 = vmatprep.subr.mxu0 0.0
        %1475 = vmatpush2.xpose.msra.mxu0 0.0
        %1476 = vmatprep.mubr.f32.mxu0 0.0
        %1477 = vmatmul.mubr.f32.gmra.mxu0 %v1407
        %v1478 = vpop.f32.mrf.mxu0
        %v1479 = vadd.f32 0.0, %v1478
        %v1480 = vpop.f32.mrf.mxu0
        %1481 = vdwg.mxu0
        %v1482 = vmul.f32 %v1479, 0.05103104
        %v1483 = vadd.f32 %v1482, %v1404
        %vm1484 = vcmask 64512
        %v1485 = vsel %vm1484, %v1483, -inf
        %1486 = vmax.xlane.f32.xlu0 %v1485
        %v1487 = vpop.xlane.xlu0 %1486
        %v1488 = vsub.f32 %v1483, %v1487
        %v1489 = vmul.f32 %v1488, 1.442695
        %v1490 = vpow.pop %v1489
        %v1491 = vsel %vm1484, %v1490, 0.0
        %1492 = vadd.xlane.f32.xlu0 %v1491
        %v1493 = vpop.xlane.xlu0 %1492
        %v1495 = vsel %vm1484, %v1490, 0
        %1497 = vmatprep.subr.mxu0 0.0
        %1498 = vmatpush1.msra.mxu0 0.0
        %1499 = vmatprep.subr.mxu0 0.0
        %1500 = vmatpush1.msra.mxu0 0.0
        %1501 = vmatprep.subr.mxu0 0.0
        %1502 = vmatpush1.msra.mxu0 0.0
        %1503 = vmatprep.subr.mxu0 0.0
        %1504 = vmatpush1.msra.mxu0 0.0
        %1505 = vmatprep.subr.mxu0 0.0
        %1506 = vmatpush1.msra.mxu0 0.0
        %1507 = vmatprep.subr.mxu0 0.0
        %1508 = vmatpush1.msra.mxu0 0.0
        %1509 = vmatprep.subr.mxu0 0.0
        %1510 = vmatpush1.msra.mxu0 0.0
        %1511 = vmatprep.subr.mxu0 0.0
        %1512 = vmatpush1.msra.mxu0 0.0
        %1513 = vmatprep.subr.mxu0 0.0
        %1514 = vmatpush1.msra.mxu0 0.0
        %1515 = vmatprep.subr.mxu0 0.0
        %1516 = vmatpush1.msra.mxu0 0.0
        %1517 = vmatprep.subr.mxu0 0.0
        %1518 = vmatpush1.msra.mxu0 0.0
        %1519 = vmatprep.subr.mxu0 0.0
        %1520 = vmatpush1.msra.mxu0 0.0
        %1521 = vmatprep.subr.mxu0 0.0
        %1522 = vmatpush1.msra.mxu0 0.0
        %1523 = vmatprep.subr.mxu0 0.0
        %1524 = vmatpush1.msra.mxu0 0.0
        %1525 = vmatprep.subr.mxu0 0.0
        %1526 = vmatpush1.msra.mxu0 0.0
        %1527 = vmatprep.subr.mxu0 0.0
        %1528 = vmatpush1.msra.mxu0 %v1255
        %1529 = vmatprep.subr.mxu0 0.0
        %1530 = vmatpush2.msra.mxu0 0.0
        %1531 = vmatprep.subr.mxu0 0.0
        %1532 = vmatpush2.msra.mxu0 0.0
        %1533 = vmatprep.subr.mxu0 0.0
        %1534 = vmatpush2.msra.mxu0 0.0
        %1535 = vmatprep.subr.mxu0 0.0
        %1536 = vmatpush2.msra.mxu0 0.0
        %1537 = vmatprep.subr.mxu0 0.0
        %1538 = vmatpush2.msra.mxu0 0.0
        %1539 = vmatprep.subr.mxu0 0.0
        %1540 = vmatpush2.msra.mxu0 0.0
        %1541 = vmatprep.subr.mxu0 0.0
        %1542 = vmatpush2.msra.mxu0 0.0
        %1543 = vmatprep.subr.mxu0 0.0
        %1544 = vmatpush2.msra.mxu0 0.0
        %1545 = vmatprep.subr.mxu0 0.0
        %1546 = vmatpush2.msra.mxu0 0.0
        %1547 = vmatprep.subr.mxu0 0.0
        %1548 = vmatpush2.msra.mxu0 0.0
        %1549 = vmatprep.subr.mxu0 0.0
        %1550 = vmatpush2.msra.mxu0 0.0
        %1551 = vmatprep.subr.mxu0 0.0
        %1552 = vmatpush2.msra.mxu0 0.0
        %1553 = vmatprep.subr.mxu0 0.0
        %1554 = vmatpush2.msra.mxu0 0.0
        %1555 = vmatprep.subr.mxu0 0.0
        %1556 = vmatpush2.msra.mxu0 0.0
        %1557 = vmatprep.subr.mxu0 0.0
        %1558 = vmatpush2.msra.mxu0 0.0
        %1559 = vmatprep.subr.mxu0 0.0
        %1560 = vmatpush2.msra.mxu0 0.0
        %1561 = vmatprep.mubr.f32.mxu0 0.0
        %1562 = vmatmul.mubr.f32.gmra.mxu0 %v1495
        %v1563 = vpop.f32.mrf.mxu0
        %v1564 = vadd.f32 0.0, %v1563
        %v1565 = vpop.f32.mrf.mxu0
        %1566 = vdwg.mxu0
        %v1567 = vrcp.pop %v1493
        %v1568 = vmul.f32 %v1564, %v1567
        %1569 = vrot.lane.b32.xlu0 %v829, 64
        %v1570 = vpop.permute.xlu0 %1569
        %1571 = vrot.lane.b32.xlu0 %v973, 64
        %v1572 = vpop.permute.xlu0 %1571
        %v1573 = vsel %vm1405, %v1570, 0
        %v1575 = vsel %vm1405, %v1572, 0
        %1577 = vmatprep.subr.mxu0 0.0
        %1578 = vmatpush1.xpose.msra.mxu0 0.0
        %1579 = vmatprep.subr.mxu0 0.0
        %1580 = vmatpush1.xpose.msra.mxu0 0.0
        %1581 = vmatprep.subr.mxu0 0.0
        %1582 = vmatpush1.xpose.msra.mxu0 0.0
        %1583 = vmatprep.subr.mxu0 0.0
        %1584 = vmatpush1.xpose.msra.mxu0 0.0
        %1585 = vmatprep.subr.mxu0 0.0
        %1586 = vmatpush1.xpose.msra.mxu0 0.0
        %1587 = vmatprep.subr.mxu0 0.0
        %1588 = vmatpush1.xpose.msra.mxu0 0.0
        %1589 = vmatprep.subr.mxu0 0.0
        %1590 = vmatpush1.xpose.msra.mxu0 0.0
        %1591 = vmatprep.subr.mxu0 0.0
        %1592 = vmatpush1.xpose.msra.mxu0 0.0
        %1593 = vmatprep.subr.mxu0 0.0
        %1594 = vmatpush1.xpose.msra.mxu0 0.0
        %1595 = vmatprep.subr.mxu0 0.0
        %1596 = vmatpush1.xpose.msra.mxu0 0.0
        %1597 = vmatprep.subr.mxu0 0.0
        %1598 = vmatpush1.xpose.msra.mxu0 0.0
        %1599 = vmatprep.subr.mxu0 0.0
        %1600 = vmatpush1.xpose.msra.mxu0 0.0
        %1601 = vmatprep.subr.mxu0 0.0
        %1602 = vmatpush1.xpose.msra.mxu0 0.0
        %1603 = vmatprep.subr.mxu0 0.0
        %1604 = vmatpush1.xpose.msra.mxu0 0.0
        %1605 = vmatprep.subr.mxu0 0.0
        %1606 = vmatpush1.xpose.msra.mxu0 0.0
        %1607 = vmatprep.subr.mxu0 0.0
        %1608 = vmatpush1.xpose.msra.mxu0 %v1575
        %1609 = vmatprep.subr.mxu0 0.0
        %1610 = vmatpush2.xpose.msra.mxu0 0.0
        %1611 = vmatprep.subr.mxu0 0.0
        %1612 = vmatpush2.xpose.msra.mxu0 0.0
        %1613 = vmatprep.subr.mxu0 0.0
        %1614 = vmatpush2.xpose.msra.mxu0 0.0
        %1615 = vmatprep.subr.mxu0 0.0
        %1616 = vmatpush2.xpose.msra.mxu0 0.0
        %1617 = vmatprep.subr.mxu0 0.0
        %1618 = vmatpush2.xpose.msra.mxu0 0.0
        %1619 = vmatprep.subr.mxu0 0.0
        %1620 = vmatpush2.xpose.msra.mxu0 0.0
        %1621 = vmatprep.subr.mxu0 0.0
        %1622 = vmatpush2.xpose.msra.mxu0 0.0
        %1623 = vmatprep.subr.mxu0 0.0
        %1624 = vmatpush2.xpose.msra.mxu0 0.0
        %1625 = vmatprep.subr.mxu0 0.0
        %1626 = vmatpush2.xpose.msra.mxu0 0.0
        %1627 = vmatprep.subr.mxu0 0.0
        %1628 = vmatpush2.xpose.msra.mxu0 0.0
        %1629 = vmatprep.subr.mxu0 0.0
        %1630 = vmatpush2.xpose.msra.mxu0 0.0
        %1631 = vmatprep.subr.mxu0 0.0
        %1632 = vmatpush2.xpose.msra.mxu0 0.0
        %1633 = vmatprep.subr.mxu0 0.0
        %1634 = vmatpush2.xpose.msra.mxu0 0.0
        %1635 = vmatprep.subr.mxu0 0.0
        %1636 = vmatpush2.xpose.msra.mxu0 0.0
        %1637 = vmatprep.subr.mxu0 0.0
        %1638 = vmatpush2.xpose.msra.mxu0 0.0
        %1639 = vmatprep.subr.mxu0 0.0
        %1640 = vmatpush2.xpose.msra.mxu0 0.0
        %1641 = vmatprep.mubr.f32.mxu0 0.0
        %1642 = vmatmul.mubr.f32.gmra.mxu0 %v1573
        %v1643 = vpop.f32.mrf.mxu0
        %v1644 = vadd.f32 0.0, %v1643
        %v1645 = vpop.f32.mrf.mxu0
        %1646 = vdwg.mxu0
        %v1647 = vmul.f32 %v1644, 0.05103104
        %v1648 = vadd.f32 %v1647, %v1404
        %v1649 = vsel %vm1484, %v1648, -inf
        %1650 = vmax.xlane.f32.xlu0 %v1649
        %v1651 = vpop.xlane.xlu0 %1650
        %v1652 = vsub.f32 %v1648, %v1651
        %v1653 = vmul.f32 %v1652, 1.442695
        %v1654 = vpow.pop %v1653
        %v1655 = vsel %vm1484, %v1654, 0.0
        %1656 = vadd.xlane.f32.xlu0 %v1655
        %v1657 = vpop.xlane.xlu0 %1656
        %1659 = vrot.lane.b32.xlu0 %v1255, 64
        %v1660 = vpop.permute.xlu0 %1659
        %v1663 = vsel %vm1484, %v1654, 0
        %1665 = vmatprep.subr.mxu0 0.0
        %1666 = vmatpush1.msra.mxu0 0.0
        %1667 = vmatprep.subr.mxu0 0.0
        %1668 = vmatpush1.msra.mxu0 0.0
        %1669 = vmatprep.subr.mxu0 0.0
        %1670 = vmatpush1.msra.mxu0 0.0
        %1671 = vmatprep.subr.mxu0 0.0
        %1672 = vmatpush1.msra.mxu0 0.0
        %1673 = vmatprep.subr.mxu0 0.0
        %1674 = vmatpush1.msra.mxu0 0.0
        %1675 = vmatprep.subr.mxu0 0.0
        %1676 = vmatpush1.msra.mxu0 0.0
        %1677 = vmatprep.subr.mxu0 0.0
        %1678 = vmatpush1.msra.mxu0 0.0
        %1679 = vmatprep.subr.mxu0 0.0
        %1680 = vmatpush1.msra.mxu0 0.0
        %1681 = vmatprep.subr.mxu0 0.0
        %1682 = vmatpush1.msra.mxu0 0.0
        %1683 = vmatprep.subr.mxu0 0.0
        %1684 = vmatpush1.msra.mxu0 0.0
        %1685 = vmatprep.subr.mxu0 0.0
        %1686 = vmatpush1.msra.mxu0 0.0
        %1687 = vmatprep.subr.mxu0 0.0
        %1688 = vmatpush1.msra.mxu0 0.0
        %1689 = vmatprep.subr.mxu0 0.0
        %1690 = vmatpush1.msra.mxu0 0.0
        %1691 = vmatprep.subr.mxu0 0.0
        %1692 = vmatpush1.msra.mxu0 0.0
        %1693 = vmatprep.subr.mxu0 0.0
        %1694 = vmatpush1.msra.mxu0 0.0
        %1695 = vmatprep.subr.mxu0 0.0
        %1696 = vmatpush1.msra.mxu0 %v1660
        %1697 = vmatprep.subr.mxu0 0.0
        %1698 = vmatpush2.msra.mxu0 0.0
        %1699 = vmatprep.subr.mxu0 0.0
        %1700 = vmatpush2.msra.mxu0 0.0
        %1701 = vmatprep.subr.mxu0 0.0
        %1702 = vmatpush2.msra.mxu0 0.0
        %1703 = vmatprep.subr.mxu0 0.0
        %1704 = vmatpush2.msra.mxu0 0.0
        %1705 = vmatprep.subr.mxu0 0.0
        %1706 = vmatpush2.msra.mxu0 0.0
        %1707 = vmatprep.subr.mxu0 0.0
        %1708 = vmatpush2.msra.mxu0 0.0
        %1709 = vmatprep.subr.mxu0 0.0
        %1710 = vmatpush2.msra.mxu0 0.0
        %1711 = vmatprep.subr.mxu0 0.0
        %1712 = vmatpush2.msra.mxu0 0.0
        %1713 = vmatprep.subr.mxu0 0.0
        %1714 = vmatpush2.msra.mxu0 0.0
        %1715 = vmatprep.subr.mxu0 0.0
        %1716 = vmatpush2.msra.mxu0 0.0
        %1717 = vmatprep.subr.mxu0 0.0
        %1718 = vmatpush2.msra.mxu0 0.0
        %1719 = vmatprep.subr.mxu0 0.0
        %1720 = vmatpush2.msra.mxu0 0.0
        %1721 = vmatprep.subr.mxu0 0.0
        %1722 = vmatpush2.msra.mxu0 0.0
        %1723 = vmatprep.subr.mxu0 0.0
        %1724 = vmatpush2.msra.mxu0 0.0
        %1725 = vmatprep.subr.mxu0 0.0
        %1726 = vmatpush2.msra.mxu0 0.0
        %1727 = vmatprep.subr.mxu0 0.0
        %1728 = vmatpush2.msra.mxu0 0.0
        %1729 = vmatprep.mubr.f32.mxu0 0.0
        %1730 = vmatmul.mubr.f32.gmra.mxu0 %v1663
        %v1731 = vpop.f32.mrf.mxu0
        %v1732 = vadd.f32 0.0, %v1731
        %v1733 = vpop.f32.mrf.mxu0
        %1734 = vdwg.mxu0
        %v1735 = vrcp.pop %v1657
        %v1736 = vmul.f32 %v1732, %v1735
        %v1738 = vsel %vm1405, %v831, 0
        %v1741 = vsel %vm1405, %v1113, 0
        %1743 = vmatprep.subr.mxu0 0.0
        %1744 = vmatpush1.xpose.msra.mxu0 0.0
        %1745 = vmatprep.subr.mxu0 0.0
        %1746 = vmatpush1.xpose.msra.mxu0 0.0
        %1747 = vmatprep.subr.mxu0 0.0
        %1748 = vmatpush1.xpose.msra.mxu0 0.0
        %1749 = vmatprep.subr.mxu0 0.0
        %1750 = vmatpush1.xpose.msra.mxu0 0.0
        %1751 = vmatprep.subr.mxu0 0.0
        %1752 = vmatpush1.xpose.msra.mxu0 0.0
        %1753 = vmatprep.subr.mxu0 0.0
        %1754 = vmatpush1.xpose.msra.mxu0 0.0
        %1755 = vmatprep.subr.mxu0 0.0
        %1756 = vmatpush1.xpose.msra.mxu0 0.0
        %1757 = vmatprep.subr.mxu0 0.0
        %1758 = vmatpush1.xpose.msra.mxu0 0.0
        %1759 = vmatprep.subr.mxu0 0.0
        %1760 = vmatpush1.xpose.msra.mxu0 0.0
        %1761 = vmatprep.subr.mxu0 0.0
        %1762 = vmatpush1.xpose.msra.mxu0 0.0
        %1763 = vmatprep.subr.mxu0 0.0
        %1764 = vmatpush1.xpose.msra.mxu0 0.0
        %1765 = vmatprep.subr.mxu0 0.0
        %1766 = vmatpush1.xpose.msra.mxu0 0.0
        %1767 = vmatprep.subr.mxu0 0.0
        %1768 = vmatpush1.xpose.msra.mxu0 0.0
        %1769 = vmatprep.subr.mxu0 0.0
        %1770 = vmatpush1.xpose.msra.mxu0 0.0
        %1771 = vmatprep.subr.mxu0 0.0
        %1772 = vmatpush1.xpose.msra.mxu0 0.0
        %1773 = vmatprep.subr.mxu0 0.0
        %1774 = vmatpush1.xpose.msra.mxu0 %v1741
        %1775 = vmatprep.subr.mxu0 0.0
        %1776 = vmatpush2.xpose.msra.mxu0 0.0
        %1777 = vmatprep.subr.mxu0 0.0
        %1778 = vmatpush2.xpose.msra.mxu0 0.0
        %1779 = vmatprep.subr.mxu0 0.0
        %1780 = vmatpush2.xpose.msra.mxu0 0.0
        %1781 = vmatprep.subr.mxu0 0.0
        %1782 = vmatpush2.xpose.msra.mxu0 0.0
        %1783 = vmatprep.subr.mxu0 0.0
        %1784 = vmatpush2.xpose.msra.mxu0 0.0
        %1785 = vmatprep.subr.mxu0 0.0
        %1786 = vmatpush2.xpose.msra.mxu0 0.0
        %1787 = vmatprep.subr.mxu0 0.0
        %1788 = vmatpush2.xpose.msra.mxu0 0.0
        %1789 = vmatprep.subr.mxu0 0.0
        %1790 = vmatpush2.xpose.msra.mxu0 0.0
        %1791 = vmatprep.subr.mxu0 0.0
        %1792 = vmatpush2.xpose.msra.mxu0 0.0
        %1793 = vmatprep.subr.mxu0 0.0
        %1794 = vmatpush2.xpose.msra.mxu0 0.0
        %1795 = vmatprep.subr.mxu0 0.0
        %1796 = vmatpush2.xpose.msra.mxu0 0.0
        %1797 = vmatprep.subr.mxu0 0.0
        %1798 = vmatpush2.xpose.msra.mxu0 0.0
        %1799 = vmatprep.subr.mxu0 0.0
        %1800 = vmatpush2.xpose.msra.mxu0 0.0
        %1801 = vmatprep.subr.mxu0 0.0
        %1802 = vmatpush2.xpose.msra.mxu0 0.0
        %1803 = vmatprep.subr.mxu0 0.0
        %1804 = vmatpush2.xpose.msra.mxu0 0.0
        %1805 = vmatprep.subr.mxu0 0.0
        %1806 = vmatpush2.xpose.msra.mxu0 0.0
        %1807 = vmatprep.mubr.f32.mxu0 0.0
        %1808 = vmatmul.mubr.f32.gmra.mxu0 %v1738
        %v1809 = vpop.f32.mrf.mxu0
        %v1810 = vadd.f32 0.0, %v1809
        %v1811 = vpop.f32.mrf.mxu0
        %1812 = vdwg.mxu0
        %v1813 = vmul.f32 %v1810, 0.05103104
        %v1814 = vadd.f32 %v1813, %v1404
        %v1815 = vsel %vm1484, %v1814, -inf
        %1816 = vmax.xlane.f32.xlu0 %v1815
        %v1817 = vpop.xlane.xlu0 %1816
        %v1818 = vsub.f32 %v1814, %v1817
        %v1819 = vmul.f32 %v1818, 1.442695
        %v1820 = vpow.pop %v1819
        %v1821 = vsel %vm1484, %v1820, 0.0
        %1822 = vadd.xlane.f32.xlu0 %v1821
        %v1823 = vpop.xlane.xlu0 %1822
        %v1825 = vsel %vm1484, %v1820, 0
        %1827 = vmatprep.subr.mxu0 0.0
        %1828 = vmatpush1.msra.mxu0 0.0
        %1829 = vmatprep.subr.mxu0 0.0
        %1830 = vmatpush1.msra.mxu0 0.0
        %1831 = vmatprep.subr.mxu0 0.0
        %1832 = vmatpush1.msra.mxu0 0.0
        %1833 = vmatprep.subr.mxu0 0.0
        %1834 = vmatpush1.msra.mxu0 0.0
        %1835 = vmatprep.subr.mxu0 0.0
        %1836 = vmatpush1.msra.mxu0 0.0
        %1837 = vmatprep.subr.mxu0 0.0
        %1838 = vmatpush1.msra.mxu0 0.0
        %1839 = vmatprep.subr.mxu0 0.0
        %1840 = vmatpush1.msra.mxu0 0.0
        %1841 = vmatprep.subr.mxu0 0.0
        %1842 = vmatpush1.msra.mxu0 0.0
        %1843 = vmatprep.subr.mxu0 0.0
        %1844 = vmatpush1.msra.mxu0 0.0
        %1845 = vmatprep.subr.mxu0 0.0
        %1846 = vmatpush1.msra.mxu0 0.0
        %1847 = vmatprep.subr.mxu0 0.0
        %1848 = vmatpush1.msra.mxu0 0.0
        %1849 = vmatprep.subr.mxu0 0.0
        %1850 = vmatpush1.msra.mxu0 0.0
        %1851 = vmatprep.subr.mxu0 0.0
        %1852 = vmatpush1.msra.mxu0 0.0
        %1853 = vmatprep.subr.mxu0 0.0
        %1854 = vmatpush1.msra.mxu0 0.0
        %1855 = vmatprep.subr.mxu0 0.0
        %1856 = vmatpush1.msra.mxu0 0.0
        %1857 = vmatprep.subr.mxu0 0.0
        %1858 = vmatpush1.msra.mxu0 %v1257
        %1859 = vmatprep.subr.mxu0 0.0
        %1860 = vmatpush2.msra.mxu0 0.0
        %1861 = vmatprep.subr.mxu0 0.0
        %1862 = vmatpush2.msra.mxu0 0.0
        %1863 = vmatprep.subr.mxu0 0.0
        %1864 = vmatpush2.msra.mxu0 0.0
        %1865 = vmatprep.subr.mxu0 0.0
        %1866 = vmatpush2.msra.mxu0 0.0
        %1867 = vmatprep.subr.mxu0 0.0
        %1868 = vmatpush2.msra.mxu0 0.0
        %1869 = vmatprep.subr.mxu0 0.0
        %1870 = vmatpush2.msra.mxu0 0.0
        %1871 = vmatprep.subr.mxu0 0.0
        %1872 = vmatpush2.msra.mxu0 0.0
        %1873 = vmatprep.subr.mxu0 0.0
        %1874 = vmatpush2.msra.mxu0 0.0
        %1875 = vmatprep.subr.mxu0 0.0
        %1876 = vmatpush2.msra.mxu0 0.0
        %1877 = vmatprep.subr.mxu0 0.0
        %1878 = vmatpush2.msra.mxu0 0.0
        %1879 = vmatprep.subr.mxu0 0.0
        %1880 = vmatpush2.msra.mxu0 0.0
        %1881 = vmatprep.subr.mxu0 0.0
        %1882 = vmatpush2.msra.mxu0 0.0
        %1883 = vmatprep.subr.mxu0 0.0
        %1884 = vmatpush2.msra.mxu0 0.0
        %1885 = vmatprep.subr.mxu0 0.0
        %1886 = vmatpush2.msra.mxu0 0.0
        %1887 = vmatprep.subr.mxu0 0.0
        %1888 = vmatpush2.msra.mxu0 0.0
        %1889 = vmatprep.subr.mxu0 0.0
        %1890 = vmatpush2.msra.mxu0 0.0
        %1891 = vmatprep.mubr.f32.mxu0 0.0
        %1892 = vmatmul.mubr.f32.gmra.mxu0 %v1825
        %v1893 = vpop.f32.mrf.mxu0
        %v1894 = vadd.f32 0.0, %v1893
        %v1895 = vpop.f32.mrf.mxu0
        %1896 = vdwg.mxu0
        %v1897 = vrcp.pop %v1823
        %v1898 = vmul.f32 %v1894, %v1897
        %1899 = vrot.lane.b32.xlu0 %v831, 64
        %v1900 = vpop.permute.xlu0 %1899
        %1901 = vrot.lane.b32.xlu0 %v1113, 64
        %v1902 = vpop.permute.xlu0 %1901
        %v1903 = vsel %vm1405, %v1900, 0
        %v1905 = vsel %vm1405, %v1902, 0
        %1907 = vmatprep.subr.mxu0 0.0
        %1908 = vmatpush1.xpose.msra.mxu0 0.0
        %1909 = vmatprep.subr.mxu0 0.0
        %1910 = vmatpush1.xpose.msra.mxu0 0.0
        %1911 = vmatprep.subr.mxu0 0.0
        %1912 = vmatpush1.xpose.msra.mxu0 0.0
        %1913 = vmatprep.subr.mxu0 0.0
        %1914 = vmatpush1.xpose.msra.mxu0 0.0
        %1915 = vmatprep.subr.mxu0 0.0
        %1916 = vmatpush1.xpose.msra.mxu0 0.0
        %1917 = vmatprep.subr.mxu0 0.0
        %1918 = vmatpush1.xpose.msra.mxu0 0.0
        %1919 = vmatprep.subr.mxu0 0.0
        %1920 = vmatpush1.xpose.msra.mxu0 0.0
        %1921 = vmatprep.subr.mxu0 0.0
        %1922 = vmatpush1.xpose.msra.mxu0 0.0
        %1923 = vmatprep.subr.mxu0 0.0
        %1924 = vmatpush1.xpose.msra.mxu0 0.0
        %1925 = vmatprep.subr.mxu0 0.0
        %1926 = vmatpush1.xpose.msra.mxu0 0.0
        %1927 = vmatprep.subr.mxu0 0.0
        %1928 = vmatpush1.xpose.msra.mxu0 0.0
        %1929 = vmatprep.subr.mxu0 0.0
        %1930 = vmatpush1.xpose.msra.mxu0 0.0
        %1931 = vmatprep.subr.mxu0 0.0
        %1932 = vmatpush1.xpose.msra.mxu0 0.0
        %1933 = vmatprep.subr.mxu0 0.0
        %1934 = vmatpush1.xpose.msra.mxu0 0.0
        %1935 = vmatprep.subr.mxu0 0.0
        %1936 = vmatpush1.xpose.msra.mxu0 0.0
        %1937 = vmatprep.subr.mxu0 0.0
        %1938 = vmatpush1.xpose.msra.mxu0 %v1905
        %1939 = vmatprep.subr.mxu0 0.0
        %1940 = vmatpush2.xpose.msra.mxu0 0.0
        %1941 = vmatprep.subr.mxu0 0.0
        %1942 = vmatpush2.xpose.msra.mxu0 0.0
        %1943 = vmatprep.subr.mxu0 0.0
        %1944 = vmatpush2.xpose.msra.mxu0 0.0
        %1945 = vmatprep.subr.mxu0 0.0
        %1946 = vmatpush2.xpose.msra.mxu0 0.0
        %1947 = vmatprep.subr.mxu0 0.0
        %1948 = vmatpush2.xpose.msra.mxu0 0.0
        %1949 = vmatprep.subr.mxu0 0.0
        %1950 = vmatpush2.xpose.msra.mxu0 0.0
        %1951 = vmatprep.subr.mxu0 0.0
        %1952 = vmatpush2.xpose.msra.mxu0 0.0
        %1953 = vmatprep.subr.mxu0 0.0
        %1954 = vmatpush2.xpose.msra.mxu0 0.0
        %1955 = vmatprep.subr.mxu0 0.0
        %1956 = vmatpush2.xpose.msra.mxu0 0.0
        %1957 = vmatprep.subr.mxu0 0.0
        %1958 = vmatpush2.xpose.msra.mxu0 0.0
        %1959 = vmatprep.subr.mxu0 0.0
        %1960 = vmatpush2.xpose.msra.mxu0 0.0
        %1961 = vmatprep.subr.mxu0 0.0
        %1962 = vmatpush2.xpose.msra.mxu0 0.0
        %1963 = vmatprep.subr.mxu0 0.0
        %1964 = vmatpush2.xpose.msra.mxu0 0.0
        %1965 = vmatprep.subr.mxu0 0.0
        %1966 = vmatpush2.xpose.msra.mxu0 0.0
        %1967 = vmatprep.subr.mxu0 0.0
        %1968 = vmatpush2.xpose.msra.mxu0 0.0
        %1969 = vmatprep.subr.mxu0 0.0
        %1970 = vmatpush2.xpose.msra.mxu0 0.0
        %1971 = vmatprep.mubr.f32.mxu0 0.0
        %1972 = vmatmul.mubr.f32.gmra.mxu0 %v1903
        %v1973 = vpop.f32.mrf.mxu0
        %v1974 = vadd.f32 0.0, %v1973
        %v1975 = vpop.f32.mrf.mxu0
        %1976 = vdwg.mxu0
        %v1977 = vmul.f32 %v1974, 0.05103104
        %v1978 = vadd.f32 %v1977, %v1404
        %v1979 = vsel %vm1484, %v1978, -inf
        %1980 = vmax.xlane.f32.xlu0 %v1979
        %v1981 = vpop.xlane.xlu0 %1980
        %v1982 = vsub.f32 %v1978, %v1981
        %v1983 = vmul.f32 %v1982, 1.442695
        %v1984 = vpow.pop %v1983
        %v1985 = vsel %vm1484, %v1984, 0.0
        %1986 = vadd.xlane.f32.xlu0 %v1985
        %v1987 = vpop.xlane.xlu0 %1986
        %1989 = vrot.lane.b32.xlu0 %v1257, 64
        %v1990 = vpop.permute.xlu0 %1989
        %v1993 = vsel %vm1484, %v1984, 0
        %1995 = vmatprep.subr.mxu0 0.0
        %1996 = vmatpush1.msra.mxu0 0.0
        %1997 = vmatprep.subr.mxu0 0.0
        %1998 = vmatpush1.msra.mxu0 0.0
        %1999 = vmatprep.subr.mxu0 0.0
        %2000 = vmatpush1.msra.mxu0 0.0
        %2001 = vmatprep.subr.mxu0 0.0
        %2002 = vmatpush1.msra.mxu0 0.0
        %2003 = vmatprep.subr.mxu0 0.0
        %2004 = vmatpush1.msra.mxu0 0.0
        %2005 = vmatprep.subr.mxu0 0.0
        %2006 = vmatpush1.msra.mxu0 0.0
        %2007 = vmatprep.subr.mxu0 0.0
        %2008 = vmatpush1.msra.mxu0 0.0
        %2009 = vmatprep.subr.mxu0 0.0
        %2010 = vmatpush1.msra.mxu0 0.0
        %2011 = vmatprep.subr.mxu0 0.0
        %2012 = vmatpush1.msra.mxu0 0.0
        %2013 = vmatprep.subr.mxu0 0.0
        %2014 = vmatpush1.msra.mxu0 0.0
        %2015 = vmatprep.subr.mxu0 0.0
        %2016 = vmatpush1.msra.mxu0 0.0
        %2017 = vmatprep.subr.mxu0 0.0
        %2018 = vmatpush1.msra.mxu0 0.0
        %2019 = vmatprep.subr.mxu0 0.0
        %2020 = vmatpush1.msra.mxu0 0.0
        %2021 = vmatprep.subr.mxu0 0.0
        %2022 = vmatpush1.msra.mxu0 0.0
        %2023 = vmatprep.subr.mxu0 0.0
        %2024 = vmatpush1.msra.mxu0 0.0
        %2025 = vmatprep.subr.mxu0 0.0
        %2026 = vmatpush1.msra.mxu0 %v1990
        %2027 = vmatprep.subr.mxu0 0.0
        %2028 = vmatpush2.msra.mxu0 0.0
        %2029 = vmatprep.subr.mxu0 0.0
        %2030 = vmatpush2.msra.mxu0 0.0
        %2031 = vmatprep.subr.mxu0 0.0
        %2032 = vmatpush2.msra.mxu0 0.0
        %2033 = vmatprep.subr.mxu0 0.0
        %2034 = vmatpush2.msra.mxu0 0.0
        %2035 = vmatprep.subr.mxu0 0.0
        %2036 = vmatpush2.msra.mxu0 0.0
        %2037 = vmatprep.subr.mxu0 0.0
        %2038 = vmatpush2.msra.mxu0 0.0
        %2039 = vmatprep.subr.mxu0 0.0
        %2040 = vmatpush2.msra.mxu0 0.0
        %2041 = vmatprep.subr.mxu0 0.0
        %2042 = vmatpush2.msra.mxu0 0.0
        %2043 = vmatprep.subr.mxu0 0.0
        %2044 = vmatpush2.msra.mxu0 0.0
        %2045 = vmatprep.subr.mxu0 0.0
        %2046 = vmatpush2.msra.mxu0 0.0
        %2047 = vmatprep.subr.mxu0 0.0
        %2048 = vmatpush2.msra.mxu0 0.0
        %2049 = vmatprep.subr.mxu0 0.0
        %2050 = vmatpush2.msra.mxu0 0.0
        %2051 = vmatprep.subr.mxu0 0.0
        %2052 = vmatpush2.msra.mxu0 0.0
        %2053 = vmatprep.subr.mxu0 0.0
        %2054 = vmatpush2.msra.mxu0 0.0
        %2055 = vmatprep.subr.mxu0 0.0
        %2056 = vmatpush2.msra.mxu0 0.0
        %2057 = vmatprep.subr.mxu0 0.0
        %2058 = vmatpush2.msra.mxu0 0.0
        %2059 = vmatprep.mubr.f32.mxu0 0.0
        %2060 = vmatmul.mubr.f32.gmra.mxu0 %v1993
        %v2061 = vpop.f32.mrf.mxu0
        %v2062 = vadd.f32 0.0, %v2061
        %v2063 = vpop.f32.mrf.mxu0
        %2064 = vdwg.mxu0
        %v2065 = vrcp.pop %v1987
        %v2066 = vmul.f32 %v2062, %v2065
        %v2068 = vsel %vm1405, %v971, 0
        %v2071 = vsel %vm1405, %v1115, 0
        %2073 = vmatprep.subr.mxu0 0.0
        %2074 = vmatpush1.xpose.msra.mxu0 0.0
        %2075 = vmatprep.subr.mxu0 0.0
        %2076 = vmatpush1.xpose.msra.mxu0 0.0
        %2077 = vmatprep.subr.mxu0 0.0
        %2078 = vmatpush1.xpose.msra.mxu0 0.0
        %2079 = vmatprep.subr.mxu0 0.0
        %2080 = vmatpush1.xpose.msra.mxu0 0.0
        %2081 = vmatprep.subr.mxu0 0.0
        %2082 = vmatpush1.xpose.msra.mxu0 0.0
        %2083 = vmatprep.subr.mxu0 0.0
        %2084 = vmatpush1.xpose.msra.mxu0 0.0
        %2085 = vmatprep.subr.mxu0 0.0
        %2086 = vmatpush1.xpose.msra.mxu0 0.0
        %2087 = vmatprep.subr.mxu0 0.0
        %2088 = vmatpush1.xpose.msra.mxu0 0.0
        %2089 = vmatprep.subr.mxu0 0.0
        %2090 = vmatpush1.xpose.msra.mxu0 0.0
        %2091 = vmatprep.subr.mxu0 0.0
        %2092 = vmatpush1.xpose.msra.mxu0 0.0
        %2093 = vmatprep.subr.mxu0 0.0
        %2094 = vmatpush1.xpose.msra.mxu0 0.0
        %2095 = vmatprep.subr.mxu0 0.0
        %2096 = vmatpush1.xpose.msra.mxu0 0.0
        %2097 = vmatprep.subr.mxu0 0.0
        %2098 = vmatpush1.xpose.msra.mxu0 0.0
        %2099 = vmatprep.subr.mxu0 0.0
        %2100 = vmatpush1.xpose.msra.mxu0 0.0
        %2101 = vmatprep.subr.mxu0 0.0
        %2102 = vmatpush1.xpose.msra.mxu0 0.0
        %2103 = vmatprep.subr.mxu0 0.0
        %2104 = vmatpush1.xpose.msra.mxu0 %v2071
        %2105 = vmatprep.subr.mxu0 0.0
        %2106 = vmatpush2.xpose.msra.mxu0 0.0
        %2107 = vmatprep.subr.mxu0 0.0
        %2108 = vmatpush2.xpose.msra.mxu0 0.0
        %2109 = vmatprep.subr.mxu0 0.0
        %2110 = vmatpush2.xpose.msra.mxu0 0.0
        %2111 = vmatprep.subr.mxu0 0.0
        %2112 = vmatpush2.xpose.msra.mxu0 0.0
        %2113 = vmatprep.subr.mxu0 0.0
        %2114 = vmatpush2.xpose.msra.mxu0 0.0
        %2115 = vmatprep.subr.mxu0 0.0
        %2116 = vmatpush2.xpose.msra.mxu0 0.0
        %2117 = vmatprep.subr.mxu0 0.0
        %2118 = vmatpush2.xpose.msra.mxu0 0.0
        %2119 = vmatprep.subr.mxu0 0.0
        %2120 = vmatpush2.xpose.msra.mxu0 0.0
        %2121 = vmatprep.subr.mxu0 0.0
        %2122 = vmatpush2.xpose.msra.mxu0 0.0
        %2123 = vmatprep.subr.mxu0 0.0
        %2124 = vmatpush2.xpose.msra.mxu0 0.0
        %2125 = vmatprep.subr.mxu0 0.0
        %2126 = vmatpush2.xpose.msra.mxu0 0.0
        %2127 = vmatprep.subr.mxu0 0.0
        %2128 = vmatpush2.xpose.msra.mxu0 0.0
        %2129 = vmatprep.subr.mxu0 0.0
        %2130 = vmatpush2.xpose.msra.mxu0 0.0
        %2131 = vmatprep.subr.mxu0 0.0
        %2132 = vmatpush2.xpose.msra.mxu0 0.0
        %2133 = vmatprep.subr.mxu0 0.0
        %2134 = vmatpush2.xpose.msra.mxu0 0.0
        %2135 = vmatprep.subr.mxu0 0.0
        %2136 = vmatpush2.xpose.msra.mxu0 0.0
        %2137 = vmatprep.mubr.f32.mxu0 0.0
        %2138 = vmatmul.mubr.f32.gmra.mxu0 %v2068
        %v2139 = vpop.f32.mrf.mxu0
        %v2140 = vadd.f32 0.0, %v2139
        %v2141 = vpop.f32.mrf.mxu0
        %2142 = vdwg.mxu0
        %v2143 = vmul.f32 %v2140, 0.05103104
        %v2144 = vadd.f32 %v2143, %v1404
        %v2145 = vsel %vm1484, %v2144, -inf
        %2146 = vmax.xlane.f32.xlu0 %v2145
        %v2147 = vpop.xlane.xlu0 %2146
        %v2148 = vsub.f32 %v2144, %v2147
        %v2149 = vmul.f32 %v2148, 1.442695
        %v2150 = vpow.pop %v2149
        %v2151 = vsel %vm1484, %v2150, 0.0
        %2152 = vadd.xlane.f32.xlu0 %v2151
        %v2153 = vpop.xlane.xlu0 %2152
        %v2155 = vsel %vm1484, %v2150, 0
        %2157 = vmatprep.subr.mxu0 0.0
        %2158 = vmatpush1.msra.mxu0 0.0
        %2159 = vmatprep.subr.mxu0 0.0
        %2160 = vmatpush1.msra.mxu0 0.0
        %2161 = vmatprep.subr.mxu0 0.0
        %2162 = vmatpush1.msra.mxu0 0.0
        %2163 = vmatprep.subr.mxu0 0.0
        %2164 = vmatpush1.msra.mxu0 0.0
        %2165 = vmatprep.subr.mxu0 0.0
        %2166 = vmatpush1.msra.mxu0 0.0
        %2167 = vmatprep.subr.mxu0 0.0
        %2168 = vmatpush1.msra.mxu0 0.0
        %2169 = vmatprep.subr.mxu0 0.0
        %2170 = vmatpush1.msra.mxu0 0.0
        %2171 = vmatprep.subr.mxu0 0.0
        %2172 = vmatpush1.msra.mxu0 0.0
        %2173 = vmatprep.subr.mxu0 0.0
        %2174 = vmatpush1.msra.mxu0 0.0
        %2175 = vmatprep.subr.mxu0 0.0
        %2176 = vmatpush1.msra.mxu0 0.0
        %2177 = vmatprep.subr.mxu0 0.0
        %2178 = vmatpush1.msra.mxu0 0.0
        %2179 = vmatprep.subr.mxu0 0.0
        %2180 = vmatpush1.msra.mxu0 0.0
        %2181 = vmatprep.subr.mxu0 0.0
        %2182 = vmatpush1.msra.mxu0 0.0
        %2183 = vmatprep.subr.mxu0 0.0
        %2184 = vmatpush1.msra.mxu0 0.0
        %2185 = vmatprep.subr.mxu0 0.0
        %2186 = vmatpush1.msra.mxu0 0.0
        %2187 = vmatprep.subr.mxu0 0.0
        %2188 = vmatpush1.msra.mxu0 %v1396
        %2189 = vmatprep.subr.mxu0 0.0
        %2190 = vmatpush2.msra.mxu0 0.0
        %2191 = vmatprep.subr.mxu0 0.0
        %2192 = vmatpush2.msra.mxu0 0.0
        %2193 = vmatprep.subr.mxu0 0.0
        %2194 = vmatpush2.msra.mxu0 0.0
        %2195 = vmatprep.subr.mxu0 0.0
        %2196 = vmatpush2.msra.mxu0 0.0
        %2197 = vmatprep.subr.mxu0 0.0
        %2198 = vmatpush2.msra.mxu0 0.0
        %2199 = vmatprep.subr.mxu0 0.0
        %2200 = vmatpush2.msra.mxu0 0.0
        %2201 = vmatprep.subr.mxu0 0.0
        %2202 = vmatpush2.msra.mxu0 0.0
        %2203 = vmatprep.subr.mxu0 0.0
        %2204 = vmatpush2.msra.mxu0 0.0
        %2205 = vmatprep.subr.mxu0 0.0
        %2206 = vmatpush2.msra.mxu0 0.0
        %2207 = vmatprep.subr.mxu0 0.0
        %2208 = vmatpush2.msra.mxu0 0.0
        %2209 = vmatprep.subr.mxu0 0.0
        %2210 = vmatpush2.msra.mxu0 0.0
        %2211 = vmatprep.subr.mxu0 0.0
        %2212 = vmatpush2.msra.mxu0 0.0
        %2213 = vmatprep.subr.mxu0 0.0
        %2214 = vmatpush2.msra.mxu0 0.0
        %2215 = vmatprep.subr.mxu0 0.0
        %2216 = vmatpush2.msra.mxu0 0.0
        %2217 = vmatprep.subr.mxu0 0.0
        %2218 = vmatpush2.msra.mxu0 0.0
        %2219 = vmatprep.subr.mxu0 0.0
        %2220 = vmatpush2.msra.mxu0 0.0
        %2221 = vmatprep.mubr.f32.mxu0 0.0
        %2222 = vmatmul.mubr.f32.gmra.mxu0 %v2155
        %v2223 = vpop.f32.mrf.mxu0
        %v2224 = vadd.f32 0.0, %v2223
        %v2225 = vpop.f32.mrf.mxu0
        %2226 = vdwg.mxu0
        %v2227 = vrcp.pop %v2153
        %v2228 = vmul.f32 %v2224, %v2227
        %2229 = vrot.lane.b32.xlu0 %v971, 64
        %v2230 = vpop.permute.xlu0 %2229
        %2231 = vrot.lane.b32.xlu0 %v1115, 64
        %v2232 = vpop.permute.xlu0 %2231
        %v2233 = vsel %vm1405, %v2230, 0
        %v2235 = vsel %vm1405, %v2232, 0
        %2237 = vmatprep.subr.mxu0 0.0
        %2238 = vmatpush1.xpose.msra.mxu0 0.0
        %2239 = vmatprep.subr.mxu0 0.0
        %2240 = vmatpush1.xpose.msra.mxu0 0.0
        %2241 = vmatprep.subr.mxu0 0.0
        %2242 = vmatpush1.xpose.msra.mxu0 0.0
        %2243 = vmatprep.subr.mxu0 0.0
        %2244 = vmatpush1.xpose.msra.mxu0 0.0
        %2245 = vmatprep.subr.mxu0 0.0
        %2246 = vmatpush1.xpose.msra.mxu0 0.0
        %2247 = vmatprep.subr.mxu0 0.0
        %2248 = vmatpush1.xpose.msra.mxu0 0.0
        %2249 = vmatprep.subr.mxu0 0.0
        %2250 = vmatpush1.xpose.msra.mxu0 0.0
        %2251 = vmatprep.subr.mxu0 0.0
        %2252 = vmatpush1.xpose.msra.mxu0 0.0
        %2253 = vmatprep.subr.mxu0 0.0
        %2254 = vmatpush1.xpose.msra.mxu0 0.0
        %2255 = vmatprep.subr.mxu0 0.0
        %2256 = vmatpush1.xpose.msra.mxu0 0.0
        %2257 = vmatprep.subr.mxu0 0.0
        %2258 = vmatpush1.xpose.msra.mxu0 0.0
        %2259 = vmatprep.subr.mxu0 0.0
        %2260 = vmatpush1.xpose.msra.mxu0 0.0
        %2261 = vmatprep.subr.mxu0 0.0
        %2262 = vmatpush1.xpose.msra.mxu0 0.0
        %2263 = vmatprep.subr.mxu0 0.0
        %2264 = vmatpush1.xpose.msra.mxu0 0.0
        %2265 = vmatprep.subr.mxu0 0.0
        %2266 = vmatpush1.xpose.msra.mxu0 0.0
        %2267 = vmatprep.subr.mxu0 0.0
        %2268 = vmatpush1.xpose.msra.mxu0 %v2235
        %2269 = vmatprep.subr.mxu0 0.0
        %2270 = vmatpush2.xpose.msra.mxu0 0.0
        %2271 = vmatprep.subr.mxu0 0.0
        %2272 = vmatpush2.xpose.msra.mxu0 0.0
        %2273 = vmatprep.subr.mxu0 0.0
        %2274 = vmatpush2.xpose.msra.mxu0 0.0
        %2275 = vmatprep.subr.mxu0 0.0
        %2276 = vmatpush2.xpose.msra.mxu0 0.0
        %2277 = vmatprep.subr.mxu0 0.0
        %2278 = vmatpush2.xpose.msra.mxu0 0.0
        %2279 = vmatprep.subr.mxu0 0.0
        %2280 = vmatpush2.xpose.msra.mxu0 0.0
        %2281 = vmatprep.subr.mxu0 0.0
        %2282 = vmatpush2.xpose.msra.mxu0 0.0
        %2283 = vmatprep.subr.mxu0 0.0
        %2284 = vmatpush2.xpose.msra.mxu0 0.0
        %2285 = vmatprep.subr.mxu0 0.0
        %2286 = vmatpush2.xpose.msra.mxu0 0.0
        %2287 = vmatprep.subr.mxu0 0.0
        %2288 = vmatpush2.xpose.msra.mxu0 0.0
        %2289 = vmatprep.subr.mxu0 0.0
        %2290 = vmatpush2.xpose.msra.mxu0 0.0
        %2291 = vmatprep.subr.mxu0 0.0
        %2292 = vmatpush2.xpose.msra.mxu0 0.0
        %2293 = vmatprep.subr.mxu0 0.0
        %2294 = vmatpush2.xpose.msra.mxu0 0.0
        %2295 = vmatprep.subr.mxu0 0.0
        %2296 = vmatpush2.xpose.msra.mxu0 0.0
        %2297 = vmatprep.subr.mxu0 0.0
        %2298 = vmatpush2.xpose.msra.mxu0 0.0
        %2299 = vmatprep.subr.mxu0 0.0
        %2300 = vmatpush2.xpose.msra.mxu0 0.0
        %2301 = vmatprep.mubr.f32.mxu0 0.0
        %2302 = vmatmul.mubr.f32.gmra.mxu0 %v2233
        %v2303 = vpop.f32.mrf.mxu0
        %v2304 = vadd.f32 0.0, %v2303
        %v2305 = vpop.f32.mrf.mxu0
        %2306 = vdwg.mxu0
        %v2307 = vmul.f32 %v2304, 0.05103104
        %v2308 = vadd.f32 %v2307, %v1404
        %v2309 = vsel %vm1484, %v2308, -inf
        %2310 = vmax.xlane.f32.xlu0 %v2309
        %v2311 = vpop.xlane.xlu0 %2310
        %v2312 = vsub.f32 %v2308, %v2311
        %v2313 = vmul.f32 %v2312, 1.442695
        %v2314 = vpow.pop %v2313
        %v2315 = vsel %vm1484, %v2314, 0.0
        %2316 = vadd.xlane.f32.xlu0 %v2315
        %v2317 = vpop.xlane.xlu0 %2316
        %2319 = vrot.lane.b32.xlu0 %v1396, 64
        %v2320 = vpop.permute.xlu0 %2319
        %v2323 = vsel %vm1484, %v2314, 0
        %2325 = vmatprep.subr.mxu0 0.0
        %2326 = vmatpush1.msra.mxu0 0.0
        %2327 = vmatprep.subr.mxu0 0.0
        %2328 = vmatpush1.msra.mxu0 0.0
        %2329 = vmatprep.subr.mxu0 0.0
        %2330 = vmatpush1.msra.mxu0 0.0
        %2331 = vmatprep.subr.mxu0 0.0
        %2332 = vmatpush1.msra.mxu0 0.0
        %2333 = vmatprep.subr.mxu0 0.0
        %2334 = vmatpush1.msra.mxu0 0.0
        %2335 = vmatprep.subr.mxu0 0.0
        %2336 = vmatpush1.msra.mxu0 0.0
        %2337 = vmatprep.subr.mxu0 0.0
        %2338 = vmatpush1.msra.mxu0 0.0
        %2339 = vmatprep.subr.mxu0 0.0
        %2340 = vmatpush1.msra.mxu0 0.0
        %2341 = vmatprep.subr.mxu0 0.0
        %2342 = vmatpush1.msra.mxu0 0.0
        %2343 = vmatprep.subr.mxu0 0.0
        %2344 = vmatpush1.msra.mxu0 0.0
        %2345 = vmatprep.subr.mxu0 0.0
        %2346 = vmatpush1.msra.mxu0 0.0
        %2347 = vmatprep.subr.mxu0 0.0
        %2348 = vmatpush1.msra.mxu0 0.0
        %2349 = vmatprep.subr.mxu0 0.0
        %2350 = vmatpush1.msra.mxu0 0.0
        %2351 = vmatprep.subr.mxu0 0.0
        %2352 = vmatpush1.msra.mxu0 0.0
        %2353 = vmatprep.subr.mxu0 0.0
        %2354 = vmatpush1.msra.mxu0 0.0
        %2355 = vmatprep.subr.mxu0 0.0
        %2356 = vmatpush1.msra.mxu0 %v2320
        %2357 = vmatprep.subr.mxu0 0.0
        %2358 = vmatpush2.msra.mxu0 0.0
        %2359 = vmatprep.subr.mxu0 0.0
        %2360 = vmatpush2.msra.mxu0 0.0
        %2361 = vmatprep.subr.mxu0 0.0
        %2362 = vmatpush2.msra.mxu0 0.0
        %2363 = vmatprep.subr.mxu0 0.0
        %2364 = vmatpush2.msra.mxu0 0.0
        %2365 = vmatprep.subr.mxu0 0.0
        %2366 = vmatpush2.msra.mxu0 0.0
        %2367 = vmatprep.subr.mxu0 0.0
        %2368 = vmatpush2.msra.mxu0 0.0
        %2369 = vmatprep.subr.mxu0 0.0
        %2370 = vmatpush2.msra.mxu0 0.0
        %2371 = vmatprep.subr.mxu0 0.0
        %2372 = vmatpush2.msra.mxu0 0.0
        %2373 = vmatprep.subr.mxu0 0.0
        %2374 = vmatpush2.msra.mxu0 0.0
        %2375 = vmatprep.subr.mxu0 0.0
        %2376 = vmatpush2.msra.mxu0 0.0
        %2377 = vmatprep.subr.mxu0 0.0
        %2378 = vmatpush2.msra.mxu0 0.0
        %2379 = vmatprep.subr.mxu0 0.0
        %2380 = vmatpush2.msra.mxu0 0.0
        %2381 = vmatprep.subr.mxu0 0.0
        %2382 = vmatpush2.msra.mxu0 0.0
        %2383 = vmatprep.subr.mxu0 0.0
        %2384 = vmatpush2.msra.mxu0 0.0
        %2385 = vmatprep.subr.mxu0 0.0
        %2386 = vmatpush2.msra.mxu0 0.0
        %2387 = vmatprep.subr.mxu0 0.0
        %2388 = vmatpush2.msra.mxu0 0.0
        %2389 = vmatprep.mubr.f32.mxu0 0.0
        %2390 = vmatmul.mubr.f32.gmra.mxu0 %v2323
        %v2391 = vpop.f32.mrf.mxu0
        %v2392 = vadd.f32 0.0, %v2391
        %v2393 = vpop.f32.mrf.mxu0
        %2394 = vdwg.mxu0
        %v2395 = vrcp.pop %v2317
        %v2396 = vmul.f32 %v2392, %v2395
        %2398 = vrot.lane.b32.xlu0 %v1736, 64
        %v2399 = vpop.permute.xlu0 %2398
        %2402 = vrot.lane.b32.xlu0 %v2066, 64
        %v2403 = vpop.permute.xlu0 %2402
        %2406 = vrot.lane.b32.xlu0 %v2396, 64
        %v2407 = vpop.permute.xlu0 %2406
        %v2409 = vsel %vm1405, %v1568, %v2399
        %v2410 = vsel %vm1405, %v1898, %v2403
        %v2411 = vsel %vm1405, %v2228, %v2407
        %v2412 = vld [vmem:[#allocation7] sm:$0xff]
        %v2413 = vld [vmem:[#allocation7 + $0x8] sm:$0xff]
        %v2414 = vld [vmem:[#allocation7 + $0x10] sm:$0xff]
        %v2415 = vld [vmem:[#allocation7 + $0x18] sm:$0xff]
        %v2416 = vld [vmem:[#allocation7 + $0x20] sm:$0xff]
        %v2417 = vld [vmem:[#allocation7 + $0x28] sm:$0xff]
        %v2418 = vld [vmem:[#allocation7 + $0x30] sm:$0xff]
        %v2419 = vld [vmem:[#allocation7 + $0x38] sm:$0xff]
        %v2420 = vld [vmem:[#allocation7 + $0x40] sm:$0xff]
        %v2421 = vld [vmem:[#allocation7 + $0x48] sm:$0xff]
        %v2422 = vld [vmem:[#allocation7 + $0x50] sm:$0xff]
        %v2423 = vld [vmem:[#allocation7 + $0x58] sm:$0xff]
        %v2424 = vld [vmem:[#allocation7 + $0x60] sm:$0xff]
        %v2425 = vld [vmem:[#allocation7 + $0x68] sm:$0xff]
        %v2426 = vld [vmem:[#allocation7 + $0x70] sm:$0xff]
        %v2427 = vld [vmem:[#allocation7 + $0x78] sm:$0xff]
        %v2428 = vld [vmem:[#allocation7 + $0x80] sm:$0xff]
        %v2429 = vld [vmem:[#allocation7 + $0x88] sm:$0xff]
        %v2430 = vld [vmem:[#allocation7 + $0x90] sm:$0xff]
        %v2431 = vld [vmem:[#allocation7 + $0x98] sm:$0xff]
        %v2432 = vld [vmem:[#allocation7 + $0xa0] sm:$0xff]
        %v2433 = vld [vmem:[#allocation7 + $0xa8] sm:$0xff]
        %v2434 = vld [vmem:[#allocation7 + $0xb0] sm:$0xff]
        %v2435 = vld [vmem:[#allocation7 + $0xb8] sm:$0xff]
        %v2436 = vld [vmem:[#allocation7 + $0xc0] sm:$0xff]
        %v2437 = vld [vmem:[#allocation7 + $0xc8] sm:$0xff]
        %v2438 = vld [vmem:[#allocation7 + $0xd0] sm:$0xff]
        %v2439 = vld [vmem:[#allocation7 + $0xd8] sm:$0xff]
        %v2440 = vld [vmem:[#allocation7 + $0xe0] sm:$0xff]
        %v2441 = vld [vmem:[#allocation7 + $0xe8] sm:$0xff]
        %v2442 = vld [vmem:[#allocation7 + $0xf0] sm:$0xff]
        %v2443 = vld [vmem:[#allocation7 + $0xf8] sm:$0xff]
        %v2444 = vld [vmem:[#allocation7 + $0x100] sm:$0xff]
        %v2445 = vld [vmem:[#allocation7 + $0x108] sm:$0xff]
        %v2446 = vld [vmem:[#allocation7 + $0x110] sm:$0xff]
        %v2447 = vld [vmem:[#allocation7 + $0x118] sm:$0xff]
        %v2448 = vld [vmem:[#allocation7 + $0x120] sm:$0xff]
        %v2449 = vld [vmem:[#allocation7 + $0x128] sm:$0xff]
        %v2450 = vld [vmem:[#allocation7 + $0x130] sm:$0xff]
        %v2451 = vld [vmem:[#allocation7 + $0x138] sm:$0xff]
        %v2452 = vld [vmem:[#allocation7 + $0x140] sm:$0xff]
        %v2453 = vld [vmem:[#allocation7 + $0x148] sm:$0xff]
        %v2454 = vld [vmem:[#allocation7 + $0x150] sm:$0xff]
        %v2455 = vld [vmem:[#allocation7 + $0x158] sm:$0xff]
        %v2456 = vld [vmem:[#allocation7 + $0x160] sm:$0xff]
        %v2457 = vld [vmem:[#allocation7 + $0x168] sm:$0xff]
        %v2458 = vld [vmem:[#allocation7 + $0x170] sm:$0xff]
        %v2459 = vld [vmem:[#allocation7 + $0x178] sm:$0xff]
        %v2460 = vld [vmem:[#allocation7 + $0x180] sm:$0xff]
        %v2461 = vld [vmem:[#allocation7 + $0x188] sm:$0xff]
        %v2462 = vld [vmem:[#allocation7 + $0x190] sm:$0xff]
        %v2463 = vld [vmem:[#allocation7 + $0x198] sm:$0xff]
        %v2464 = vld [vmem:[#allocation7 + $0x1a0] sm:$0xff]
        %v2465 = vld [vmem:[#allocation7 + $0x1a8] sm:$0xff]
        %v2466 = vld [vmem:[#allocation7 + $0x1b0] sm:$0xff]
        %v2467 = vld [vmem:[#allocation7 + $0x1b8] sm:$0xff]
        %v2468 = vld [vmem:[#allocation7 + $0x1c0] sm:$0xff]
        %v2469 = vld [vmem:[#allocation7 + $0x1c8] sm:$0xff]
        %v2470 = vld [vmem:[#allocation7 + $0x1d0] sm:$0xff]
        %v2471 = vld [vmem:[#allocation7 + $0x1d8] sm:$0xff]
        %v2472 = vld [vmem:[#allocation7 + $0x1e0] sm:$0xff]
        %v2473 = vld [vmem:[#allocation7 + $0x1e8] sm:$0xff]
        %v2474 = vld [vmem:[#allocation7 + $0x1f0] sm:$0xff]
        %v2475 = vld [vmem:[#allocation7 + $0x1f8] sm:$0xff]
        %v2476 = vld [vmem:[#allocation7 + $0x200] sm:$0xff]
        %v2477 = vld [vmem:[#allocation7 + $0x208] sm:$0xff]
        %v2478 = vld [vmem:[#allocation7 + $0x210] sm:$0xff]
        %v2479 = vld [vmem:[#allocation7 + $0x218] sm:$0xff]
        %v2480 = vld [vmem:[#allocation7 + $0x220] sm:$0xff]
        %v2481 = vld [vmem:[#allocation7 + $0x228] sm:$0xff]
        %v2482 = vld [vmem:[#allocation7 + $0x230] sm:$0xff]
        %v2483 = vld [vmem:[#allocation7 + $0x238] sm:$0xff]
        %v2484 = vld [vmem:[#allocation7 + $0x240] sm:$0xff]
        %v2485 = vld [vmem:[#allocation7 + $0x248] sm:$0xff]
        %v2486 = vld [vmem:[#allocation7 + $0x250] sm:$0xff]
        %v2487 = vld [vmem:[#allocation7 + $0x258] sm:$0xff]
        %v2488 = vld [vmem:[#allocation7 + $0x260] sm:$0xff]
        %v2489 = vld [vmem:[#allocation7 + $0x268] sm:$0xff]
        %v2490 = vld [vmem:[#allocation7 + $0x270] sm:$0xff]
        %v2491 = vld [vmem:[#allocation7 + $0x278] sm:$0xff]
        %v2492 = vld [vmem:[#allocation7 + $0x280] sm:$0xff]
        %v2493 = vld [vmem:[#allocation7 + $0x288] sm:$0xff]
        %v2494 = vld [vmem:[#allocation7 + $0x290] sm:$0xff]
        %v2495 = vld [vmem:[#allocation7 + $0x298] sm:$0xff]
        %v2496 = vld [vmem:[#allocation7 + $0x2a0] sm:$0xff]
        %v2497 = vld [vmem:[#allocation7 + $0x2a8] sm:$0xff]
        %v2498 = vld [vmem:[#allocation7 + $0x2b0] sm:$0xff]
        %v2499 = vld [vmem:[#allocation7 + $0x2b8] sm:$0xff]
        %v2500 = vld [vmem:[#allocation7 + $0x2c0] sm:$0xff]
        %v2501 = vld [vmem:[#allocation7 + $0x2c8] sm:$0xff]
        %v2502 = vld [vmem:[#allocation7 + $0x2d0] sm:$0xff]
        %v2503 = vld [vmem:[#allocation7 + $0x2d8] sm:$0xff]
        %v2504 = vld [vmem:[#allocation7 + $0x2e0] sm:$0xff]
        %v2505 = vld [vmem:[#allocation7 + $0x2e8] sm:$0xff]
        %v2506 = vld [vmem:[#allocation7 + $0x2f0] sm:$0xff]
        %v2507 = vld [vmem:[#allocation7 + $0x2f8] sm:$0xff]
        %v2508 = vld [vmem:[#allocation7 + $0x300] sm:$0xff]
        %v2509 = vld [vmem:[#allocation7 + $0x308] sm:$0xff]
        %v2510 = vld [vmem:[#allocation7 + $0x310] sm:$0xff]
        %v2511 = vld [vmem:[#allocation7 + $0x318] sm:$0xff]
        %v2512 = vld [vmem:[#allocation7 + $0x320] sm:$0xff]
        %v2513 = vld [vmem:[#allocation7 + $0x328] sm:$0xff]
        %v2514 = vld [vmem:[#allocation7 + $0x330] sm:$0xff]
        %v2515 = vld [vmem:[#allocation7 + $0x338] sm:$0xff]
        %v2516 = vld [vmem:[#allocation7 + $0x340] sm:$0xff]
        %v2517 = vld [vmem:[#allocation7 + $0x348] sm:$0xff]
        %v2518 = vld [vmem:[#allocation7 + $0x350] sm:$0xff]
        %v2519 = vld [vmem:[#allocation7 + $0x358] sm:$0xff]
        %v2520 = vld [vmem:[#allocation7 + $0x360] sm:$0xff]
        %v2521 = vld [vmem:[#allocation7 + $0x368] sm:$0xff]
        %v2522 = vld [vmem:[#allocation7 + $0x370] sm:$0xff]
        %v2523 = vld [vmem:[#allocation7 + $0x378] sm:$0xff]
        %v2524 = vld [vmem:[#allocation7 + $0x380] sm:$0xff]
        %v2525 = vld [vmem:[#allocation7 + $0x388] sm:$0xff]
        %v2526 = vld [vmem:[#allocation7 + $0x390] sm:$0xff]
        %v2527 = vld [vmem:[#allocation7 + $0x398] sm:$0xff]
        %v2528 = vld [vmem:[#allocation7 + $0x3a0] sm:$0xff]
        %v2529 = vld [vmem:[#allocation7 + $0x3a8] sm:$0xff]
        %v2530 = vld [vmem:[#allocation7 + $0x3b0] sm:$0xff]
        %v2531 = vld [vmem:[#allocation7 + $0x3b8] sm:$0xff]
        %v2532 = vld [vmem:[#allocation7 + $0x3c0] sm:$0xff]
        %v2533 = vld [vmem:[#allocation7 + $0x3c8] sm:$0xff]
        %v2534 = vld [vmem:[#allocation7 + $0x3d0] sm:$0xff]
        %v2535 = vld [vmem:[#allocation7 + $0x3d8] sm:$0xff]
        %v2536 = vld [vmem:[#allocation7 + $0x3e0] sm:$0xff]
        %v2537 = vld [vmem:[#allocation7 + $0x3e8] sm:$0xff]
        %v2538 = vld [vmem:[#allocation7 + $0x3f0] sm:$0xff]
        %v2539 = vld [vmem:[#allocation7 + $0x3f8] sm:$0xff]
        %v2540 = vld [vmem:[#allocation7 + $0x400] sm:$0xff]
        %v2541 = vld [vmem:[#allocation7 + $0x408] sm:$0xff]
        %v2542 = vld [vmem:[#allocation7 + $0x410] sm:$0xff]
        %v2543 = vld [vmem:[#allocation7 + $0x418] sm:$0xff]
        %v2544 = vld [vmem:[#allocation7 + $0x420] sm:$0xff]
        %v2545 = vld [vmem:[#allocation7 + $0x428] sm:$0xff]
        %v2546 = vld [vmem:[#allocation7 + $0x430] sm:$0xff]
        %v2547 = vld [vmem:[#allocation7 + $0x438] sm:$0xff]
        %v2548 = vld [vmem:[#allocation7 + $0x440] sm:$0xff]
        %v2549 = vld [vmem:[#allocation7 + $0x448] sm:$0xff]
        %v2550 = vld [vmem:[#allocation7 + $0x450] sm:$0xff]
        %v2551 = vld [vmem:[#allocation7 + $0x458] sm:$0xff]
        %v2552 = vld [vmem:[#allocation7 + $0x460] sm:$0xff]
        %v2553 = vld [vmem:[#allocation7 + $0x468] sm:$0xff]
        %v2554 = vld [vmem:[#allocation7 + $0x470] sm:$0xff]
        %v2555 = vld [vmem:[#allocation7 + $0x478] sm:$0xff]
        %v2556 = vld [vmem:[#allocation8] sm:$0x7]
        %v2558 = vlaneseq
        %v2559 = vshrl.u32 %v2558, 7
        %v2560 = vsub.s32 0, %v2559
        %v2561 = vrot.slane %v2556, %v2560
        %v2562 = vlaneseq
        %v2563 = vshrl.u32 %v2562, 7
        %v2564 = vsub.s32 1, %v2563
        %v2565 = vrot.slane %v2556, %v2564
        %v2566 = vlaneseq
        %v2567 = vshrl.u32 %v2566, 7
        %v2568 = vsub.s32 2, %v2567
        %v2569 = vrot.slane %v2556, %v2568
        %2573 = vmatprep.subr.mxu0 %v2458
        %2574 = vmatpush1.msra.mxu0 %v2457
        %2575 = vmatprep.subr.mxu0 %v2455
        %2576 = vmatpush1.msra.mxu0 %v2454
        %2577 = vmatprep.subr.mxu0 %v2452
        %2578 = vmatpush1.msra.mxu0 %v2451
        %2579 = vmatprep.subr.mxu0 %v2449
        %2580 = vmatpush1.msra.mxu0 %v2448
        %2581 = vmatprep.subr.mxu0 %v2446
        %2582 = vmatpush1.msra.mxu0 %v2445
        %2583 = vmatprep.subr.mxu0 %v2443
        %2584 = vmatpush1.msra.mxu0 %v2442
        %2585 = vmatprep.subr.mxu0 %v2440
        %2586 = vmatpush1.msra.mxu0 %v2439
        %2587 = vmatprep.subr.mxu0 %v2437
        %2588 = vmatpush1.msra.mxu0 %v2436
        %2589 = vmatprep.subr.mxu0 %v2434
        %2590 = vmatpush1.msra.mxu0 %v2433
        %2591 = vmatprep.subr.mxu0 %v2431
        %2592 = vmatpush1.msra.mxu0 %v2430
        %2593 = vmatprep.subr.mxu0 %v2428
        %2594 = vmatpush1.msra.mxu0 %v2427
        %2595 = vmatprep.subr.mxu0 %v2425
        %2596 = vmatpush1.msra.mxu0 %v2424
        %2597 = vmatprep.subr.mxu0 %v2422
        %2598 = vmatpush1.msra.mxu0 %v2421
        %2599 = vmatprep.subr.mxu0 %v2419
        %2600 = vmatpush1.msra.mxu0 %v2418
        %2601 = vmatprep.subr.mxu0 %v2416
        %2602 = vmatpush1.msra.mxu0 %v2415
        %2603 = vmatprep.subr.mxu0 %v2413
        %2604 = vmatpush1.msra.mxu0 %v2412
        %2605 = vmatprep.subr.mxu0 %v2506
        %2606 = vmatpush2.msra.mxu0 %v2505
        %2607 = vmatprep.subr.mxu0 %v2503
        %2608 = vmatpush2.msra.mxu0 %v2502
        %2609 = vmatprep.subr.mxu0 %v2500
        %2610 = vmatpush2.msra.mxu0 %v2499
        %2611 = vmatprep.subr.mxu0 %v2497
        %2612 = vmatpush2.msra.mxu0 %v2496
        %2613 = vmatprep.subr.mxu0 %v2494
        %2614 = vmatpush2.msra.mxu0 %v2493
        %2615 = vmatprep.subr.mxu0 %v2491
        %2616 = vmatpush2.msra.mxu0 %v2490
        %2617 = vmatprep.subr.mxu0 %v2488
        %2618 = vmatpush2.msra.mxu0 %v2487
        %2619 = vmatprep.subr.mxu0 %v2485
        %2620 = vmatpush2.msra.mxu0 %v2484
        %2621 = vmatprep.subr.mxu0 %v2482
        %2622 = vmatpush2.msra.mxu0 %v2481
        %2623 = vmatprep.subr.mxu0 %v2479
        %2624 = vmatpush2.msra.mxu0 %v2478
        %2625 = vmatprep.subr.mxu0 %v2476
        %2626 = vmatpush2.msra.mxu0 %v2475
        %2627 = vmatprep.subr.mxu0 %v2473
        %2628 = vmatpush2.msra.mxu0 %v2472
        %2629 = vmatprep.subr.mxu0 %v2470
        %2630 = vmatpush2.msra.mxu0 %v2469
        %2631 = vmatprep.subr.mxu0 %v2467
        %2632 = vmatpush2.msra.mxu0 %v2466
        %2633 = vmatprep.subr.mxu0 %v2464
        %2634 = vmatpush2.msra.mxu0 %v2463
        %2635 = vmatprep.subr.mxu0 %v2461
        %2636 = vmatpush2.msra.mxu0 %v2460
        %2637 = vmatprep.mubr.f32.mxu0 %v2410
        %2638 = vmatmul.mubr.f32.gmra.mxu0 %v2409
        %v2639 = vpop.f32.mrf.mxu0
        %v2640 = vadd.f32 %v2561, %v2639
        %v2641 = vpop.f32.mrf.mxu0
        %v2642 = vadd.f32 %v2565, %v2641
        %2643 = vdwg.mxu0
        %2644 = vmatprep.subr.mxu0 %v2554
        %2645 = vmatpush1.msra.mxu0 %v2553
        %2646 = vmatprep.subr.mxu0 %v2551
        %2647 = vmatpush1.msra.mxu0 %v2550
        %2648 = vmatprep.subr.mxu0 %v2548
        %2649 = vmatpush1.msra.mxu0 %v2547
        %2650 = vmatprep.subr.mxu0 %v2545
        %2651 = vmatpush1.msra.mxu0 %v2544
        %2652 = vmatprep.subr.mxu0 %v2542
        %2653 = vmatpush1.msra.mxu0 %v2541
        %2654 = vmatprep.subr.mxu0 %v2539
        %2655 = vmatpush1.msra.mxu0 %v2538
        %2656 = vmatprep.subr.mxu0 %v2536
        %2657 = vmatpush1.msra.mxu0 %v2535
        %2658 = vmatprep.subr.mxu0 %v2533
        %2659 = vmatpush1.msra.mxu0 %v2532
        %2660 = vmatprep.subr.mxu0 %v2530
        %2661 = vmatpush1.msra.mxu0 %v2529
        %2662 = vmatprep.subr.mxu0 %v2527
        %2663 = vmatpush1.msra.mxu0 %v2526
        %2664 = vmatprep.subr.mxu0 %v2524
        %2665 = vmatpush1.msra.mxu0 %v2523
        %2666 = vmatprep.subr.mxu0 %v2521
        %2667 = vmatpush1.msra.mxu0 %v2520
        %2668 = vmatprep.subr.mxu0 %v2518
        %2669 = vmatpush1.msra.mxu0 %v2517
        %2670 = vmatprep.subr.mxu0 %v2515
        %2671 = vmatpush1.msra.mxu0 %v2514
        %2672 = vmatprep.subr.mxu0 %v2512
        %2673 = vmatpush1.msra.mxu0 %v2511
        %2674 = vmatprep.subr.mxu0 %v2509
        %2675 = vmatpush1.msra.mxu0 %v2508
        %2676 = vmatprep.subr.mxu0 0.0
        %2677 = vmatpush2.msra.mxu0 0.0
        %2678 = vmatprep.subr.mxu0 0.0
        %2679 = vmatpush2.msra.mxu0 0.0
        %2680 = vmatprep.subr.mxu0 0.0
        %2681 = vmatpush2.msra.mxu0 0.0
        %2682 = vmatprep.subr.mxu0 0.0
        %2683 = vmatpush2.msra.mxu0 0.0
        %2684 = vmatprep.subr.mxu0 0.0
        %2685 = vmatpush2.msra.mxu0 0.0
        %2686 = vmatprep.subr.mxu0 0.0
        %2687 = vmatpush2.msra.mxu0 0.0
        %2688 = vmatprep.subr.mxu0 0.0
        %2689 = vmatpush2.msra.mxu0 0.0
        %2690 = vmatprep.subr.mxu0 0.0
        %2691 = vmatpush2.msra.mxu0 0.0
        %2692 = vmatprep.subr.mxu0 0.0
        %2693 = vmatpush2.msra.mxu0 0.0
        %2694 = vmatprep.subr.mxu0 0.0
        %2695 = vmatpush2.msra.mxu0 0.0
        %2696 = vmatprep.subr.mxu0 0.0
        %2697 = vmatpush2.msra.mxu0 0.0
        %2698 = vmatprep.subr.mxu0 0.0
        %2699 = vmatpush2.msra.mxu0 0.0
        %2700 = vmatprep.subr.mxu0 0.0
        %2701 = vmatpush2.msra.mxu0 0.0
        %2702 = vmatprep.subr.mxu0 0.0
        %2703 = vmatpush2.msra.mxu0 0.0
        %2704 = vmatprep.subr.mxu0 0.0
        %2705 = vmatpush2.msra.mxu0 0.0
        %2706 = vmatprep.subr.mxu0 0.0
        %2707 = vmatpush2.msra.mxu0 0.0
        %2708 = vmatprep.mubr.f32.mxu0 0.0
        %2709 = vmatmul.mubr.f32.gmra.mxu0 %v2411
        %v2710 = vpop.f32.mrf.mxu0
        %v2711 = vadd.f32 %v2640, %v2710
        %v2712 = vpop.f32.mrf.mxu0
        %v2713 = vadd.f32 %v2642, %v2712
        %2714 = vdwg.mxu0
        %2715 = vmatprep.subr.mxu0 0.0
        %2716 = vmatpush1.msra.mxu0 %v2459
        %2717 = vmatprep.subr.mxu0 0.0
        %2718 = vmatpush1.msra.mxu0 %v2456
        %2719 = vmatprep.subr.mxu0 0.0
        %2720 = vmatpush1.msra.mxu0 %v2453
        %2721 = vmatprep.subr.mxu0 0.0
        %2722 = vmatpush1.msra.mxu0 %v2450
        %2723 = vmatprep.subr.mxu0 0.0
        %2724 = vmatpush1.msra.mxu0 %v2447
        %2725 = vmatprep.subr.mxu0 0.0
        %2726 = vmatpush1.msra.mxu0 %v2444
        %2727 = vmatprep.subr.mxu0 0.0
        %2728 = vmatpush1.msra.mxu0 %v2441
        %2729 = vmatprep.subr.mxu0 0.0
        %2730 = vmatpush1.msra.mxu0 %v2438
        %2731 = vmatprep.subr.mxu0 0.0
        %2732 = vmatpush1.msra.mxu0 %v2435
        %2733 = vmatprep.subr.mxu0 0.0
        %2734 = vmatpush1.msra.mxu0 %v2432
        %2735 = vmatprep.subr.mxu0 0.0
        %2736 = vmatpush1.msra.mxu0 %v2429
        %2737 = vmatprep.subr.mxu0 0.0
        %2738 = vmatpush1.msra.mxu0 %v2426
        %2739 = vmatprep.subr.mxu0 0.0
        %2740 = vmatpush1.msra.mxu0 %v2423
        %2741 = vmatprep.subr.mxu0 0.0
        %2742 = vmatpush1.msra.mxu0 %v2420
        %2743 = vmatprep.subr.mxu0 0.0
        %2744 = vmatpush1.msra.mxu0 %v2417
        %2745 = vmatprep.subr.mxu0 0.0
        %2746 = vmatpush1.msra.mxu0 %v2414
        %2747 = vmatprep.subr.mxu0 0.0
        %2748 = vmatpush2.msra.mxu0 %v2507
        %2749 = vmatprep.subr.mxu0 0.0
        %2750 = vmatpush2.msra.mxu0 %v2504
        %2751 = vmatprep.subr.mxu0 0.0
        %2752 = vmatpush2.msra.mxu0 %v2501
        %2753 = vmatprep.subr.mxu0 0.0
        %2754 = vmatpush2.msra.mxu0 %v2498
        %2755 = vmatprep.subr.mxu0 0.0
        %2756 = vmatpush2.msra.mxu0 %v2495
        %2757 = vmatprep.subr.mxu0 0.0
        %2758 = vmatpush2.msra.mxu0 %v2492
        %2759 = vmatprep.subr.mxu0 0.0
        %2760 = vmatpush2.msra.mxu0 %v2489
        %2761 = vmatprep.subr.mxu0 0.0
        %2762 = vmatpush2.msra.mxu0 %v2486
        %2763 = vmatprep.subr.mxu0 0.0
        %2764 = vmatpush2.msra.mxu0 %v2483
        %2765 = vmatprep.subr.mxu0 0.0
        %2766 = vmatpush2.msra.mxu0 %v2480
        %2767 = vmatprep.subr.mxu0 0.0
        %2768 = vmatpush2.msra.mxu0 %v2477
        %2769 = vmatprep.subr.mxu0 0.0
        %2770 = vmatpush2.msra.mxu0 %v2474
        %2771 = vmatprep.subr.mxu0 0.0
        %2772 = vmatpush2.msra.mxu0 %v2471
        %2773 = vmatprep.subr.mxu0 0.0
        %2774 = vmatpush2.msra.mxu0 %v2468
        %2775 = vmatprep.subr.mxu0 0.0
        %2776 = vmatpush2.msra.mxu0 %v2465
        %2777 = vmatprep.subr.mxu0 0.0
        %2778 = vmatpush2.msra.mxu0 %v2462
        %2779 = vmatprep.mubr.f32.mxu0 %v2410
        %2780 = vmatmul.mubr.f32.gmra.mxu0 %v2409
        %v2781 = vpop.f32.mrf.mxu0
        %v2782 = vadd.f32 %v2569, %v2781
        %v2783 = vpop.f32.mrf.mxu0
        %2784 = vdwg.mxu0
        %2785 = vmatprep.subr.mxu0 0.0
        %2786 = vmatpush1.msra.mxu0 %v2555
        %2787 = vmatprep.subr.mxu0 0.0
        %2788 = vmatpush1.msra.mxu0 %v2552
        %2789 = vmatprep.subr.mxu0 0.0
        %2790 = vmatpush1.msra.mxu0 %v2549
        %2791 = vmatprep.subr.mxu0 0.0
        %2792 = vmatpush1.msra.mxu0 %v2546
        %2793 = vmatprep.subr.mxu0 0.0
        %2794 = vmatpush1.msra.mxu0 %v2543
        %2795 = vmatprep.subr.mxu0 0.0
        %2796 = vmatpush1.msra.mxu0 %v2540
        %2797 = vmatprep.subr.mxu0 0.0
        %2798 = vmatpush1.msra.mxu0 %v2537
        %2799 = vmatprep.subr.mxu0 0.0
        %2800 = vmatpush1.msra.mxu0 %v2534
        %2801 = vmatprep.subr.mxu0 0.0
        %2802 = vmatpush1.msra.mxu0 %v2531
        %2803 = vmatprep.subr.mxu0 0.0
        %2804 = vmatpush1.msra.mxu0 %v2528
        %2805 = vmatprep.subr.mxu0 0.0
        %2806 = vmatpush1.msra.mxu0 %v2525
        %2807 = vmatprep.subr.mxu0 0.0
        %2808 = vmatpush1.msra.mxu0 %v2522
        %2809 = vmatprep.subr.mxu0 0.0
        %2810 = vmatpush1.msra.mxu0 %v2519
        %2811 = vmatprep.subr.mxu0 0.0
        %2812 = vmatpush1.msra.mxu0 %v2516
        %2813 = vmatprep.subr.mxu0 0.0
        %2814 = vmatpush1.msra.mxu0 %v2513
        %2815 = vmatprep.subr.mxu0 0.0
        %2816 = vmatpush1.msra.mxu0 %v2510
        %2817 = vmatprep.subr.mxu0 0.0
        %2818 = vmatpush2.msra.mxu0 0.0
        %2819 = vmatprep.subr.mxu0 0.0
        %2820 = vmatpush2.msra.mxu0 0.0
        %2821 = vmatprep.subr.mxu0 0.0
        %2822 = vmatpush2.msra.mxu0 0.0
        %2823 = vmatprep.subr.mxu0 0.0
        %2824 = vmatpush2.msra.mxu0 0.0
        %2825 = vmatprep.subr.mxu0 0.0
        %2826 = vmatpush2.msra.mxu0 0.0
        %2827 = vmatprep.subr.mxu0 0.0
        %2828 = vmatpush2.msra.mxu0 0.0
        %2829 = vmatprep.subr.mxu0 0.0
        %2830 = vmatpush2.msra.mxu0 0.0
        %2831 = vmatprep.subr.mxu0 0.0
        %2832 = vmatpush2.msra.mxu0 0.0
        %2833 = vmatprep.subr.mxu0 0.0
        %2834 = vmatpush2.msra.mxu0 0.0
        %2835 = vmatprep.subr.mxu0 0.0
        %2836 = vmatpush2.msra.mxu0 0.0
        %2837 = vmatprep.subr.mxu0 0.0
        %2838 = vmatpush2.msra.mxu0 0.0
        %2839 = vmatprep.subr.mxu0 0.0
        %2840 = vmatpush2.msra.mxu0 0.0
        %2841 = vmatprep.subr.mxu0 0.0
        %2842 = vmatpush2.msra.mxu0 0.0
        %2843 = vmatprep.subr.mxu0 0.0
        %2844 = vmatpush2.msra.mxu0 0.0
        %2845 = vmatprep.subr.mxu0 0.0
        %2846 = vmatpush2.msra.mxu0 0.0
        %2847 = vmatprep.subr.mxu0 0.0
        %2848 = vmatpush2.msra.mxu0 0.0
        %2849 = vmatprep.mubr.f32.mxu0 0.0
        %2850 = vmatmul.mubr.f32.gmra.mxu0 %v2411
        %v2851 = vpop.f32.mrf.mxu0
        %v2852 = vadd.f32 %v2782, %v2851
        %v2853 = vpop.f32.mrf.mxu0
        %2854 = vdwg.mxu0
        %2855 = vst [vmem:[%s255] sm:$0xff] %v2711
        %2856 = vst [vmem:[%s255 + $0x8] sm:$0xff] %v2713
        %2857 = vst [vmem:[%s255 + $0x10] sm:$0xff] %v2852
        %s2858 = sand.u32 %s120, 1
        %s2859 = scalar_lea.sflag [#allocation4], %s2858
        %s2860 = sand.u32 %s120, 1
        %s2861 = smul.addr %s2860, 24
        %s2862 = scalar_lea.vmem [#allocation10], %s2861
        // Predicated region
        $region53: #{tpu_custom_call.1} parent=35 // pred_check
          %p2863 = pneg %p130
        $region54: #{tpu_custom_call.1} parent=35 // pred_check_branch
          %2865 = sbr.rel (%p2863) target = $region56
        $region55: #{tpu_custom_call.1} parent=35 // pred_region
          %s2867 = ssub.s32 384, 384
          %2868 = vsyncadd %s2859, %s2867
          %s2869 = smul.addr %s23, 3
          %s2870 = smul.addr %s2869, 128
          %s2871 = scalar_lea.hbm %s4, %s2870
          %s2873 = sshll.u32 %s2862, 4
          %s2874 = int_to_ptr.vmem [resolvable:$true] %s2873
          %2876 = dma.vmem_to_hbm [thread:$0]  %s2874, 384, %s2871, %s2859
        $region56: #{tpu_custom_call.1} parent=35 // pred_fallthru
          _
      $region36: #{tpu_custom_call.1} parent=5 // pred_fallthru
        _
      %p2877 = scmp.le.s32.totalorder 2, %s18
      // Predicated region
      $region57: #{tpu_custom_call.1} parent=5 // pred_check
        %p2878 = pneg %p2877
      $region58: #{tpu_custom_call.1} parent=5 // pred_check_branch
        %2880 = sbr.rel (%p2878) target = $region60
      $region59: #{tpu_custom_call.1} parent=5 // pred_region
        %s2881 = ssub.s32 %s18, 2
        // Predicated region
        $region61: #{tpu_custom_call.1} parent=59 // pred_check
          %p2882 = pneg %p136
        $region62: #{tpu_custom_call.1} parent=59 // pred_check_branch
          %2884 = sbr.rel (%p2882) target = $region64
        $region63: #{tpu_custom_call.1} parent=59 // pred_region
          %s2885 = sand.u32 %s121, 1
          %s2886 = scalar_lea.sflag [#allocation4], %s2885
          %s2887 = sand.u32 %s121, 1
          %s2888 = smul.addr %s2887, 24
          %s2889 = scalar_lea.vmem [#allocation10], %s2888
          %2890 = dma.done %s2886, 384
        $region64: #{tpu_custom_call.1} parent=59 // pred_fallthru
          _
      $region60: #{tpu_custom_call.1} parent=5 // pred_fallthru
        _
    $region6: #{tpu_custom_call.1} parent=1 // loop_footer
      %s22 = sadd.s32 1, %s18
    $region7: #{tpu_custom_call.1} parent=1 // loop_footer_branch
      %17 = sbr.rel target = $region3
    $region8: #{tpu_custom_call.1} parent=1 // loop_exit
      _
    %2891 = vsyncpa [#allocation3], 1
    %s2892 = scalar_lea.sflag [#allocation3], 1
    %2893 = vsyncpa %s2892, 1
    %2894 = vsyncpa [#allocation6], 1
    %2895 = vsyncpa [#allocation9], 1
    %2896 = vsyncpa [#allocation4], 1
    %s2897 = scalar_lea.sflag [#allocation4], 1
    %2898 = vsyncpa %s2897, 1

</llo_original>
